<compile_context>
chip_gen: v6e
topology: v6e:2x2x1
jax: 0.10.0
libtpu: 0.0.40
codegen_flags: <defaults>
</compile_context>

<pallas_src>
import numpy as np
import jax
import jax.numpy as jnp
from jax import lax
from jax.experimental import pallas as pl
from jax.experimental.pallas import tpu as pltpu

HIGH = jax.lax.Precision.HIGHEST  # only used by the pure-JAX reference


def _round_up(n, m):
    return ((n + m - 1) // m) * m


def make_rnn_attn_kernel(seq, bpad):
    """Kernel factory; seq and bpad (batch padded to a multiple of 8) are static.

    Ref shapes (feature dims lane-padded to 128 in the wrapper, row index = t*bpad + b):
      x_ref     : (seq*bpad, ipad)
      rmask_ref : (seq*bpad, 1)   1.0 for real batch rows, 0.0 for padded rows
      pmask_ref : (seq*bpad, 1)   1.0 where t > slen[b]  (output -> pad label)
      whw_ref   : (hpad, hpad)    layout for h @ whw
      bias_ref  : (1, hpad)       Wx_b + Wh_b folded
      wxw_ref   : (ipad, hpad)
      linw_ref  : (hpad, opad)
      linb_ref  : (1, opad)
      out_ref   : (seq*bpad, opad)
      xproj_ref : (seq*bpad, hpad) scratch: hoisted x @ Wx + (Wx_b + Wh_b)
      enc_ref   : (seq*bpad, hpad) scratch: encoder outputs (t-major)
      encw_ref  : (seq*bpad, hpad) scratch: enc @ Whw
      hdec_ref  : (seq*bpad, hpad) scratch: decoder hidden states
    """
    f32 = jnp.float32

    def kernel(x_ref, rmask_ref, pmask_ref, whw_ref, bias_ref, wxw_ref,
               linw_ref, linb_ref, out_ref,
               xproj_ref, enc_ref, encw_ref, hdec_ref):
        n_rows, opad = out_ref.shape
        hpad = whw_ref.shape[0]

        # ---- 1) hoisted input projection; biases folded; padded batch rows zeroed ----
        # (zeroed padded rows stay exactly 0 through every recurrence: z=0 -> h=c=0)
        xproj_ref[...] = (jnp.dot(x_ref[...], wxw_ref[...],
                                  preferred_element_type=f32)
                          + bias_ref[...]) * rmask_ref[...]

        def gates(z, c):
            # Shared-weight reference LSTMCell: i = f = o = sigmoid(z), g = tanh(z)
            s = jax.nn.sigmoid(z)
            g = jnp.tanh(z)
            c_new = s * (c + g)             # f*c + i*g, factored
            h_new = s * jnp.tanh(c_new)     # o * tanh(c')
            return h_new, c_new

        # ---- 2) fused forward + backward encoder pass (one (2*bpad,hpad) state) ------
        zeros2 = jnp.zeros((2 * bpad, hpad), f32)

        def enc_body(t, carry):
            h2, c2 = carry
            xf = xproj_ref[pl.ds(t * bpad, bpad), :]                # forward: x[t]
            xb = xproj_ref[pl.ds((seq - 1 - t) * bpad, bpad), :]    # backward: x[seq-1-t]
            xin = jnp.concatenate([xf, xb], axis=0)                 # (2*bpad, hpad)
            z = jnp.dot(h2, whw_ref[...], preferred_element_type=f32) + xin
            h2, c2 = gates(z, c2)
            # enc[t]: one dense, 8-sublane-aligned slab store (t-major layout)
            enc_ref[pl.ds(t * bpad, bpad), :] = (h2[:bpad, :] + h2[bpad:, :]) * 0.5
            return (h2, c2)

        h2, c2 = lax.fori_loop(0, seq, enc_body, (zeros2, zeros2), unroll=True)
        h0 = h2[bpad:, :]                     # decoder starts from backward-pass state
        c0 = c2[bpad:, :]

        # ---- 3) one-time: encW = enc @ Whw  (linearity: (h+ctx)@Whw = h@Whw + ctx@Whw)
        encw_ref[...] = jnp.dot(enc_ref[...], whw_ref[...], preferred_element_type=f32)

        # t-major 3-D views; (seq*bpad,hpad)->(seq,bpad,hpad) is sublane-group aligned
        # (bpad % 8 == 0) so these reshapes are layout no-ops.
        enc3 = enc_ref[...].reshape(seq, bpad, hpad)
        encw3 = encw_ref[...].reshape(seq, bpad, hpad)

        # ---- 4) attention decoder -----------------------------------------------------
        def dec_body(t, carry):
            h, c = carry                                            # (bpad, hpad)
            xin = xproj_ref[pl.ds(t * bpad, bpad), :]
            # MXU matmul independent of the softmax path -> overlaps EUP/XLU work below
            zh = jnp.dot(h, whw_ref[...], preferred_element_type=f32)
            # energies e[t'] = sum_{b,d} enc[t',b,d] * h[b,d]  (padded rows contribute 0)
            prod = enc3 * h[None, :, :]                             # VPU
            e = jnp.sum(jnp.sum(prod, axis=2, keepdims=True),       # lane reduce
                        axis=1, keepdims=True)                      # sublane reduce -> (seq,1,1)
            e = e - jnp.max(e, axis=0, keepdims=True)
            p = jnp.exp(e)
            alpha = p * pl.reciprocal(jnp.sum(p, axis=0, keepdims=True), approx=True)
            # context contribution to z:  (alpha-weighted enc) @ Whw == alpha-weighted encW
            zc = jnp.sum(encw3 * alpha, axis=0)                     # (bpad, hpad)
            h, c = gates(zh + zc + xin, c)
            # store hidden state only; output projection hoisted out of the loop
            hdec_ref[pl.ds(t * bpad, bpad), :] = h
            return (h, c)

        lax.fori_loop(0, seq, dec_body, (h0, c0), unroll=True)

        # ---- 5) hoisted output projection + length masking, one dense store -----------
        y = (jnp.dot(hdec_ref[...], linw_ref[...], preferred_element_type=f32)
             + linb_ref[...])
        col = lax.broadcasted_iota(jnp.int32, (n_rows, opad), 1)
        pad_val = (col == 1).astype(f32)      # reference's hard-coded [0, 1] pad label
        out_ref[...] = jnp.where(pmask_ref[...] > 0.5, pad_val, y)

    return kernel


def rnn_with_attention(x, slen, params):
    """x: (batch, seq, input_dim) f32, slen: (batch,) int32 -> (batch*seq, output_dim)."""
    batch, seq, input_dim = x.shape
    hidden = params["Wh_w"].shape[0]
    out_dim = params["lin_w"].shape[0]

    ipad = _round_up(input_dim, 128)
    hpad = _round_up(hidden, 128)
    opad = _round_up(out_dim, 128)
    bpad = _round_up(batch, 8)           # sublane-align every per-timestep row group

    def pad2(a, rows, cols):
        buf = jnp.zeros((rows, cols), jnp.float32)
        return buf.at[:a.shape[0], :a.shape[1]].set(a.astype(jnp.float32))

    whw = pad2(params["Wh_w"].T, hpad, hpad)                       # (hpad, hpad), h @ whw
    wxw = pad2(params["Wx_w"].T, ipad, hpad)
    bias = pad2((params["Wx_b"] + params["Wh_b"]).reshape(1, hidden), 1, hpad)
    linw = pad2(params["lin_w"].T, hpad, opad)
    linb = pad2(params["lin_b"].reshape(1, out_dim), 1, opad)

    # time-major, batch padded to bpad rows (zeros), input dim lane-padded
    xt = jnp.transpose(x.astype(jnp.float32), (1, 0, 2))           # (seq, batch, in)
    x3 = jnp.zeros((seq, bpad, ipad), jnp.float32).at[:, :batch, :input_dim].set(xt)
    x2 = x3.reshape(seq * bpad, ipad)                              # row = t*bpad + b

    bm = (jnp.arange(bpad) < batch).astype(jnp.float32)            # real-batch-row mask
    row_mask = jnp.broadcast_to(bm[None, :], (seq, bpad)).reshape(seq * bpad, 1)

    slen_p = jnp.full((bpad,), -1, jnp.int32).at[:batch].set(slen.astype(jnp.int32))
    t_idx = jnp.arange(seq, dtype=jnp.int32)[:, None]
    pad_mask = (t_idx > slen_p[None, :]).astype(jnp.float32).reshape(seq * bpad, 1)

    vmem = lambda: pl.BlockSpec(memory_space=pltpu.MemorySpace.VMEM)

    # rough tile-padded VMEM footprint -> explicit limit (<=48 MiB: headroom on v7x)
    def tile_bytes(shape, itemsize=4):
        s = list(shape) if len(shape) >= 2 else [1, shape[0]]
        s[-1] = _round_up(s[-1], 128)
        s[-2] = _round_up(s[-2], 8)
        n = 1
        for d in s:
            n *= d
        return n * itemsize

    shapes = [(seq * bpad, ipad), (seq * bpad, 1), (seq * bpad, 1),
              (hpad, hpad), (1, hpad), (ipad, hpad), (hpad, opad), (1, opad),
              (seq * bpad, opad)] + [(seq * bpad, hpad)] * 4
    footprint = sum(tile_bytes(s) for s in shapes)
    vmem_limit = int(min(max(2 * footprint + (8 << 20), 32 << 20), 48 << 20))

    out2d = pl.pallas_call(
        make_rnn_attn_kernel(seq, bpad),
        out_shape=jax.ShapeDtypeStruct((seq * bpad, opad), jnp.float32),
        in_specs=[vmem() for _ in range(8)],
        out_specs=vmem(),
        scratch_shapes=[
            pltpu.VMEM((seq * bpad, hpad), jnp.float32),   # hoisted x projection
            pltpu.VMEM((seq * bpad, hpad), jnp.float32),   # encoder outputs (t-major)
            pltpu.VMEM((seq * bpad, hpad), jnp.float32),   # enc @ Whw
            pltpu.VMEM((seq * bpad, hpad), jnp.float32),   # decoder hidden states
        ],
        compiler_params=pltpu.CompilerParams(vmem_limit_bytes=vmem_limit),
    )(x2, row_mask, pad_mask, whw, bias, wxw, linw, linb)

    out = out2d.reshape(seq, bpad, opad)[:, :batch, :out_dim]      # drop padding
    # (seq,batch,out) -> (batch,seq,out) -> (batch*seq,out) == torch .transpose(0,1).view(...)
    return jnp.transpose(out, (1, 0, 2)).reshape(batch * seq, out_dim)


def reference_forward(x, slen, params):
    """Pure-JAX (full f32) replica of the PyTorch forward, for verification."""
    batch, seq, _ = x.shape
    out_dim = params["lin_w"].shape[0]
    whw, whb = params["Wh_w"], params["Wh_b"]
    wxw, wxb = params["Wx_w"], params["Wx_b"]
    linw, linb = params["lin_w"], params["lin_b"]

    def cell(xi, h, c):
        z = (jnp.dot(h, whw.T, precision=HIGH) + whb
             + jnp.dot(xi, wxw.T, precision=HIGH) + wxb)
        s = jax.nn.sigmoid(z)
        g = jnp.tanh(z)
        c = s * c + s * g
        h = s * jnp.tanh(c)
        return h, c

    xt = jnp.transpose(x, (1, 0, 2))
    h = jnp.zeros((batch, whw.shape[0])); c = jnp.zeros_like(h)
    hfs = []
    for t in range(seq):
        h, c = cell(xt[t], h, c)
        hfs.append(h)
    h = jnp.zeros_like(h); c = jnp.zeros_like(c)
    enc = []
    for k in range(seq):
        t = seq - 1 - k
        h, c = cell(xt[t], h, c)
        enc.append((h + hfs[k]) / 2)
    enc = jnp.stack(enc)
    outs = []
    for t in range(seq):
        e = jnp.sum(enc * h[None], axis=(1, 2))
        alpha = jax.nn.softmax(e)
        context = h + jnp.sum(alpha[:, None, None] * enc, axis=0)
        h, c = cell(xt[t], context, c)
        outs.append(jnp.dot(h, linw.T, precision=HIGH) + linb)
    out = jnp.transpose(jnp.stack(outs), (1, 0, 2))
    t_idx = jnp.arange(seq)[None, :]
    pad = t_idx > slen[:, None]
    pad_val = jnp.broadcast_to(jnp.array([0.0, 1.0], jnp.float32), (batch, seq, out_dim))
    out = jnp.where(pad[:, :, None], pad_val, out)
    return out.reshape(batch * seq, out_dim)


if __name__ == "__main__":
    batch, seq, input_dim, hidden, out_dim = 2, 8, 4, 32, 2

    key = jax.random.PRNGKey(0)
    ks = jax.random.split(key, 8)
    params = {
        "Wh_w": 0.1 * jax.random.normal(ks[0], (hidden, hidden), jnp.float32),
        "Wh_b": 0.1 * jax.random.normal(ks[1], (hidden,), jnp.float32),
        "Wx_w": 0.1 * jax.random.normal(ks[2], (hidden, input_dim), jnp.float32),
        "Wx_b": 0.1 * jax.random.normal(ks[3], (hidden,), jnp.float32),
        "lin_w": 0.1 * jax.random.normal(ks[4], (out_dim, hidden), jnp.float32),
        "lin_b": 0.1 * jax.random.normal(ks[5], (out_dim,), jnp.float32),
    }
    x = jax.random.normal(ks[6], (batch, seq, input_dim), jnp.float32)
    slen = jnp.array([5, 3], dtype=jnp.int32)

    out = rnn_with_attention(x, slen, params)
    out = jax.block_until_ready(out)

    ref = reference_forward(x, slen, params)
    np.testing.assert_allclose(np.asarray(out), np.asarray(ref), rtol=3e-3, atol=3e-3)

    print("KERNEL_OK")
</pallas_src>

<mosaic_0001>
module attributes {stable_mosaic.version = 11 : i64} {
  func.func @kernel(%arg0: memref<64x128xf32, #tpu.memory_space<vmem>>, %arg1: memref<64x1xf32, #tpu.memory_space<vmem>>, %arg2: memref<64x1xf32, #tpu.memory_space<vmem>>, %arg3: memref<128x128xf32, #tpu.memory_space<vmem>>, %arg4: memref<1x128xf32, #tpu.memory_space<vmem>>, %arg5: memref<128x128xf32, #tpu.memory_space<vmem>>, %arg6: memref<128x128xf32, #tpu.memory_space<vmem>>, %arg7: memref<1x128xf32, #tpu.memory_space<vmem>>, %arg8: memref<64x128xf32, #tpu.memory_space<vmem>>, %arg9: memref<64x128xf32, #tpu.memory_space<vmem>>, %arg10: memref<64x128xf32, #tpu.memory_space<vmem>>, %arg11: memref<64x128xf32, #tpu.memory_space<vmem>>, %arg12: memref<64x128xf32, #tpu.memory_space<vmem>>) attributes {dimension_semantics = [], scalar_prefetch = 0 : i64, scratch_operands = 4 : i64, tpu.core_type = #tpu.core_type<tc>} {
    %c0 = arith.constant 0 : index
    %c0_0 = arith.constant 0 : index
    %0 = vector.load %arg0[%c0, %c0_0] : memref<64x128xf32, #tpu.memory_space<vmem>>, vector<64x128xf32>
    %c0_1 = arith.constant 0 : index
    %c0_2 = arith.constant 0 : index
    %1 = vector.load %arg5[%c0_1, %c0_2] : memref<128x128xf32, #tpu.memory_space<vmem>>, vector<128x128xf32>
    %cst = arith.constant dense<0.000000e+00> : vector<64x128xf32>
    %2 = tpu.matmul %0, %1, %cst {dimension_numbers = #tpu.dot_dimension_numbers<[1], [0], [0], [1], [0, 0, 1, 1], [], []>} : vector<64x128xf32>, vector<128x128xf32>, vector<64x128xf32> -> vector<64x128xf32>
    %c0_3 = arith.constant 0 : index
    %c0_4 = arith.constant 0 : index
    %3 = vector.load %arg4[%c0_3, %c0_4] : memref<1x128xf32, #tpu.memory_space<vmem>>, vector<1x128xf32>
    %4 = vector.broadcast %3 : vector<1x128xf32> to vector<64x128xf32>
    %5 = arith.addf %2, %4 : vector<64x128xf32>
    %c0_5 = arith.constant 0 : index
    %c0_6 = arith.constant 0 : index
    %6 = vector.load %arg1[%c0_5, %c0_6] : memref<64x1xf32, #tpu.memory_space<vmem>>, vector<64x1xf32>
    %7 = vector.broadcast %6 : vector<64x1xf32> to vector<64x128xf32>
    %8 = arith.mulf %5, %7 : vector<64x128xf32>
    %c0_7 = arith.constant 0 : index
    %c0_8 = arith.constant 0 : index
    %9 = vector.load %arg9[%c0_7, %c0_8] : memref<64x128xf32, #tpu.memory_space<vmem>>, vector<64x128xf32>
    tpu.vector_store %arg9[%c0_7, %c0_8], %8 {strides = array<i32>} : memref<64x128xf32, #tpu.memory_space<vmem>>, vector<64x128xf32>,
    %cst_9 = arith.constant 0.000000e+00 : f32
    %10 = vector.broadcast %cst_9 : f32 to vector<16x128xf32>
    %c0_i32 = arith.constant 0 : i32
    %c8_i32 = arith.constant 8 : i32
    %11 = arith.muli %c0_i32, %c8_i32 : i32
    %12 = arith.index_cast %11 : i32 to index
    %c0_10 = arith.constant 0 : index
    %13 = vector.load %arg9[%12, %c0_10] : memref<64x128xf32, #tpu.memory_space<vmem>>, vector<8x128xf32>
    %c7_i32 = arith.constant 7 : i32
    %14 = arith.subi %c7_i32, %c0_i32 : i32
    %c8_i32_11 = arith.constant 8 : i32
    %15 = arith.muli %14, %c8_i32_11 : i32
    %16 = arith.index_cast %15 : i32 to index
    %c0_12 = arith.constant 0 : index
    %17 = vector.load %arg9[%16, %c0_12] : memref<64x128xf32, #tpu.memory_space<vmem>>, vector<8x128xf32>
    %18 = tpu.concatenate %13, %17 in 0 : vector<8x128xf32>, vector<8x128xf32> -> vector<16x128xf32>
    %c0_13 = arith.constant 0 : index
    %c0_14 = arith.constant 0 : index
    %19 = vector.load %arg3[%c0_13, %c0_14] : memref<128x128xf32, #tpu.memory_space<vmem>>, vector<128x128xf32>
    %cst_15 = arith.constant dense<0.000000e+00> : vector<16x128xf32>
    %20 = tpu.matmul %10, %19, %cst_15 {dimension_numbers = #tpu.dot_dimension_numbers<[1], [0], [0], [1], [0, 0, 1, 1], [], []>} : vector<16x128xf32>, vector<128x128xf32>, vector<16x128xf32> -> vector<16x128xf32>
    %21 = arith.addf %20, %18 : vector<16x128xf32>
    %22 = arith.negf %21 : vector<16x128xf32>
    %23 = math.exp %22 : vector<16x128xf32>
    %cst_16 = arith.constant 1.000000e+00 : f32
    %24 = vector.broadcast %cst_16 : f32 to vector<16x128xf32>
    %25 = arith.addf %24, %23 : vector<16x128xf32>
    %26 = arith.divf %24, %25 : vector<16x128xf32>
    %27 = math.tanh %21 : vector<16x128xf32>
    %28 = arith.addf %10, %27 : vector<16x128xf32>
    %29 = arith.mulf %26, %28 : vector<16x128xf32>
    %30 = math.tanh %29 : vector<16x128xf32>
    %31 = arith.mulf %26, %30 : vector<16x128xf32>
    %32 = vector.extract_strided_slice %31 {offsets = [0, 0], sizes = [8, 128], strides = [1, 1]} : vector<16x128xf32> to vector<8x128xf32>
    %33 = vector.extract_strided_slice %31 {offsets = [8, 0], sizes = [8, 128], strides = [1, 1]} : vector<16x128xf32> to vector<8x128xf32>
    %34 = arith.addf %32, %33 : vector<8x128xf32>
    %cst_17 = arith.constant 5.000000e-01 : f32
    %35 = vector.broadcast %cst_17 : f32 to vector<8x128xf32>
    %36 = arith.mulf %34, %35 : vector<8x128xf32>
    %c8_i32_18 = arith.constant 8 : i32
    %37 = arith.muli %c0_i32, %c8_i32_18 : i32
    %38 = arith.index_cast %37 : i32 to index
    %c0_19 = arith.constant 0 : index
    %39 = vector.load %arg10[%38, %c0_19] : memref<64x128xf32, #tpu.memory_space<vmem>>, vector<8x128xf32>
    tpu.vector_store %arg10[%38, %c0_19], %36 {strides = array<i32>} : memref<64x128xf32, #tpu.memory_space<vmem>>, vector<8x128xf32>,
    %c1_i32 = arith.constant 1 : i32
    %c8_i32_20 = arith.constant 8 : i32
    %40 = arith.muli %c1_i32, %c8_i32_20 : i32
    %41 = arith.index_cast %40 : i32 to index
    %c0_21 = arith.constant 0 : index
    %42 = vector.load %arg9[%41, %c0_21] : memref<64x128xf32, #tpu.memory_space<vmem>>, vector<8x128xf32>
    %c7_i32_22 = arith.constant 7 : i32
    %43 = arith.subi %c7_i32_22, %c1_i32 : i32
    %c8_i32_23 = arith.constant 8 : i32
    %44 = arith.muli %43, %c8_i32_23 : i32
    %45 = arith.index_cast %44 : i32 to index
    %c0_24 = arith.constant 0 : index
    %46 = vector.load %arg9[%45, %c0_24] : memref<64x128xf32, #tpu.memory_space<vmem>>, vector<8x128xf32>
    %47 = tpu.concatenate %42, %46 in 0 : vector<8x128xf32>, vector<8x128xf32> -> vector<16x128xf32>
    %c0_25 = arith.constant 0 : index
    %c0_26 = arith.constant 0 : index
    %48 = vector.load %arg3[%c0_25, %c0_26] : memref<128x128xf32, #tpu.memory_space<vmem>>, vector<128x128xf32>
    %cst_27 = arith.constant dense<0.000000e+00> : vector<16x128xf32>
    %49 = tpu.matmul %31, %48, %cst_27 {dimension_numbers = #tpu.dot_dimension_numbers<[1], [0], [0], [1], [0, 0, 1, 1], [], []>} : vector<16x128xf32>, vector<128x128xf32>, vector<16x128xf32> -> vector<16x128xf32>
    %50 = arith.addf %49, %47 : vector<16x128xf32>
    %51 = arith.negf %50 : vector<16x128xf32>
    %52 = math.exp %51 : vector<16x128xf32>
    %cst_28 = arith.constant 1.000000e+00 : f32
    %53 = vector.broadcast %cst_28 : f32 to vector<16x128xf32>
    %54 = arith.addf %53, %52 : vector<16x128xf32>
    %55 = arith.divf %53, %54 : vector<16x128xf32>
    %56 = math.tanh %50 : vector<16x128xf32>
    %57 = arith.addf %29, %56 : vector<16x128xf32>
    %58 = arith.mulf %55, %57 : vector<16x128xf32>
    %59 = math.tanh %58 : vector<16x128xf32>
    %60 = arith.mulf %55, %59 : vector<16x128xf32>
    %61 = vector.extract_strided_slice %60 {offsets = [0, 0], sizes = [8, 128], strides = [1, 1]} : vector<16x128xf32> to vector<8x128xf32>
    %62 = vector.extract_strided_slice %60 {offsets = [8, 0], sizes = [8, 128], strides = [1, 1]} : vector<16x128xf32> to vector<8x128xf32>
    %63 = arith.addf %61, %62 : vector<8x128xf32>
    %cst_29 = arith.constant 5.000000e-01 : f32
    %64 = vector.broadcast %cst_29 : f32 to vector<8x128xf32>
    %65 = arith.mulf %63, %64 : vector<8x128xf32>
    %c8_i32_30 = arith.constant 8 : i32
    %66 = arith.muli %c1_i32, %c8_i32_30 : i32
    %67 = arith.index_cast %66 : i32 to index
    %c0_31 = arith.constant 0 : index
    %68 = vector.load %arg10[%67, %c0_31] : memref<64x128xf32, #tpu.memory_space<vmem>>, vector<8x128xf32>
    tpu.vector_store %arg10[%67, %c0_31], %65 {strides = array<i32>} : memref<64x128xf32, #tpu.memory_space<vmem>>, vector<8x128xf32>,
    %c2_i32 = arith.constant 2 : i32
    %c8_i32_32 = arith.constant 8 : i32
    %69 = arith.muli %c2_i32, %c8_i32_32 : i32
    %70 = arith.index_cast %69 : i32 to index
    %c0_33 = arith.constant 0 : index
    %71 = vector.load %arg9[%70, %c0_33] : memref<64x128xf32, #tpu.memory_space<vmem>>, vector<8x128xf32>
    %c7_i32_34 = arith.constant 7 : i32
    %72 = arith.subi %c7_i32_34, %c2_i32 : i32
    %c8_i32_35 = arith.constant 8 : i32
    %73 = arith.muli %72, %c8_i32_35 : i32
    %74 = arith.index_cast %73 : i32 to index
    %c0_36 = arith.constant 0 : index
    %75 = vector.load %arg9[%74, %c0_36] : memref<64x128xf32, #tpu.memory_space<vmem>>, vector<8x128xf32>
    %76 = tpu.concatenate %71, %75 in 0 : vector<8x128xf32>, vector<8x128xf32> -> vector<16x128xf32>
    %c0_37 = arith.constant 0 : index
    %c0_38 = arith.constant 0 : index
    %77 = vector.load %arg3[%c0_37, %c0_38] : memref<128x128xf32, #tpu.memory_space<vmem>>, vector<128x128xf32>
    %cst_39 = arith.constant dense<0.000000e+00> : vector<16x128xf32>
    %78 = tpu.matmul %60, %77, %cst_39 {dimension_numbers = #tpu.dot_dimension_numbers<[1], [0], [0], [1], [0, 0, 1, 1], [], []>} : vector<16x128xf32>, vector<128x128xf32>, vector<16x128xf32> -> vector<16x128xf32>
    %79 = arith.addf %78, %76 : vector<16x128xf32>
    %80 = arith.negf %79 : vector<16x128xf32>
    %81 = math.exp %80 : vector<16x128xf32>
    %cst_40 = arith.constant 1.000000e+00 : f32
    %82 = vector.broadcast %cst_40 : f32 to vector<16x128xf32>
    %83 = arith.addf %82, %81 : vector<16x128xf32>
    %84 = arith.divf %82, %83 : vector<16x128xf32>
    %85 = math.tanh %79 : vector<16x128xf32>
    %86 = arith.addf %58, %85 : vector<16x128xf32>
    %87 = arith.mulf %84, %86 : vector<16x128xf32>
    %88 = math.tanh %87 : vector<16x128xf32>
    %89 = arith.mulf %84, %88 : vector<16x128xf32>
    %90 = vector.extract_strided_slice %89 {offsets = [0, 0], sizes = [8, 128], strides = [1, 1]} : vector<16x128xf32> to vector<8x128xf32>
    %91 = vector.extract_strided_slice %89 {offsets = [8, 0], sizes = [8, 128], strides = [1, 1]} : vector<16x128xf32> to vector<8x128xf32>
    %92 = arith.addf %90, %91 : vector<8x128xf32>
    %cst_41 = arith.constant 5.000000e-01 : f32
    %93 = vector.broadcast %cst_41 : f32 to vector<8x128xf32>
    %94 = arith.mulf %92, %93 : vector<8x128xf32>
    %c8_i32_42 = arith.constant 8 : i32
    %95 = arith.muli %c2_i32, %c8_i32_42 : i32
    %96 = arith.index_cast %95 : i32 to index
    %c0_43 = arith.constant 0 : index
    %97 = vector.load %arg10[%96, %c0_43] : memref<64x128xf32, #tpu.memory_space<vmem>>, vector<8x128xf32>
    tpu.vector_store %arg10[%96, %c0_43], %94 {strides = array<i32>} : memref<64x128xf32, #tpu.memory_space<vmem>>, vector<8x128xf32>,
    %c3_i32 = arith.constant 3 : i32
    %c8_i32_44 = arith.constant 8 : i32
    %98 = arith.muli %c3_i32, %c8_i32_44 : i32
    %99 = arith.index_cast %98 : i32 to index
    %c0_45 = arith.constant 0 : index
    %100 = vector.load %arg9[%99, %c0_45] : memref<64x128xf32, #tpu.memory_space<vmem>>, vector<8x128xf32>
    %c7_i32_46 = arith.constant 7 : i32
    %101 = arith.subi %c7_i32_46, %c3_i32 : i32
    %c8_i32_47 = arith.constant 8 : i32
    %102 = arith.muli %101, %c8_i32_47 : i32
    %103 = arith.index_cast %102 : i32 to index
    %c0_48 = arith.constant 0 : index
    %104 = vector.load %arg9[%103, %c0_48] : memref<64x128xf32, #tpu.memory_space<vmem>>, vector<8x128xf32>
    %105 = tpu.concatenate %100, %104 in 0 : vector<8x128xf32>, vector<8x128xf32> -> vector<16x128xf32>
    %c0_49 = arith.constant 0 : index
    %c0_50 = arith.constant 0 : index
    %106 = vector.load %arg3[%c0_49, %c0_50] : memref<128x128xf32, #tpu.memory_space<vmem>>, vector<128x128xf32>
    %cst_51 = arith.constant dense<0.000000e+00> : vector<16x128xf32>
    %107 = tpu.matmul %89, %106, %cst_51 {dimension_numbers = #tpu.dot_dimension_numbers<[1], [0], [0], [1], [0, 0, 1, 1], [], []>} : vector<16x128xf32>, vector<128x128xf32>, vector<16x128xf32> -> vector<16x128xf32>
    %108 = arith.addf %107, %105 : vector<16x128xf32>
    %109 = arith.negf %108 : vector<16x128xf32>
    %110 = math.exp %109 : vector<16x128xf32>
    %cst_52 = arith.constant 1.000000e+00 : f32
    %111 = vector.broadcast %cst_52 : f32 to vector<16x128xf32>
    %112 = arith.addf %111, %110 : vector<16x128xf32>
    %113 = arith.divf %111, %112 : vector<16x128xf32>
    %114 = math.tanh %108 : vector<16x128xf32>
    %115 = arith.addf %87, %114 : vector<16x128xf32>
    %116 = arith.mulf %113, %115 : vector<16x128xf32>
    %117 = math.tanh %116 : vector<16x128xf32>
    %118 = arith.mulf %113, %117 : vector<16x128xf32>
    %119 = vector.extract_strided_slice %118 {offsets = [0, 0], sizes = [8, 128], strides = [1, 1]} : vector<16x128xf32> to vector<8x128xf32>
    %120 = vector.extract_strided_slice %118 {offsets = [8, 0], sizes = [8, 128], strides = [1, 1]} : vector<16x128xf32> to vector<8x128xf32>
    %121 = arith.addf %119, %120 : vector<8x128xf32>
    %cst_53 = arith.constant 5.000000e-01 : f32
    %122 = vector.broadcast %cst_53 : f32 to vector<8x128xf32>
    %123 = arith.mulf %121, %122 : vector<8x128xf32>
    %c8_i32_54 = arith.constant 8 : i32
    %124 = arith.muli %c3_i32, %c8_i32_54 : i32
    %125 = arith.index_cast %124 : i32 to index
    %c0_55 = arith.constant 0 : index
    %126 = vector.load %arg10[%125, %c0_55] : memref<64x128xf32, #tpu.memory_space<vmem>>, vector<8x128xf32>
    tpu.vector_store %arg10[%125, %c0_55], %123 {strides = array<i32>} : memref<64x128xf32, #tpu.memory_space<vmem>>, vector<8x128xf32>,
    %c4_i32 = arith.constant 4 : i32
    %c8_i32_56 = arith.constant 8 : i32
    %127 = arith.muli %c4_i32, %c8_i32_56 : i32
    %128 = arith.index_cast %127 : i32 to index
    %c0_57 = arith.constant 0 : index
    %129 = vector.load %arg9[%128, %c0_57] : memref<64x128xf32, #tpu.memory_space<vmem>>, vector<8x128xf32>
    %c7_i32_58 = arith.constant 7 : i32
    %130 = arith.subi %c7_i32_58, %c4_i32 : i32
    %c8_i32_59 = arith.constant 8 : i32
    %131 = arith.muli %130, %c8_i32_59 : i32
    %132 = arith.index_cast %131 : i32 to index
    %c0_60 = arith.constant 0 : index
    %133 = vector.load %arg9[%132, %c0_60] : memref<64x128xf32, #tpu.memory_space<vmem>>, vector<8x128xf32>
    %134 = tpu.concatenate %129, %133 in 0 : vector<8x128xf32>, vector<8x128xf32> -> vector<16x128xf32>
    %c0_61 = arith.constant 0 : index
    %c0_62 = arith.constant 0 : index
    %135 = vector.load %arg3[%c0_61, %c0_62] : memref<128x128xf32, #tpu.memory_space<vmem>>, vector<128x128xf32>
    %cst_63 = arith.constant dense<0.000000e+00> : vector<16x128xf32>
    %136 = tpu.matmul %118, %135, %cst_63 {dimension_numbers = #tpu.dot_dimension_numbers<[1], [0], [0], [1], [0, 0, 1, 1], [], []>} : vector<16x128xf32>, vector<128x128xf32>, vector<16x128xf32> -> vector<16x128xf32>
    %137 = arith.addf %136, %134 : vector<16x128xf32>
    %138 = arith.negf %137 : vector<16x128xf32>
    %139 = math.exp %138 : vector<16x128xf32>
    %cst_64 = arith.constant 1.000000e+00 : f32
    %140 = vector.broadcast %cst_64 : f32 to vector<16x128xf32>
    %141 = arith.addf %140, %139 : vector<16x128xf32>
    %142 = arith.divf %140, %141 : vector<16x128xf32>
    %143 = math.tanh %137 : vector<16x128xf32>
    %144 = arith.addf %116, %143 : vector<16x128xf32>
    %145 = arith.mulf %142, %144 : vector<16x128xf32>
    %146 = math.tanh %145 : vector<16x128xf32>
    %147 = arith.mulf %142, %146 : vector<16x128xf32>
    %148 = vector.extract_strided_slice %147 {offsets = [0, 0], sizes = [8, 128], strides = [1, 1]} : vector<16x128xf32> to vector<8x128xf32>
    %149 = vector.extract_strided_slice %147 {offsets = [8, 0], sizes = [8, 128], strides = [1, 1]} : vector<16x128xf32> to vector<8x128xf32>
    %150 = arith.addf %148, %149 : vector<8x128xf32>
    %cst_65 = arith.constant 5.000000e-01 : f32
    %151 = vector.broadcast %cst_65 : f32 to vector<8x128xf32>
    %152 = arith.mulf %150, %151 : vector<8x128xf32>
    %c8_i32_66 = arith.constant 8 : i32
    %153 = arith.muli %c4_i32, %c8_i32_66 : i32
    %154 = arith.index_cast %153 : i32 to index
    %c0_67 = arith.constant 0 : index
    %155 = vector.load %arg10[%154, %c0_67] : memref<64x128xf32, #tpu.memory_space<vmem>>, vector<8x128xf32>
    tpu.vector_store %arg10[%154, %c0_67], %152 {strides = array<i32>} : memref<64x128xf32, #tpu.memory_space<vmem>>, vector<8x128xf32>,
    %c5_i32 = arith.constant 5 : i32
    %c8_i32_68 = arith.constant 8 : i32
    %156 = arith.muli %c5_i32, %c8_i32_68 : i32
    %157 = arith.index_cast %156 : i32 to index
    %c0_69 = arith.constant 0 : index
    %158 = vector.load %arg9[%157, %c0_69] : memref<64x128xf32, #tpu.memory_space<vmem>>, vector<8x128xf32>
    %c7_i32_70 = arith.constant 7 : i32
    %159 = arith.subi %c7_i32_70, %c5_i32 : i32
    %c8_i32_71 = arith.constant 8 : i32
    %160 = arith.muli %159, %c8_i32_71 : i32
    %161 = arith.index_cast %160 : i32 to index
    %c0_72 = arith.constant 0 : index
    %162 = vector.load %arg9[%161, %c0_72] : memref<64x128xf32, #tpu.memory_space<vmem>>, vector<8x128xf32>
    %163 = tpu.concatenate %158, %162 in 0 : vector<8x128xf32>, vector<8x128xf32> -> vector<16x128xf32>
    %c0_73 = arith.constant 0 : index
    %c0_74 = arith.constant 0 : index
    %164 = vector.load %arg3[%c0_73, %c0_74] : memref<128x128xf32, #tpu.memory_space<vmem>>, vector<128x128xf32>
    %cst_75 = arith.constant dense<0.000000e+00> : vector<16x128xf32>
    %165 = tpu.matmul %147, %164, %cst_75 {dimension_numbers = #tpu.dot_dimension_numbers<[1], [0], [0], [1], [0, 0, 1, 1], [], []>} : vector<16x128xf32>, vector<128x128xf32>, vector<16x128xf32> -> vector<16x128xf32>
    %166 = arith.addf %165, %163 : vector<16x128xf32>
    %167 = arith.negf %166 : vector<16x128xf32>
    %168 = math.exp %167 : vector<16x128xf32>
    %cst_76 = arith.constant 1.000000e+00 : f32
    %169 = vector.broadcast %cst_76 : f32 to vector<16x128xf32>
    %170 = arith.addf %169, %168 : vector<16x128xf32>
    %171 = arith.divf %169, %170 : vector<16x128xf32>
    %172 = math.tanh %166 : vector<16x128xf32>
    %173 = arith.addf %145, %172 : vector<16x128xf32>
    %174 = arith.mulf %171, %173 : vector<16x128xf32>
    %175 = math.tanh %174 : vector<16x128xf32>
    %176 = arith.mulf %171, %175 : vector<16x128xf32>
    %177 = vector.extract_strided_slice %176 {offsets = [0, 0], sizes = [8, 128], strides = [1, 1]} : vector<16x128xf32> to vector<8x128xf32>
    %178 = vector.extract_strided_slice %176 {offsets = [8, 0], sizes = [8, 128], strides = [1, 1]} : vector<16x128xf32> to vector<8x128xf32>
    %179 = arith.addf %177, %178 : vector<8x128xf32>
    %cst_77 = arith.constant 5.000000e-01 : f32
    %180 = vector.broadcast %cst_77 : f32 to vector<8x128xf32>
    %181 = arith.mulf %179, %180 : vector<8x128xf32>
    %c8_i32_78 = arith.constant 8 : i32
    %182 = arith.muli %c5_i32, %c8_i32_78 : i32
    %183 = arith.index_cast %182 : i32 to index
    %c0_79 = arith.constant 0 : index
    %184 = vector.load %arg10[%183, %c0_79] : memref<64x128xf32, #tpu.memory_space<vmem>>, vector<8x128xf32>
    tpu.vector_store %arg10[%183, %c0_79], %181 {strides = array<i32>} : memref<64x128xf32, #tpu.memory_space<vmem>>, vector<8x128xf32>,
    %c6_i32 = arith.constant 6 : i32
    %c8_i32_80 = arith.constant 8 : i32
    %185 = arith.muli %c6_i32, %c8_i32_80 : i32
    %186 = arith.index_cast %185 : i32 to index
    %c0_81 = arith.constant 0 : index
    %187 = vector.load %arg9[%186, %c0_81] : memref<64x128xf32, #tpu.memory_space<vmem>>, vector<8x128xf32>
    %c7_i32_82 = arith.constant 7 : i32
    %188 = arith.subi %c7_i32_82, %c6_i32 : i32
    %c8_i32_83 = arith.constant 8 : i32
    %189 = arith.muli %188, %c8_i32_83 : i32
    %190 = arith.index_cast %189 : i32 to index
    %c0_84 = arith.constant 0 : index
    %191 = vector.load %arg9[%190, %c0_84] : memref<64x128xf32, #tpu.memory_space<vmem>>, vector<8x128xf32>
    %192 = tpu.concatenate %187, %191 in 0 : vector<8x128xf32>, vector<8x128xf32> -> vector<16x128xf32>
    %c0_85 = arith.constant 0 : index
    %c0_86 = arith.constant 0 : index
    %193 = vector.load %arg3[%c0_85, %c0_86] : memref<128x128xf32, #tpu.memory_space<vmem>>, vector<128x128xf32>
    %cst_87 = arith.constant dense<0.000000e+00> : vector<16x128xf32>
    %194 = tpu.matmul %176, %193, %cst_87 {dimension_numbers = #tpu.dot_dimension_numbers<[1], [0], [0], [1], [0, 0, 1, 1], [], []>} : vector<16x128xf32>, vector<128x128xf32>, vector<16x128xf32> -> vector<16x128xf32>
    %195 = arith.addf %194, %192 : vector<16x128xf32>
    %196 = arith.negf %195 : vector<16x128xf32>
    %197 = math.exp %196 : vector<16x128xf32>
    %cst_88 = arith.constant 1.000000e+00 : f32
    %198 = vector.broadcast %cst_88 : f32 to vector<16x128xf32>
    %199 = arith.addf %198, %197 : vector<16x128xf32>
    %200 = arith.divf %198, %199 : vector<16x128xf32>
    %201 = math.tanh %195 : vector<16x128xf32>
    %202 = arith.addf %174, %201 : vector<16x128xf32>
    %203 = arith.mulf %200, %202 : vector<16x128xf32>
    %204 = math.tanh %203 : vector<16x128xf32>
    %205 = arith.mulf %200, %204 : vector<16x128xf32>
    %206 = vector.extract_strided_slice %205 {offsets = [0, 0], sizes = [8, 128], strides = [1, 1]} : vector<16x128xf32> to vector<8x128xf32>
    %207 = vector.extract_strided_slice %205 {offsets = [8, 0], sizes = [8, 128], strides = [1, 1]} : vector<16x128xf32> to vector<8x128xf32>
    %208 = arith.addf %206, %207 : vector<8x128xf32>
    %cst_89 = arith.constant 5.000000e-01 : f32
    %209 = vector.broadcast %cst_89 : f32 to vector<8x128xf32>
    %210 = arith.mulf %208, %209 : vector<8x128xf32>
    %c8_i32_90 = arith.constant 8 : i32
    %211 = arith.muli %c6_i32, %c8_i32_90 : i32
    %212 = arith.index_cast %211 : i32 to index
    %c0_91 = arith.constant 0 : index
    %213 = vector.load %arg10[%212, %c0_91] : memref<64x128xf32, #tpu.memory_space<vmem>>, vector<8x128xf32>
    tpu.vector_store %arg10[%212, %c0_91], %210 {strides = array<i32>} : memref<64x128xf32, #tpu.memory_space<vmem>>, vector<8x128xf32>,
    %c7_i32_92 = arith.constant 7 : i32
    %c8_i32_93 = arith.constant 8 : i32
    %214 = arith.muli %c7_i32_92, %c8_i32_93 : i32
    %215 = arith.index_cast %214 : i32 to index
    %c0_94 = arith.constant 0 : index
    %216 = vector.load %arg9[%215, %c0_94] : memref<64x128xf32, #tpu.memory_space<vmem>>, vector<8x128xf32>
    %c7_i32_95 = arith.constant 7 : i32
    %217 = arith.subi %c7_i32_95, %c7_i32_92 : i32
    %c8_i32_96 = arith.constant 8 : i32
    %218 = arith.muli %217, %c8_i32_96 : i32
    %219 = arith.index_cast %218 : i32 to index
    %c0_97 = arith.constant 0 : index
    %220 = vector.load %arg9[%219, %c0_97] : memref<64x128xf32, #tpu.memory_space<vmem>>, vector<8x128xf32>
    %221 = tpu.concatenate %216, %220 in 0 : vector<8x128xf32>, vector<8x128xf32> -> vector<16x128xf32>
    %c0_98 = arith.constant 0 : index
    %c0_99 = arith.constant 0 : index
    %222 = vector.load %arg3[%c0_98, %c0_99] : memref<128x128xf32, #tpu.memory_space<vmem>>, vector<128x128xf32>
    %cst_100 = arith.constant dense<0.000000e+00> : vector<16x128xf32>
    %223 = tpu.matmul %205, %222, %cst_100 {dimension_numbers = #tpu.dot_dimension_numbers<[1], [0], [0], [1], [0, 0, 1, 1], [], []>} : vector<16x128xf32>, vector<128x128xf32>, vector<16x128xf32> -> vector<16x128xf32>
    %224 = arith.addf %223, %221 : vector<16x128xf32>
    %225 = arith.negf %224 : vector<16x128xf32>
    %226 = math.exp %225 : vector<16x128xf32>
    %cst_101 = arith.constant 1.000000e+00 : f32
    %227 = vector.broadcast %cst_101 : f32 to vector<16x128xf32>
    %228 = arith.addf %227, %226 : vector<16x128xf32>
    %229 = arith.divf %227, %228 : vector<16x128xf32>
    %230 = math.tanh %224 : vector<16x128xf32>
    %231 = arith.addf %203, %230 : vector<16x128xf32>
    %232 = arith.mulf %229, %231 : vector<16x128xf32>
    %233 = math.tanh %232 : vector<16x128xf32>
    %234 = arith.mulf %229, %233 : vector<16x128xf32>
    %235 = vector.extract_strided_slice %234 {offsets = [0, 0], sizes = [8, 128], strides = [1, 1]} : vector<16x128xf32> to vector<8x128xf32>
    %236 = vector.extract_strided_slice %234 {offsets = [8, 0], sizes = [8, 128], strides = [1, 1]} : vector<16x128xf32> to vector<8x128xf32>
    %237 = arith.addf %235, %236 : vector<8x128xf32>
    %cst_102 = arith.constant 5.000000e-01 : f32
    %238 = vector.broadcast %cst_102 : f32 to vector<8x128xf32>
    %239 = arith.mulf %237, %238 : vector<8x128xf32>
    %c8_i32_103 = arith.constant 8 : i32
    %240 = arith.muli %c7_i32_92, %c8_i32_103 : i32
    %241 = arith.index_cast %240 : i32 to index
    %c0_104 = arith.constant 0 : index
    %242 = vector.load %arg10[%241, %c0_104] : memref<64x128xf32, #tpu.memory_space<vmem>>, vector<8x128xf32>
    tpu.vector_store %arg10[%241, %c0_104], %239 {strides = array<i32>} : memref<64x128xf32, #tpu.memory_space<vmem>>, vector<8x128xf32>,
    %c8_i32_105 = arith.constant 8 : i32
    %243 = vector.extract_strided_slice %234 {offsets = [8, 0], sizes = [8, 128], strides = [1, 1]} : vector<16x128xf32> to vector<8x128xf32>
    %244 = vector.extract_strided_slice %232 {offsets = [8, 0], sizes = [8, 128], strides = [1, 1]} : vector<16x128xf32> to vector<8x128xf32>
    %c0_106 = arith.constant 0 : index
    %c0_107 = arith.constant 0 : index
    %245 = vector.load %arg10[%c0_106, %c0_107] : memref<64x128xf32, #tpu.memory_space<vmem>>, vector<64x128xf32>
    %c0_108 = arith.constant 0 : index
    %c0_109 = arith.constant 0 : index
    %246 = vector.load %arg3[%c0_108, %c0_109] : memref<128x128xf32, #tpu.memory_space<vmem>>, vector<128x128xf32>
    %cst_110 = arith.constant dense<0.000000e+00> : vector<64x128xf32>
    %247 = tpu.matmul %245, %246, %cst_110 {dimension_numbers = #tpu.dot_dimension_numbers<[1], [0], [0], [1], [0, 0, 1, 1], [], []>} : vector<64x128xf32>, vector<128x128xf32>, vector<64x128xf32> -> vector<64x128xf32>
    %c0_111 = arith.constant 0 : index
    %c0_112 = arith.constant 0 : index
    %248 = vector.load %arg11[%c0_111, %c0_112] : memref<64x128xf32, #tpu.memory_space<vmem>>, vector<64x128xf32>
    tpu.vector_store %arg11[%c0_111, %c0_112], %247 {strides = array<i32>} : memref<64x128xf32, #tpu.memory_space<vmem>>, vector<64x128xf32>,
    %c0_113 = arith.constant 0 : index
    %c0_114 = arith.constant 0 : index
    %249 = vector.load %arg10[%c0_113, %c0_114] : memref<64x128xf32, #tpu.memory_space<vmem>>, vector<64x128xf32>
    %250 = vector.shape_cast %249 : vector<64x128xf32> to vector<8x8x128xf32>
    %c0_115 = arith.constant 0 : index
    %c0_116 = arith.constant 0 : index
    %251 = vector.load %arg11[%c0_115, %c0_116] : memref<64x128xf32, #tpu.memory_space<vmem>>, vector<64x128xf32>
    %252 = vector.shape_cast %251 : vector<64x128xf32> to vector<8x8x128xf32>
    %c0_i32_117 = arith.constant 0 : i32
    %c8_i32_118 = arith.constant 8 : i32
    %253 = arith.muli %c0_i32_117, %c8_i32_118 : i32
    %254 = arith.index_cast %253 : i32 to index
    %c0_119 = arith.constant 0 : index
    %255 = vector.load %arg9[%254, %c0_119] : memref<64x128xf32, #tpu.memory_space<vmem>>, vector<8x128xf32>
    %c0_120 = arith.constant 0 : index
    %c0_121 = arith.constant 0 : index
    %256 = vector.load %arg3[%c0_120, %c0_121] : memref<128x128xf32, #tpu.memory_space<vmem>>, vector<128x128xf32>
    %cst_122 = arith.constant dense<0.000000e+00> : vector<8x128xf32>
    %257 = tpu.matmul %243, %256, %cst_122 {dimension_numbers = #tpu.dot_dimension_numbers<[1], [0], [0], [1], [0, 0, 1, 1], [], []>} : vector<8x128xf32>, vector<128x128xf32>, vector<8x128xf32> -> vector<8x128xf32>
    %258 = vector.shape_cast %243 : vector<8x128xf32> to vector<1x8x128xf32>
    %259 = vector.broadcast %258 : vector<1x8x128xf32> to vector<8x8x128xf32>
    %260 = arith.mulf %250, %259 : vector<8x8x128xf32>
    %cst_123 = arith.constant dense<0.000000e+00> : vector<8x8xf32>
    %261 = vector.multi_reduction <add>, %260, %cst_123 [2] : vector<8x8x128xf32> to vector<8x8xf32>
    %262 = vector.shape_cast %261 : vector<8x8xf32> to vector<8x8x1xf32>
    %cst_124 = arith.constant dense<0.000000e+00> : vector<8x1xf32>
    %263 = vector.multi_reduction <add>, %262, %cst_124 [1] : vector<8x8x1xf32> to vector<8x1xf32>
    %264 = vector.shape_cast %263 : vector<8x1xf32> to vector<8x1x1xf32>
    %cst_125 = arith.constant dense<0xFF800000> : vector<1x1xf32>
    %265 = vector.multi_reduction <maximumf>, %264, %cst_125 [0] : vector<8x1x1xf32> to vector<1x1xf32>
    %266 = vector.shape_cast %265 : vector<1x1xf32> to vector<1x1x1xf32>
    %267 = vector.broadcast %266 : vector<1x1x1xf32> to vector<8x1x1xf32>
    %268 = arith.subf %264, %267 : vector<8x1x1xf32>
    %269 = math.exp %268 : vector<8x1x1xf32>
    %cst_126 = arith.constant dense<0.000000e+00> : vector<1x1xf32>
    %270 = vector.multi_reduction <add>, %269, %cst_126 [0] : vector<8x1x1xf32> to vector<1x1xf32>
    %271 = vector.shape_cast %270 : vector<1x1xf32> to vector<1x1x1xf32>
    %272 = tpu.reciprocal %271 {approx = true} : vector<1x1x1xf32> -> vector<1x1x1xf32>
    %273 = vector.broadcast %272 : vector<1x1x1xf32> to vector<8x1x1xf32>
    %274 = arith.mulf %269, %273 : vector<8x1x1xf32>
    %275 = vector.broadcast %274 : vector<8x1x1xf32> to vector<8x8x128xf32>
    %276 = arith.mulf %252, %275 : vector<8x8x128xf32>
    %cst_127 = arith.constant dense<0.000000e+00> : vector<8x128xf32>
    %277 = vector.multi_reduction <add>, %276, %cst_127 [0] : vector<8x8x128xf32> to vector<8x128xf32>
    %278 = arith.addf %257, %277 : vector<8x128xf32>
    %279 = arith.addf %278, %255 : vector<8x128xf32>
    %280 = arith.negf %279 : vector<8x128xf32>
    %281 = math.exp %280 : vector<8x128xf32>
    %cst_128 = arith.constant 1.000000e+00 : f32
    %282 = vector.broadcast %cst_128 : f32 to vector<8x128xf32>
    %283 = arith.addf %282, %281 : vector<8x128xf32>
    %284 = arith.divf %282, %283 : vector<8x128xf32>
    %285 = math.tanh %279 : vector<8x128xf32>
    %286 = arith.addf %244, %285 : vector<8x128xf32>
    %287 = arith.mulf %284, %286 : vector<8x128xf32>
    %288 = math.tanh %287 : vector<8x128xf32>
    %289 = arith.mulf %284, %288 : vector<8x128xf32>
    %c8_i32_129 = arith.constant 8 : i32
    %290 = arith.muli %c0_i32_117, %c8_i32_129 : i32
    %291 = arith.index_cast %290 : i32 to index
    %c0_130 = arith.constant 0 : index
    %292 = vector.load %arg12[%291, %c0_130] : memref<64x128xf32, #tpu.memory_space<vmem>>, vector<8x128xf32>
    tpu.vector_store %arg12[%291, %c0_130], %289 {strides = array<i32>} : memref<64x128xf32, #tpu.memory_space<vmem>>, vector<8x128xf32>,
    %c1_i32_131 = arith.constant 1 : i32
    %c8_i32_132 = arith.constant 8 : i32
    %293 = arith.muli %c1_i32_131, %c8_i32_132 : i32
    %294 = arith.index_cast %293 : i32 to index
    %c0_133 = arith.constant 0 : index
    %295 = vector.load %arg9[%294, %c0_133] : memref<64x128xf32, #tpu.memory_space<vmem>>, vector<8x128xf32>
    %c0_134 = arith.constant 0 : index
    %c0_135 = arith.constant 0 : index
    %296 = vector.load %arg3[%c0_134, %c0_135] : memref<128x128xf32, #tpu.memory_space<vmem>>, vector<128x128xf32>
    %cst_136 = arith.constant dense<0.000000e+00> : vector<8x128xf32>
    %297 = tpu.matmul %289, %296, %cst_136 {dimension_numbers = #tpu.dot_dimension_numbers<[1], [0], [0], [1], [0, 0, 1, 1], [], []>} : vector<8x128xf32>, vector<128x128xf32>, vector<8x128xf32> -> vector<8x128xf32>
    %298 = vector.shape_cast %289 : vector<8x128xf32> to vector<1x8x128xf32>
    %299 = vector.broadcast %298 : vector<1x8x128xf32> to vector<8x8x128xf32>
    %300 = arith.mulf %250, %299 : vector<8x8x128xf32>
    %cst_137 = arith.constant dense<0.000000e+00> : vector<8x8xf32>
    %301 = vector.multi_reduction <add>, %300, %cst_137 [2] : vector<8x8x128xf32> to vector<8x8xf32>
    %302 = vector.shape_cast %301 : vector<8x8xf32> to vector<8x8x1xf32>
    %cst_138 = arith.constant dense<0.000000e+00> : vector<8x1xf32>
    %303 = vector.multi_reduction <add>, %302, %cst_138 [1] : vector<8x8x1xf32> to vector<8x1xf32>
    %304 = vector.shape_cast %303 : vector<8x1xf32> to vector<8x1x1xf32>
    %cst_139 = arith.constant dense<0xFF800000> : vector<1x1xf32>
    %305 = vector.multi_reduction <maximumf>, %304, %cst_139 [0] : vector<8x1x1xf32> to vector<1x1xf32>
    %306 = vector.shape_cast %305 : vector<1x1xf32> to vector<1x1x1xf32>
    %307 = vector.broadcast %306 : vector<1x1x1xf32> to vector<8x1x1xf32>
    %308 = arith.subf %304, %307 : vector<8x1x1xf32>
    %309 = math.exp %308 : vector<8x1x1xf32>
    %cst_140 = arith.constant dense<0.000000e+00> : vector<1x1xf32>
    %310 = vector.multi_reduction <add>, %309, %cst_140 [0] : vector<8x1x1xf32> to vector<1x1xf32>
    %311 = vector.shape_cast %310 : vector<1x1xf32> to vector<1x1x1xf32>
    %312 = tpu.reciprocal %311 {approx = true} : vector<1x1x1xf32> -> vector<1x1x1xf32>
    %313 = vector.broadcast %312 : vector<1x1x1xf32> to vector<8x1x1xf32>
    %314 = arith.mulf %309, %313 : vector<8x1x1xf32>
    %315 = vector.broadcast %314 : vector<8x1x1xf32> to vector<8x8x128xf32>
    %316 = arith.mulf %252, %315 : vector<8x8x128xf32>
    %cst_141 = arith.constant dense<0.000000e+00> : vector<8x128xf32>
    %317 = vector.multi_reduction <add>, %316, %cst_141 [0] : vector<8x8x128xf32> to vector<8x128xf32>
    %318 = arith.addf %297, %317 : vector<8x128xf32>
    %319 = arith.addf %318, %295 : vector<8x128xf32>
    %320 = arith.negf %319 : vector<8x128xf32>
    %321 = math.exp %320 : vector<8x128xf32>
    %cst_142 = arith.constant 1.000000e+00 : f32
    %322 = vector.broadcast %cst_142 : f32 to vector<8x128xf32>
    %323 = arith.addf %322, %321 : vector<8x128xf32>
    %324 = arith.divf %322, %323 : vector<8x128xf32>
    %325 = math.tanh %319 : vector<8x128xf32>
    %326 = arith.addf %287, %325 : vector<8x128xf32>
    %327 = arith.mulf %324, %326 : vector<8x128xf32>
    %328 = math.tanh %327 : vector<8x128xf32>
    %329 = arith.mulf %324, %328 : vector<8x128xf32>
    %c8_i32_143 = arith.constant 8 : i32
    %330 = arith.muli %c1_i32_131, %c8_i32_143 : i32
    %331 = arith.index_cast %330 : i32 to index
    %c0_144 = arith.constant 0 : index
    %332 = vector.load %arg12[%331, %c0_144] : memref<64x128xf32, #tpu.memory_space<vmem>>, vector<8x128xf32>
    tpu.vector_store %arg12[%331, %c0_144], %329 {strides = array<i32>} : memref<64x128xf32, #tpu.memory_space<vmem>>, vector<8x128xf32>,
    %c2_i32_145 = arith.constant 2 : i32
    %c8_i32_146 = arith.constant 8 : i32
    %333 = arith.muli %c2_i32_145, %c8_i32_146 : i32
    %334 = arith.index_cast %333 : i32 to index
    %c0_147 = arith.constant 0 : index
    %335 = vector.load %arg9[%334, %c0_147] : memref<64x128xf32, #tpu.memory_space<vmem>>, vector<8x128xf32>
    %c0_148 = arith.constant 0 : index
    %c0_149 = arith.constant 0 : index
    %336 = vector.load %arg3[%c0_148, %c0_149] : memref<128x128xf32, #tpu.memory_space<vmem>>, vector<128x128xf32>
    %cst_150 = arith.constant dense<0.000000e+00> : vector<8x128xf32>
    %337 = tpu.matmul %329, %336, %cst_150 {dimension_numbers = #tpu.dot_dimension_numbers<[1], [0], [0], [1], [0, 0, 1, 1], [], []>} : vector<8x128xf32>, vector<128x128xf32>, vector<8x128xf32> -> vector<8x128xf32>
    %338 = vector.shape_cast %329 : vector<8x128xf32> to vector<1x8x128xf32>
    %339 = vector.broadcast %338 : vector<1x8x128xf32> to vector<8x8x128xf32>
    %340 = arith.mulf %250, %339 : vector<8x8x128xf32>
    %cst_151 = arith.constant dense<0.000000e+00> : vector<8x8xf32>
    %341 = vector.multi_reduction <add>, %340, %cst_151 [2] : vector<8x8x128xf32> to vector<8x8xf32>
    %342 = vector.shape_cast %341 : vector<8x8xf32> to vector<8x8x1xf32>
    %cst_152 = arith.constant dense<0.000000e+00> : vector<8x1xf32>
    %343 = vector.multi_reduction <add>, %342, %cst_152 [1] : vector<8x8x1xf32> to vector<8x1xf32>
    %344 = vector.shape_cast %343 : vector<8x1xf32> to vector<8x1x1xf32>
    %cst_153 = arith.constant dense<0xFF800000> : vector<1x1xf32>
    %345 = vector.multi_reduction <maximumf>, %344, %cst_153 [0] : vector<8x1x1xf32> to vector<1x1xf32>
    %346 = vector.shape_cast %345 : vector<1x1xf32> to vector<1x1x1xf32>
    %347 = vector.broadcast %346 : vector<1x1x1xf32> to vector<8x1x1xf32>
    %348 = arith.subf %344, %347 : vector<8x1x1xf32>
    %349 = math.exp %348 : vector<8x1x1xf32>
    %cst_154 = arith.constant dense<0.000000e+00> : vector<1x1xf32>
    %350 = vector.multi_reduction <add>, %349, %cst_154 [0] : vector<8x1x1xf32> to vector<1x1xf32>
    %351 = vector.shape_cast %350 : vector<1x1xf32> to vector<1x1x1xf32>
    %352 = tpu.reciprocal %351 {approx = true} : vector<1x1x1xf32> -> vector<1x1x1xf32>
    %353 = vector.broadcast %352 : vector<1x1x1xf32> to vector<8x1x1xf32>
    %354 = arith.mulf %349, %353 : vector<8x1x1xf32>
    %355 = vector.broadcast %354 : vector<8x1x1xf32> to vector<8x8x128xf32>
    %356 = arith.mulf %252, %355 : vector<8x8x128xf32>
    %cst_155 = arith.constant dense<0.000000e+00> : vector<8x128xf32>
    %357 = vector.multi_reduction <add>, %356, %cst_155 [0] : vector<8x8x128xf32> to vector<8x128xf32>
    %358 = arith.addf %337, %357 : vector<8x128xf32>
    %359 = arith.addf %358, %335 : vector<8x128xf32>
    %360 = arith.negf %359 : vector<8x128xf32>
    %361 = math.exp %360 : vector<8x128xf32>
    %cst_156 = arith.constant 1.000000e+00 : f32
    %362 = vector.broadcast %cst_156 : f32 to vector<8x128xf32>
    %363 = arith.addf %362, %361 : vector<8x128xf32>
    %364 = arith.divf %362, %363 : vector<8x128xf32>
    %365 = math.tanh %359 : vector<8x128xf32>
    %366 = arith.addf %327, %365 : vector<8x128xf32>
    %367 = arith.mulf %364, %366 : vector<8x128xf32>
    %368 = math.tanh %367 : vector<8x128xf32>
    %369 = arith.mulf %364, %368 : vector<8x128xf32>
    %c8_i32_157 = arith.constant 8 : i32
    %370 = arith.muli %c2_i32_145, %c8_i32_157 : i32
    %371 = arith.index_cast %370 : i32 to index
    %c0_158 = arith.constant 0 : index
    %372 = vector.load %arg12[%371, %c0_158] : memref<64x128xf32, #tpu.memory_space<vmem>>, vector<8x128xf32>
    tpu.vector_store %arg12[%371, %c0_158], %369 {strides = array<i32>} : memref<64x128xf32, #tpu.memory_space<vmem>>, vector<8x128xf32>,
    %c3_i32_159 = arith.constant 3 : i32
    %c8_i32_160 = arith.constant 8 : i32
    %373 = arith.muli %c3_i32_159, %c8_i32_160 : i32
    %374 = arith.index_cast %373 : i32 to index
    %c0_161 = arith.constant 0 : index
    %375 = vector.load %arg9[%374, %c0_161] : memref<64x128xf32, #tpu.memory_space<vmem>>, vector<8x128xf32>
    %c0_162 = arith.constant 0 : index
    %c0_163 = arith.constant 0 : index
    %376 = vector.load %arg3[%c0_162, %c0_163] : memref<128x128xf32, #tpu.memory_space<vmem>>, vector<128x128xf32>
    %cst_164 = arith.constant dense<0.000000e+00> : vector<8x128xf32>
    %377 = tpu.matmul %369, %376, %cst_164 {dimension_numbers = #tpu.dot_dimension_numbers<[1], [0], [0], [1], [0, 0, 1, 1], [], []>} : vector<8x128xf32>, vector<128x128xf32>, vector<8x128xf32> -> vector<8x128xf32>
    %378 = vector.shape_cast %369 : vector<8x128xf32> to vector<1x8x128xf32>
    %379 = vector.broadcast %378 : vector<1x8x128xf32> to vector<8x8x128xf32>
    %380 = arith.mulf %250, %379 : vector<8x8x128xf32>
    %cst_165 = arith.constant dense<0.000000e+00> : vector<8x8xf32>
    %381 = vector.multi_reduction <add>, %380, %cst_165 [2] : vector<8x8x128xf32> to vector<8x8xf32>
    %382 = vector.shape_cast %381 : vector<8x8xf32> to vector<8x8x1xf32>
    %cst_166 = arith.constant dense<0.000000e+00> : vector<8x1xf32>
    %383 = vector.multi_reduction <add>, %382, %cst_166 [1] : vector<8x8x1xf32> to vector<8x1xf32>
    %384 = vector.shape_cast %383 : vector<8x1xf32> to vector<8x1x1xf32>
    %cst_167 = arith.constant dense<0xFF800000> : vector<1x1xf32>
    %385 = vector.multi_reduction <maximumf>, %384, %cst_167 [0] : vector<8x1x1xf32> to vector<1x1xf32>
    %386 = vector.shape_cast %385 : vector<1x1xf32> to vector<1x1x1xf32>
    %387 = vector.broadcast %386 : vector<1x1x1xf32> to vector<8x1x1xf32>
    %388 = arith.subf %384, %387 : vector<8x1x1xf32>
    %389 = math.exp %388 : vector<8x1x1xf32>
    %cst_168 = arith.constant dense<0.000000e+00> : vector<1x1xf32>
    %390 = vector.multi_reduction <add>, %389, %cst_168 [0] : vector<8x1x1xf32> to vector<1x1xf32>
    %391 = vector.shape_cast %390 : vector<1x1xf32> to vector<1x1x1xf32>
    %392 = tpu.reciprocal %391 {approx = true} : vector<1x1x1xf32> -> vector<1x1x1xf32>
    %393 = vector.broadcast %392 : vector<1x1x1xf32> to vector<8x1x1xf32>
    %394 = arith.mulf %389, %393 : vector<8x1x1xf32>
    %395 = vector.broadcast %394 : vector<8x1x1xf32> to vector<8x8x128xf32>
    %396 = arith.mulf %252, %395 : vector<8x8x128xf32>
    %cst_169 = arith.constant dense<0.000000e+00> : vector<8x128xf32>
    %397 = vector.multi_reduction <add>, %396, %cst_169 [0] : vector<8x8x128xf32> to vector<8x128xf32>
    %398 = arith.addf %377, %397 : vector<8x128xf32>
    %399 = arith.addf %398, %375 : vector<8x128xf32>
    %400 = arith.negf %399 : vector<8x128xf32>
    %401 = math.exp %400 : vector<8x128xf32>
    %cst_170 = arith.constant 1.000000e+00 : f32
    %402 = vector.broadcast %cst_170 : f32 to vector<8x128xf32>
    %403 = arith.addf %402, %401 : vector<8x128xf32>
    %404 = arith.divf %402, %403 : vector<8x128xf32>
    %405 = math.tanh %399 : vector<8x128xf32>
    %406 = arith.addf %367, %405 : vector<8x128xf32>
    %407 = arith.mulf %404, %406 : vector<8x128xf32>
    %408 = math.tanh %407 : vector<8x128xf32>
    %409 = arith.mulf %404, %408 : vector<8x128xf32>
    %c8_i32_171 = arith.constant 8 : i32
    %410 = arith.muli %c3_i32_159, %c8_i32_171 : i32
    %411 = arith.index_cast %410 : i32 to index
    %c0_172 = arith.constant 0 : index
    %412 = vector.load %arg12[%411, %c0_172] : memref<64x128xf32, #tpu.memory_space<vmem>>, vector<8x128xf32>
    tpu.vector_store %arg12[%411, %c0_172], %409 {strides = array<i32>} : memref<64x128xf32, #tpu.memory_space<vmem>>, vector<8x128xf32>,
    %c4_i32_173 = arith.constant 4 : i32
    %c8_i32_174 = arith.constant 8 : i32
    %413 = arith.muli %c4_i32_173, %c8_i32_174 : i32
    %414 = arith.index_cast %413 : i32 to index
    %c0_175 = arith.constant 0 : index
    %415 = vector.load %arg9[%414, %c0_175] : memref<64x128xf32, #tpu.memory_space<vmem>>, vector<8x128xf32>
    %c0_176 = arith.constant 0 : index
    %c0_177 = arith.constant 0 : index
    %416 = vector.load %arg3[%c0_176, %c0_177] : memref<128x128xf32, #tpu.memory_space<vmem>>, vector<128x128xf32>
    %cst_178 = arith.constant dense<0.000000e+00> : vector<8x128xf32>
    %417 = tpu.matmul %409, %416, %cst_178 {dimension_numbers = #tpu.dot_dimension_numbers<[1], [0], [0], [1], [0, 0, 1, 1], [], []>} : vector<8x128xf32>, vector<128x128xf32>, vector<8x128xf32> -> vector<8x128xf32>
    %418 = vector.shape_cast %409 : vector<8x128xf32> to vector<1x8x128xf32>
    %419 = vector.broadcast %418 : vector<1x8x128xf32> to vector<8x8x128xf32>
    %420 = arith.mulf %250, %419 : vector<8x8x128xf32>
    %cst_179 = arith.constant dense<0.000000e+00> : vector<8x8xf32>
    %421 = vector.multi_reduction <add>, %420, %cst_179 [2] : vector<8x8x128xf32> to vector<8x8xf32>
    %422 = vector.shape_cast %421 : vector<8x8xf32> to vector<8x8x1xf32>
    %cst_180 = arith.constant dense<0.000000e+00> : vector<8x1xf32>
    %423 = vector.multi_reduction <add>, %422, %cst_180 [1] : vector<8x8x1xf32> to vector<8x1xf32>
    %424 = vector.shape_cast %423 : vector<8x1xf32> to vector<8x1x1xf32>
    %cst_181 = arith.constant dense<0xFF800000> : vector<1x1xf32>
    %425 = vector.multi_reduction <maximumf>, %424, %cst_181 [0] : vector<8x1x1xf32> to vector<1x1xf32>
    %426 = vector.shape_cast %425 : vector<1x1xf32> to vector<1x1x1xf32>
    %427 = vector.broadcast %426 : vector<1x1x1xf32> to vector<8x1x1xf32>
    %428 = arith.subf %424, %427 : vector<8x1x1xf32>
    %429 = math.exp %428 : vector<8x1x1xf32>
    %cst_182 = arith.constant dense<0.000000e+00> : vector<1x1xf32>
    %430 = vector.multi_reduction <add>, %429, %cst_182 [0] : vector<8x1x1xf32> to vector<1x1xf32>
    %431 = vector.shape_cast %430 : vector<1x1xf32> to vector<1x1x1xf32>
    %432 = tpu.reciprocal %431 {approx = true} : vector<1x1x1xf32> -> vector<1x1x1xf32>
    %433 = vector.broadcast %432 : vector<1x1x1xf32> to vector<8x1x1xf32>
    %434 = arith.mulf %429, %433 : vector<8x1x1xf32>
    %435 = vector.broadcast %434 : vector<8x1x1xf32> to vector<8x8x128xf32>
    %436 = arith.mulf %252, %435 : vector<8x8x128xf32>
    %cst_183 = arith.constant dense<0.000000e+00> : vector<8x128xf32>
    %437 = vector.multi_reduction <add>, %436, %cst_183 [0] : vector<8x8x128xf32> to vector<8x128xf32>
    %438 = arith.addf %417, %437 : vector<8x128xf32>
    %439 = arith.addf %438, %415 : vector<8x128xf32>
    %440 = arith.negf %439 : vector<8x128xf32>
    %441 = math.exp %440 : vector<8x128xf32>
    %cst_184 = arith.constant 1.000000e+00 : f32
    %442 = vector.broadcast %cst_184 : f32 to vector<8x128xf32>
    %443 = arith.addf %442, %441 : vector<8x128xf32>
    %444 = arith.divf %442, %443 : vector<8x128xf32>
    %445 = math.tanh %439 : vector<8x128xf32>
    %446 = arith.addf %407, %445 : vector<8x128xf32>
    %447 = arith.mulf %444, %446 : vector<8x128xf32>
    %448 = math.tanh %447 : vector<8x128xf32>
    %449 = arith.mulf %444, %448 : vector<8x128xf32>
    %c8_i32_185 = arith.constant 8 : i32
    %450 = arith.muli %c4_i32_173, %c8_i32_185 : i32
    %451 = arith.index_cast %450 : i32 to index
    %c0_186 = arith.constant 0 : index
    %452 = vector.load %arg12[%451, %c0_186] : memref<64x128xf32, #tpu.memory_space<vmem>>, vector<8x128xf32>
    tpu.vector_store %arg12[%451, %c0_186], %449 {strides = array<i32>} : memref<64x128xf32, #tpu.memory_space<vmem>>, vector<8x128xf32>,
    %c5_i32_187 = arith.constant 5 : i32
    %c8_i32_188 = arith.constant 8 : i32
    %453 = arith.muli %c5_i32_187, %c8_i32_188 : i32
    %454 = arith.index_cast %453 : i32 to index
    %c0_189 = arith.constant 0 : index
    %455 = vector.load %arg9[%454, %c0_189] : memref<64x128xf32, #tpu.memory_space<vmem>>, vector<8x128xf32>
    %c0_190 = arith.constant 0 : index
    %c0_191 = arith.constant 0 : index
    %456 = vector.load %arg3[%c0_190, %c0_191] : memref<128x128xf32, #tpu.memory_space<vmem>>, vector<128x128xf32>
    %cst_192 = arith.constant dense<0.000000e+00> : vector<8x128xf32>
    %457 = tpu.matmul %449, %456, %cst_192 {dimension_numbers = #tpu.dot_dimension_numbers<[1], [0], [0], [1], [0, 0, 1, 1], [], []>} : vector<8x128xf32>, vector<128x128xf32>, vector<8x128xf32> -> vector<8x128xf32>
    %458 = vector.shape_cast %449 : vector<8x128xf32> to vector<1x8x128xf32>
    %459 = vector.broadcast %458 : vector<1x8x128xf32> to vector<8x8x128xf32>
    %460 = arith.mulf %250, %459 : vector<8x8x128xf32>
    %cst_193 = arith.constant dense<0.000000e+00> : vector<8x8xf32>
    %461 = vector.multi_reduction <add>, %460, %cst_193 [2] : vector<8x8x128xf32> to vector<8x8xf32>
    %462 = vector.shape_cast %461 : vector<8x8xf32> to vector<8x8x1xf32>
    %cst_194 = arith.constant dense<0.000000e+00> : vector<8x1xf32>
    %463 = vector.multi_reduction <add>, %462, %cst_194 [1] : vector<8x8x1xf32> to vector<8x1xf32>
    %464 = vector.shape_cast %463 : vector<8x1xf32> to vector<8x1x1xf32>
    %cst_195 = arith.constant dense<0xFF800000> : vector<1x1xf32>
    %465 = vector.multi_reduction <maximumf>, %464, %cst_195 [0] : vector<8x1x1xf32> to vector<1x1xf32>
    %466 = vector.shape_cast %465 : vector<1x1xf32> to vector<1x1x1xf32>
    %467 = vector.broadcast %466 : vector<1x1x1xf32> to vector<8x1x1xf32>
    %468 = arith.subf %464, %467 : vector<8x1x1xf32>
    %469 = math.exp %468 : vector<8x1x1xf32>
    %cst_196 = arith.constant dense<0.000000e+00> : vector<1x1xf32>
    %470 = vector.multi_reduction <add>, %469, %cst_196 [0] : vector<8x1x1xf32> to vector<1x1xf32>
    %471 = vector.shape_cast %470 : vector<1x1xf32> to vector<1x1x1xf32>
    %472 = tpu.reciprocal %471 {approx = true} : vector<1x1x1xf32> -> vector<1x1x1xf32>
    %473 = vector.broadcast %472 : vector<1x1x1xf32> to vector<8x1x1xf32>
    %474 = arith.mulf %469, %473 : vector<8x1x1xf32>
    %475 = vector.broadcast %474 : vector<8x1x1xf32> to vector<8x8x128xf32>
    %476 = arith.mulf %252, %475 : vector<8x8x128xf32>
    %cst_197 = arith.constant dense<0.000000e+00> : vector<8x128xf32>
    %477 = vector.multi_reduction <add>, %476, %cst_197 [0] : vector<8x8x128xf32> to vector<8x128xf32>
    %478 = arith.addf %457, %477 : vector<8x128xf32>
    %479 = arith.addf %478, %455 : vector<8x128xf32>
    %480 = arith.negf %479 : vector<8x128xf32>
    %481 = math.exp %480 : vector<8x128xf32>
    %cst_198 = arith.constant 1.000000e+00 : f32
    %482 = vector.broadcast %cst_198 : f32 to vector<8x128xf32>
    %483 = arith.addf %482, %481 : vector<8x128xf32>
    %484 = arith.divf %482, %483 : vector<8x128xf32>
    %485 = math.tanh %479 : vector<8x128xf32>
    %486 = arith.addf %447, %485 : vector<8x128xf32>
    %487 = arith.mulf %484, %486 : vector<8x128xf32>
    %488 = math.tanh %487 : vector<8x128xf32>
    %489 = arith.mulf %484, %488 : vector<8x128xf32>
    %c8_i32_199 = arith.constant 8 : i32
    %490 = arith.muli %c5_i32_187, %c8_i32_199 : i32
    %491 = arith.index_cast %490 : i32 to index
    %c0_200 = arith.constant 0 : index
    %492 = vector.load %arg12[%491, %c0_200] : memref<64x128xf32, #tpu.memory_space<vmem>>, vector<8x128xf32>
    tpu.vector_store %arg12[%491, %c0_200], %489 {strides = array<i32>} : memref<64x128xf32, #tpu.memory_space<vmem>>, vector<8x128xf32>,
    %c6_i32_201 = arith.constant 6 : i32
    %c8_i32_202 = arith.constant 8 : i32
    %493 = arith.muli %c6_i32_201, %c8_i32_202 : i32
    %494 = arith.index_cast %493 : i32 to index
    %c0_203 = arith.constant 0 : index
    %495 = vector.load %arg9[%494, %c0_203] : memref<64x128xf32, #tpu.memory_space<vmem>>, vector<8x128xf32>
    %c0_204 = arith.constant 0 : index
    %c0_205 = arith.constant 0 : index
    %496 = vector.load %arg3[%c0_204, %c0_205] : memref<128x128xf32, #tpu.memory_space<vmem>>, vector<128x128xf32>
    %cst_206 = arith.constant dense<0.000000e+00> : vector<8x128xf32>
    %497 = tpu.matmul %489, %496, %cst_206 {dimension_numbers = #tpu.dot_dimension_numbers<[1], [0], [0], [1], [0, 0, 1, 1], [], []>} : vector<8x128xf32>, vector<128x128xf32>, vector<8x128xf32> -> vector<8x128xf32>
    %498 = vector.shape_cast %489 : vector<8x128xf32> to vector<1x8x128xf32>
    %499 = vector.broadcast %498 : vector<1x8x128xf32> to vector<8x8x128xf32>
    %500 = arith.mulf %250, %499 : vector<8x8x128xf32>
    %cst_207 = arith.constant dense<0.000000e+00> : vector<8x8xf32>
    %501 = vector.multi_reduction <add>, %500, %cst_207 [2] : vector<8x8x128xf32> to vector<8x8xf32>
    %502 = vector.shape_cast %501 : vector<8x8xf32> to vector<8x8x1xf32>
    %cst_208 = arith.constant dense<0.000000e+00> : vector<8x1xf32>
    %503 = vector.multi_reduction <add>, %502, %cst_208 [1] : vector<8x8x1xf32> to vector<8x1xf32>
    %504 = vector.shape_cast %503 : vector<8x1xf32> to vector<8x1x1xf32>
    %cst_209 = arith.constant dense<0xFF800000> : vector<1x1xf32>
    %505 = vector.multi_reduction <maximumf>, %504, %cst_209 [0] : vector<8x1x1xf32> to vector<1x1xf32>
    %506 = vector.shape_cast %505 : vector<1x1xf32> to vector<1x1x1xf32>
    %507 = vector.broadcast %506 : vector<1x1x1xf32> to vector<8x1x1xf32>
    %508 = arith.subf %504, %507 : vector<8x1x1xf32>
    %509 = math.exp %508 : vector<8x1x1xf32>
    %cst_210 = arith.constant dense<0.000000e+00> : vector<1x1xf32>
    %510 = vector.multi_reduction <add>, %509, %cst_210 [0] : vector<8x1x1xf32> to vector<1x1xf32>
    %511 = vector.shape_cast %510 : vector<1x1xf32> to vector<1x1x1xf32>
    %512 = tpu.reciprocal %511 {approx = true} : vector<1x1x1xf32> -> vector<1x1x1xf32>
    %513 = vector.broadcast %512 : vector<1x1x1xf32> to vector<8x1x1xf32>
    %514 = arith.mulf %509, %513 : vector<8x1x1xf32>
    %515 = vector.broadcast %514 : vector<8x1x1xf32> to vector<8x8x128xf32>
    %516 = arith.mulf %252, %515 : vector<8x8x128xf32>
    %cst_211 = arith.constant dense<0.000000e+00> : vector<8x128xf32>
    %517 = vector.multi_reduction <add>, %516, %cst_211 [0] : vector<8x8x128xf32> to vector<8x128xf32>
    %518 = arith.addf %497, %517 : vector<8x128xf32>
    %519 = arith.addf %518, %495 : vector<8x128xf32>
    %520 = arith.negf %519 : vector<8x128xf32>
    %521 = math.exp %520 : vector<8x128xf32>
    %cst_212 = arith.constant 1.000000e+00 : f32
    %522 = vector.broadcast %cst_212 : f32 to vector<8x128xf32>
    %523 = arith.addf %522, %521 : vector<8x128xf32>
    %524 = arith.divf %522, %523 : vector<8x128xf32>
    %525 = math.tanh %519 : vector<8x128xf32>
    %526 = arith.addf %487, %525 : vector<8x128xf32>
    %527 = arith.mulf %524, %526 : vector<8x128xf32>
    %528 = math.tanh %527 : vector<8x128xf32>
    %529 = arith.mulf %524, %528 : vector<8x128xf32>
    %c8_i32_213 = arith.constant 8 : i32
    %530 = arith.muli %c6_i32_201, %c8_i32_213 : i32
    %531 = arith.index_cast %530 : i32 to index
    %c0_214 = arith.constant 0 : index
    %532 = vector.load %arg12[%531, %c0_214] : memref<64x128xf32, #tpu.memory_space<vmem>>, vector<8x128xf32>
    tpu.vector_store %arg12[%531, %c0_214], %529 {strides = array<i32>} : memref<64x128xf32, #tpu.memory_space<vmem>>, vector<8x128xf32>,
    %c7_i32_215 = arith.constant 7 : i32
    %c8_i32_216 = arith.constant 8 : i32
    %533 = arith.muli %c7_i32_215, %c8_i32_216 : i32
    %534 = arith.index_cast %533 : i32 to index
    %c0_217 = arith.constant 0 : index
    %535 = vector.load %arg9[%534, %c0_217] : memref<64x128xf32, #tpu.memory_space<vmem>>, vector<8x128xf32>
    %c0_218 = arith.constant 0 : index
    %c0_219 = arith.constant 0 : index
    %536 = vector.load %arg3[%c0_218, %c0_219] : memref<128x128xf32, #tpu.memory_space<vmem>>, vector<128x128xf32>
    %cst_220 = arith.constant dense<0.000000e+00> : vector<8x128xf32>
    %537 = tpu.matmul %529, %536, %cst_220 {dimension_numbers = #tpu.dot_dimension_numbers<[1], [0], [0], [1], [0, 0, 1, 1], [], []>} : vector<8x128xf32>, vector<128x128xf32>, vector<8x128xf32> -> vector<8x128xf32>
    %538 = vector.shape_cast %529 : vector<8x128xf32> to vector<1x8x128xf32>
    %539 = vector.broadcast %538 : vector<1x8x128xf32> to vector<8x8x128xf32>
    %540 = arith.mulf %250, %539 : vector<8x8x128xf32>
    %cst_221 = arith.constant dense<0.000000e+00> : vector<8x8xf32>
    %541 = vector.multi_reduction <add>, %540, %cst_221 [2] : vector<8x8x128xf32> to vector<8x8xf32>
    %542 = vector.shape_cast %541 : vector<8x8xf32> to vector<8x8x1xf32>
    %cst_222 = arith.constant dense<0.000000e+00> : vector<8x1xf32>
    %543 = vector.multi_reduction <add>, %542, %cst_222 [1] : vector<8x8x1xf32> to vector<8x1xf32>
    %544 = vector.shape_cast %543 : vector<8x1xf32> to vector<8x1x1xf32>
    %cst_223 = arith.constant dense<0xFF800000> : vector<1x1xf32>
    %545 = vector.multi_reduction <maximumf>, %544, %cst_223 [0] : vector<8x1x1xf32> to vector<1x1xf32>
    %546 = vector.shape_cast %545 : vector<1x1xf32> to vector<1x1x1xf32>
    %547 = vector.broadcast %546 : vector<1x1x1xf32> to vector<8x1x1xf32>
    %548 = arith.subf %544, %547 : vector<8x1x1xf32>
    %549 = math.exp %548 : vector<8x1x1xf32>
    %cst_224 = arith.constant dense<0.000000e+00> : vector<1x1xf32>
    %550 = vector.multi_reduction <add>, %549, %cst_224 [0] : vector<8x1x1xf32> to vector<1x1xf32>
    %551 = vector.shape_cast %550 : vector<1x1xf32> to vector<1x1x1xf32>
    %552 = tpu.reciprocal %551 {approx = true} : vector<1x1x1xf32> -> vector<1x1x1xf32>
    %553 = vector.broadcast %552 : vector<1x1x1xf32> to vector<8x1x1xf32>
    %554 = arith.mulf %549, %553 : vector<8x1x1xf32>
    %555 = vector.broadcast %554 : vector<8x1x1xf32> to vector<8x8x128xf32>
    %556 = arith.mulf %252, %555 : vector<8x8x128xf32>
    %cst_225 = arith.constant dense<0.000000e+00> : vector<8x128xf32>
    %557 = vector.multi_reduction <add>, %556, %cst_225 [0] : vector<8x8x128xf32> to vector<8x128xf32>
    %558 = arith.addf %537, %557 : vector<8x128xf32>
    %559 = arith.addf %558, %535 : vector<8x128xf32>
    %560 = arith.negf %559 : vector<8x128xf32>
    %561 = math.exp %560 : vector<8x128xf32>
    %cst_226 = arith.constant 1.000000e+00 : f32
    %562 = vector.broadcast %cst_226 : f32 to vector<8x128xf32>
    %563 = arith.addf %562, %561 : vector<8x128xf32>
    %564 = arith.divf %562, %563 : vector<8x128xf32>
    %565 = math.tanh %559 : vector<8x128xf32>
    %566 = arith.addf %527, %565 : vector<8x128xf32>
    %567 = arith.mulf %564, %566 : vector<8x128xf32>
    %568 = math.tanh %567 : vector<8x128xf32>
    %569 = arith.mulf %564, %568 : vector<8x128xf32>
    %c8_i32_227 = arith.constant 8 : i32
    %570 = arith.muli %c7_i32_215, %c8_i32_227 : i32
    %571 = arith.index_cast %570 : i32 to index
    %c0_228 = arith.constant 0 : index
    %572 = vector.load %arg12[%571, %c0_228] : memref<64x128xf32, #tpu.memory_space<vmem>>, vector<8x128xf32>
    tpu.vector_store %arg12[%571, %c0_228], %569 {strides = array<i32>} : memref<64x128xf32, #tpu.memory_space<vmem>>, vector<8x128xf32>,
    %c8_i32_229 = arith.constant 8 : i32
    %c0_230 = arith.constant 0 : index
    %c0_231 = arith.constant 0 : index
    %573 = vector.load %arg12[%c0_230, %c0_231] : memref<64x128xf32, #tpu.memory_space<vmem>>, vector<64x128xf32>
    %c0_232 = arith.constant 0 : index
    %c0_233 = arith.constant 0 : index
    %574 = vector.load %arg6[%c0_232, %c0_233] : memref<128x128xf32, #tpu.memory_space<vmem>>, vector<128x128xf32>
    %cst_234 = arith.constant dense<0.000000e+00> : vector<64x128xf32>
    %575 = tpu.matmul %573, %574, %cst_234 {dimension_numbers = #tpu.dot_dimension_numbers<[1], [0], [0], [1], [0, 0, 1, 1], [], []>} : vector<64x128xf32>, vector<128x128xf32>, vector<64x128xf32> -> vector<64x128xf32>
    %c0_235 = arith.constant 0 : index
    %c0_236 = arith.constant 0 : index
    %576 = vector.load %arg7[%c0_235, %c0_236] : memref<1x128xf32, #tpu.memory_space<vmem>>, vector<1x128xf32>
    %577 = vector.broadcast %576 : vector<1x128xf32> to vector<64x128xf32>
    %578 = arith.addf %575, %577 : vector<64x128xf32>
    %579 = tpu.iota {dimensions = array<i32: 1>} : vector<64x128xi32>
    %c1_i32_237 = arith.constant 1 : i32
    %580 = vector.broadcast %c1_i32_237 : i32 to vector<64x128xi32>
    %581 = arith.cmpi eq, %579, %580 : vector<64x128xi32>
    %582 = arith.extui %581 : vector<64x128xi1> to vector<64x128xi32>
    %583 = arith.sitofp %582 : vector<64x128xi32> to vector<64x128xf32>
    %c0_238 = arith.constant 0 : index
    %c0_239 = arith.constant 0 : index
    %584 = vector.load %arg2[%c0_238, %c0_239] : memref<64x1xf32, #tpu.memory_space<vmem>>, vector<64x1xf32>
    %cst_240 = arith.constant 5.000000e-01 : f32
    %585 = vector.broadcast %cst_240 : f32 to vector<64x1xf32>
    %586 = arith.cmpf ogt, %584, %585 : vector<64x1xf32>
    %587 = vector.shape_cast %586 : vector<64x1xi1> to vector<64x1xi1>
    %588 = vector.broadcast %587 : vector<64x1xi1> to vector<64x128xi1>
    %589 = arith.select %588, %583, %578 : vector<64x128xi1>, vector<64x128xf32>
    %c0_241 = arith.constant 0 : index
    %c0_242 = arith.constant 0 : index
    %590 = vector.load %arg8[%c0_241, %c0_242] : memref<64x128xf32, #tpu.memory_space<vmem>>, vector<64x128xf32>
    tpu.vector_store %arg8[%c0_241, %c0_242], %589 {strides = array<i32>} : memref<64x128xf32, #tpu.memory_space<vmem>>, vector<64x128xf32>,
    return
  }
}

</mosaic_0001>

<llo_original>
// kernel: tpu_custom_call.1
$region0: #{tpu_custom_call.1}
  #allocation0 [shape = 'u32[]', space=smem, size = 0x4, offset = 0x4, fixed_abs, tag = 'smem constant byte address 0x4 - core index']
  #allocation1 [shape = 'u32[144,128]{1,0:T(1,128)}', space=vmem, size = 0x12000, scoped, tag = 'internal scratch']
  #allocation2 [shape = 'f32[64,128]{1,0:T(8,128)}', space=vmem, size = 0x8000, scoped, tag = 'scratch operand']
  #allocation3 [shape = 'f32[64,128]{1,0:T(8,128)}', space=vmem, size = 0x8000, scoped, tag = 'scratch operand']
  #allocation4 [shape = 'f32[64,128]{1,0:T(8,128)}', space=vmem, size = 0x8000, scoped, tag = 'scratch operand']
  #allocation5 [shape = 'f32[64,128]{1,0:T(8,128)}', space=vmem, size = 0x8000, scoped, tag = 'scratch operand']
  %s0 = inlined_call_operand.hbm [shape: f32[64,128], index: 0, kind: input, shape index: {}]
  %s1 = inlined_call_operand.vmem [shape: f32[64,1], index: 1, kind: input, shape index: {}]
  %s2 = inlined_call_operand.vmem [shape: f32[64,1], index: 2, kind: input, shape index: {}]
  %s3 = inlined_call_operand.vmem [shape: f32[128,128], index: 3, kind: input, shape index: {}]
  %s4 = inlined_call_operand.vmem [shape: f32[1,128], index: 4, kind: input, shape index: {}]
  %s5 = inlined_call_operand.hbm [shape: f32[128,128], index: 5, kind: input, shape index: {}]
  %s6 = inlined_call_operand.hbm [shape: f32[128,128], index: 6, kind: input, shape index: {}]
  %s7 = inlined_call_operand.vmem [shape: f32[1,128], index: 7, kind: input, shape index: {}]
  %s8 = inlined_call_operand.hbm [shape: f32[64,128], index: 8, kind: output, shape index: {}]
  %s9 = sld [smem:[#allocation0]]
  $region54: #{tpu_custom_call.1} parent=0
    _
  %s11 = ssub.s32 1, %s9
  %s12 = scalar_select 0, %s11, %s9
  $region1: #{tpu_custom_call.1} parent=0
    #allocation6 [shape = 'u8[32768]{0}', space=vmem, size = 0x8000, scoped, tag = 'input window, operand 0, single buffered']
    #allocation7 [shape = 's32[1]{0}', space=sflag, size = 0x4, scoped, tag = 'scoped memory for tpu_custom_call.1']
    #allocation8 [shape = 's32[1]{0}', space=sflag, size = 0x4, scoped, tag = 'scoped memory for tpu_custom_call.1']
    #allocation9 [shape = 'u8[65536]{0}', space=vmem, size = 0x10000, scoped, tag = 'input window, operand 5, single buffered']
    #allocation10 [shape = 's32[1]{0}', space=sflag, size = 0x4, scoped, tag = 'scoped memory for tpu_custom_call.1']
    #allocation11 [shape = 'u8[65536]{0}', space=vmem, size = 0x10000, scoped, tag = 'input window, operand 6, single buffered']
    #allocation12 [shape = 'u8[32768]{0}', space=vmem, size = 0x8000, scoped, tag = 'output window, operand 0, single buffered']
    %13 = vsyncpa [#allocation7], 0
    %14 = vsyncpa [#allocation10], 0
    %15 = vsyncpa [#allocation8], 0
    // Predicated region
    $region2: #{tpu_custom_call.1} parent=1 // pred_check
      _
    $region3: #{tpu_custom_call.1} parent=1 // pred_check_branch
      %17 = sbr.rel (0) target = $region5
    $region4: #{tpu_custom_call.1} parent=1 // pred_region
      %s19 = ssub.s32 1024, 1024
      %20 = vsyncadd [#allocation7], %s19
      %s21 = sshll.u32 [#allocation6], 4
      %s22 = int_to_ptr.vmem [resolvable:$true] %s21
      %27 = dma.hbm_to_vmem [thread:$0]  %s0, 1024, %s22, [#allocation7], 128, 128, 8
    $region5: #{tpu_custom_call.1} parent=1 // pred_fallthru
      _
    // Predicated region
    $region6: #{tpu_custom_call.1} parent=1 // pred_check
      _
    $region7: #{tpu_custom_call.1} parent=1 // pred_check_branch
      %29 = sbr.rel (0) target = $region9
    $region8: #{tpu_custom_call.1} parent=1 // pred_region
      _
    $region9: #{tpu_custom_call.1} parent=1 // pred_fallthru
      _
    // Predicated region
    $region10: #{tpu_custom_call.1} parent=1 // pred_check
      _
    $region11: #{tpu_custom_call.1} parent=1 // pred_check_branch
      %31 = sbr.rel (0) target = $region13
    $region12: #{tpu_custom_call.1} parent=1 // pred_region
      _
    $region13: #{tpu_custom_call.1} parent=1 // pred_fallthru
      _
    // Predicated region
    $region14: #{tpu_custom_call.1} parent=1 // pred_check
      _
    $region15: #{tpu_custom_call.1} parent=1 // pred_check_branch
      %33 = sbr.rel (0) target = $region17
    $region16: #{tpu_custom_call.1} parent=1 // pred_region
      _
    $region17: #{tpu_custom_call.1} parent=1 // pred_fallthru
      _
    // Predicated region
    $region18: #{tpu_custom_call.1} parent=1 // pred_check
      _
    $region19: #{tpu_custom_call.1} parent=1 // pred_check_branch
      %35 = sbr.rel (0) target = $region21
    $region20: #{tpu_custom_call.1} parent=1 // pred_region
      _
    $region21: #{tpu_custom_call.1} parent=1 // pred_fallthru
      _
    // Predicated region
    $region22: #{tpu_custom_call.1} parent=1 // pred_check
      _
    $region23: #{tpu_custom_call.1} parent=1 // pred_check_branch
      %37 = sbr.rel (0) target = $region25
    $region24: #{tpu_custom_call.1} parent=1 // pred_region
      %s39 = ssub.s32 2048, 2048
      %40 = vsyncadd [#allocation10], %s39
      %s41 = sshll.u32 [#allocation9], 4
      %s42 = int_to_ptr.vmem [resolvable:$true] %s41
      %47 = dma.hbm_to_vmem [thread:$0]  %s5, 2048, %s42, [#allocation10], 128, 128, 8
    $region25: #{tpu_custom_call.1} parent=1 // pred_fallthru
      _
    // Predicated region
    $region26: #{tpu_custom_call.1} parent=1 // pred_check
      _
    $region27: #{tpu_custom_call.1} parent=1 // pred_check_branch
      %49 = sbr.rel (0) target = $region29
    $region28: #{tpu_custom_call.1} parent=1 // pred_region
      %s51 = ssub.s32 2048, 2048
      %52 = vsyncadd [#allocation10], %s51
      %s53 = sshll.u32 [#allocation11], 4
      %s54 = int_to_ptr.vmem [resolvable:$true] %s53
      %59 = dma.hbm_to_vmem [thread:$0]  %s6, 2048, %s54, [#allocation10], 128, 128, 8
    $region29: #{tpu_custom_call.1} parent=1 // pred_fallthru
      _
    // Predicated region
    $region30: #{tpu_custom_call.1} parent=1 // pred_check
      _
    $region31: #{tpu_custom_call.1} parent=1 // pred_check_branch
      %61 = sbr.rel (0) target = $region33
    $region32: #{tpu_custom_call.1} parent=1 // pred_region
      _
    $region33: #{tpu_custom_call.1} parent=1 // pred_fallthru
      _
    // Predicated region
    $region34: #{tpu_custom_call.1} parent=1 // pred_check
      _
    $region35: #{tpu_custom_call.1} parent=1 // pred_check_branch
      %63 = sbr.rel (0) target = $region37
    $region36: #{tpu_custom_call.1} parent=1 // pred_region
      %64 = dma.done [#allocation7], 1024
    $region37: #{tpu_custom_call.1} parent=1 // pred_fallthru
      _
    // Predicated region
    $region38: #{tpu_custom_call.1} parent=1 // pred_check
      _
    $region39: #{tpu_custom_call.1} parent=1 // pred_check_branch
      %66 = sbr.rel (0) target = $region41
    $region40: #{tpu_custom_call.1} parent=1 // pred_region
      %67 = dma.done [#allocation10], 2048
    $region41: #{tpu_custom_call.1} parent=1 // pred_fallthru
      _
    // Predicated region
    $region42: #{tpu_custom_call.1} parent=1 // pred_check
      _
    $region43: #{tpu_custom_call.1} parent=1 // pred_check_branch
      %69 = sbr.rel (0) target = $region45
    $region44: #{tpu_custom_call.1} parent=1 // pred_region
      %70 = dma.done [#allocation10], 2048
    $region45: #{tpu_custom_call.1} parent=1 // pred_fallthru
      _
    %v71 = vld [vmem:[#allocation6] sm:$0xff]
    %v72 = vld [vmem:[#allocation6 + $0x8] sm:$0xff]
    %v73 = vld [vmem:[#allocation6 + $0x10] sm:$0xff]
    %v74 = vld [vmem:[#allocation6 + $0x18] sm:$0xff]
    %v75 = vld [vmem:[#allocation6 + $0x20] sm:$0xff]
    %v76 = vld [vmem:[#allocation6 + $0x28] sm:$0xff]
    %v77 = vld [vmem:[#allocation6 + $0x30] sm:$0xff]
    %v78 = vld [vmem:[#allocation6 + $0x38] sm:$0xff]
    %v79 = vld [vmem:[#allocation9] sm:$0xff]
    %v80 = vld [vmem:[#allocation9 + $0x8] sm:$0xff]
    %v81 = vld [vmem:[#allocation9 + $0x10] sm:$0xff]
    %v82 = vld [vmem:[#allocation9 + $0x18] sm:$0xff]
    %v83 = vld [vmem:[#allocation9 + $0x20] sm:$0xff]
    %v84 = vld [vmem:[#allocation9 + $0x28] sm:$0xff]
    %v85 = vld [vmem:[#allocation9 + $0x30] sm:$0xff]
    %v86 = vld [vmem:[#allocation9 + $0x38] sm:$0xff]
    %v87 = vld [vmem:[#allocation9 + $0x40] sm:$0xff]
    %v88 = vld [vmem:[#allocation9 + $0x48] sm:$0xff]
    %v89 = vld [vmem:[#allocation9 + $0x50] sm:$0xff]
    %v90 = vld [vmem:[#allocation9 + $0x58] sm:$0xff]
    %v91 = vld [vmem:[#allocation9 + $0x60] sm:$0xff]
    %v92 = vld [vmem:[#allocation9 + $0x68] sm:$0xff]
    %v93 = vld [vmem:[#allocation9 + $0x70] sm:$0xff]
    %v94 = vld [vmem:[#allocation9 + $0x78] sm:$0xff]
    %v95 = vld [vmem:[%s4] sm:$0x1]
    %v97 = vlaneseq
    %v98 = vshrl.u32 %v97, 7
    %v99 = vsub.s32 0, %v98
    %v100 = vrot.slane %v95, %v99
    %102 = vmatprep.subr.mxu0 0.0
    %103 = vmatpush1.msra.mxu0 %v94
    %104 = vmatprep.subr.mxu0 0.0
    %105 = vmatpush1.msra.mxu0 %v93
    %106 = vmatprep.subr.mxu0 0.0
    %107 = vmatpush1.msra.mxu0 %v92
    %108 = vmatprep.subr.mxu0 0.0
    %109 = vmatpush1.msra.mxu0 %v91
    %110 = vmatprep.subr.mxu0 0.0
    %111 = vmatpush1.msra.mxu0 %v90
    %112 = vmatprep.subr.mxu0 0.0
    %113 = vmatpush1.msra.mxu0 %v89
    %114 = vmatprep.subr.mxu0 0.0
    %115 = vmatpush1.msra.mxu0 %v88
    %116 = vmatprep.subr.mxu0 0.0
    %117 = vmatpush1.msra.mxu0 %v87
    %118 = vmatprep.subr.mxu0 0.0
    %119 = vmatpush1.msra.mxu0 %v86
    %120 = vmatprep.subr.mxu0 0.0
    %121 = vmatpush1.msra.mxu0 %v85
    %122 = vmatprep.subr.mxu0 0.0
    %123 = vmatpush1.msra.mxu0 %v84
    %124 = vmatprep.subr.mxu0 0.0
    %125 = vmatpush1.msra.mxu0 %v83
    %126 = vmatprep.subr.mxu0 0.0
    %127 = vmatpush1.msra.mxu0 %v82
    %128 = vmatprep.subr.mxu0 0.0
    %129 = vmatpush1.msra.mxu0 %v81
    %130 = vmatprep.subr.mxu0 0.0
    %131 = vmatpush1.msra.mxu0 %v80
    %132 = vmatprep.subr.mxu0 0.0
    %133 = vmatpush1.msra.mxu0 %v79
    %134 = vmatprep.subr.mxu0 0.0
    %135 = vmatpush2.msra.mxu0 0.0
    %136 = vmatprep.subr.mxu0 0.0
    %137 = vmatpush2.msra.mxu0 0.0
    %138 = vmatprep.subr.mxu0 0.0
    %139 = vmatpush2.msra.mxu0 0.0
    %140 = vmatprep.subr.mxu0 0.0
    %141 = vmatpush2.msra.mxu0 0.0
    %142 = vmatprep.subr.mxu0 0.0
    %143 = vmatpush2.msra.mxu0 0.0
    %144 = vmatprep.subr.mxu0 0.0
    %145 = vmatpush2.msra.mxu0 0.0
    %146 = vmatprep.subr.mxu0 0.0
    %147 = vmatpush2.msra.mxu0 0.0
    %148 = vmatprep.subr.mxu0 0.0
    %149 = vmatpush2.msra.mxu0 0.0
    %150 = vmatprep.subr.mxu0 0.0
    %151 = vmatpush2.msra.mxu0 0.0
    %152 = vmatprep.subr.mxu0 0.0
    %153 = vmatpush2.msra.mxu0 0.0
    %154 = vmatprep.subr.mxu0 0.0
    %155 = vmatpush2.msra.mxu0 0.0
    %156 = vmatprep.subr.mxu0 0.0
    %157 = vmatpush2.msra.mxu0 0.0
    %158 = vmatprep.subr.mxu0 0.0
    %159 = vmatpush2.msra.mxu0 0.0
    %160 = vmatprep.subr.mxu0 0.0
    %161 = vmatpush2.msra.mxu0 0.0
    %162 = vmatprep.subr.mxu0 0.0
    %163 = vmatpush2.msra.mxu0 0.0
    %164 = vmatprep.subr.mxu0 0.0
    %165 = vmatpush2.msra.mxu0 0.0
    %166 = vmatprep.mubr.f32.mxu0 0.0
    %167 = vmatmul.mubr.f32.gmra.mxu0 %v71
    %v168 = vpop.f32.mrf.mxu0
    %v169 = vadd.f32 %v100, %v168
    %v170 = vpop.f32.mrf.mxu0
    %171 = vmatprep.mubr.f32.mxu0 0.0
    %172 = vmatmul.mubr.f32.gmra.mxu0 %v72
    %v173 = vpop.f32.mrf.mxu0
    %v174 = vadd.f32 %v100, %v173
    %v175 = vpop.f32.mrf.mxu0
    %176 = vmatprep.mubr.f32.mxu0 0.0
    %177 = vmatmul.mubr.f32.gmra.mxu0 %v73
    %v178 = vpop.f32.mrf.mxu0
    %v179 = vadd.f32 %v100, %v178
    %v180 = vpop.f32.mrf.mxu0
    %181 = vmatprep.mubr.f32.mxu0 0.0
    %182 = vmatmul.mubr.f32.gmra.mxu0 %v74
    %v183 = vpop.f32.mrf.mxu0
    %v184 = vadd.f32 %v100, %v183
    %v185 = vpop.f32.mrf.mxu0
    %186 = vmatprep.mubr.f32.mxu0 0.0
    %187 = vmatmul.mubr.f32.gmra.mxu0 %v75
    %v188 = vpop.f32.mrf.mxu0
    %v189 = vadd.f32 %v100, %v188
    %v190 = vpop.f32.mrf.mxu0
    %191 = vmatprep.mubr.f32.mxu0 0.0
    %192 = vmatmul.mubr.f32.gmra.mxu0 %v76
    %v193 = vpop.f32.mrf.mxu0
    %v194 = vadd.f32 %v100, %v193
    %v195 = vpop.f32.mrf.mxu0
    %196 = vmatprep.mubr.f32.mxu0 0.0
    %197 = vmatmul.mubr.f32.gmra.mxu0 %v77
    %v198 = vpop.f32.mrf.mxu0
    %v199 = vadd.f32 %v100, %v198
    %v200 = vpop.f32.mrf.mxu0
    %201 = vmatprep.mubr.f32.mxu0 0.0
    %202 = vmatmul.mubr.f32.gmra.mxu0 %v78
    %v203 = vpop.f32.mrf.mxu0
    %v204 = vadd.f32 %v100, %v203
    %v205 = vpop.f32.mrf.mxu0
    %206 = vdwg.mxu0
    %v207 = vld [vmem:[%s1] sm:$0xff]
    %v208 = vld [vmem:[%s1 + $0x8] sm:$0xff]
    %v209 = vld [vmem:[%s1 + $0x10] sm:$0xff]
    %v210 = vld [vmem:[%s1 + $0x18] sm:$0xff]
    %v211 = vld [vmem:[%s1 + $0x20] sm:$0xff]
    %v212 = vld [vmem:[%s1 + $0x28] sm:$0xff]
    %v213 = vld [vmem:[%s1 + $0x30] sm:$0xff]
    %v214 = vld [vmem:[%s1 + $0x38] sm:$0xff]
    %216 = vset.pattern.permute.xlu0 0
    %217 = vperm.xlu0 %216, %v207
    %v218 = vpop.permute.xlu0 %217
    %221 = vset.pattern.permute.xlu0 0
    %222 = vperm.xlu0 %221, %v208
    %v223 = vpop.permute.xlu0 %222
    %226 = vset.pattern.permute.xlu0 0
    %227 = vperm.xlu0 %226, %v209
    %v228 = vpop.permute.xlu0 %227
    %231 = vset.pattern.permute.xlu0 0
    %232 = vperm.xlu0 %231, %v210
    %v233 = vpop.permute.xlu0 %232
    %236 = vset.pattern.permute.xlu0 0
    %237 = vperm.xlu0 %236, %v211
    %v238 = vpop.permute.xlu0 %237
    %241 = vset.pattern.permute.xlu0 0
    %242 = vperm.xlu0 %241, %v212
    %v243 = vpop.permute.xlu0 %242
    %246 = vset.pattern.permute.xlu0 0
    %247 = vperm.xlu0 %246, %v213
    %v248 = vpop.permute.xlu0 %247
    %251 = vset.pattern.permute.xlu0 0
    %252 = vperm.xlu0 %251, %v214
    %v253 = vpop.permute.xlu0 %252
    %v255 = vmul.f32 %v169, %v218
    %v256 = vmul.f32 %v174, %v223
    %v257 = vmul.f32 %v179, %v228
    %v258 = vmul.f32 %v184, %v233
    %v259 = vmul.f32 %v189, %v238
    %v260 = vmul.f32 %v194, %v243
    %v261 = vmul.f32 %v199, %v248
    %v262 = vmul.f32 %v204, %v253
    %263 = vst [vmem:[#allocation2] sm:$0xff] %v255
    %264 = vst [vmem:[#allocation2 + $0x8] sm:$0xff] %v256
    %265 = vst [vmem:[#allocation2 + $0x10] sm:$0xff] %v257
    %266 = vst [vmem:[#allocation2 + $0x18] sm:$0xff] %v258
    %267 = vst [vmem:[#allocation2 + $0x20] sm:$0xff] %v259
    %268 = vst [vmem:[#allocation2 + $0x28] sm:$0xff] %v260
    %269 = vst [vmem:[#allocation2 + $0x30] sm:$0xff] %v261
    %270 = vst [vmem:[#allocation2 + $0x38] sm:$0xff] %v262
    %v271 = vld [vmem:[#allocation2] sm:$0xff]
    %v272 = vld [vmem:[#allocation2 + $0x38] sm:$0xff]
    %v273 = vld [vmem:[%s3] sm:$0xff]
    %v274 = vld [vmem:[%s3 + $0x8] sm:$0xff]
    %v275 = vld [vmem:[%s3 + $0x10] sm:$0xff]
    %v276 = vld [vmem:[%s3 + $0x18] sm:$0xff]
    %v277 = vld [vmem:[%s3 + $0x20] sm:$0xff]
    %v278 = vld [vmem:[%s3 + $0x28] sm:$0xff]
    %v279 = vld [vmem:[%s3 + $0x30] sm:$0xff]
    %v280 = vld [vmem:[%s3 + $0x38] sm:$0xff]
    %v281 = vld [vmem:[%s3 + $0x40] sm:$0xff]
    %v282 = vld [vmem:[%s3 + $0x48] sm:$0xff]
    %v283 = vld [vmem:[%s3 + $0x50] sm:$0xff]
    %v284 = vld [vmem:[%s3 + $0x58] sm:$0xff]
    %v285 = vld [vmem:[%s3 + $0x60] sm:$0xff]
    %v286 = vld [vmem:[%s3 + $0x68] sm:$0xff]
    %v287 = vld [vmem:[%s3 + $0x70] sm:$0xff]
    %v288 = vld [vmem:[%s3 + $0x78] sm:$0xff]
    %289 = vmatprep.subr.mxu0 0.0
    %290 = vmatpush1.msra.mxu0 %v288
    %291 = vmatprep.subr.mxu0 0.0
    %292 = vmatpush1.msra.mxu0 %v287
    %293 = vmatprep.subr.mxu0 0.0
    %294 = vmatpush1.msra.mxu0 %v286
    %295 = vmatprep.subr.mxu0 0.0
    %296 = vmatpush1.msra.mxu0 %v285
    %297 = vmatprep.subr.mxu0 0.0
    %298 = vmatpush1.msra.mxu0 %v284
    %299 = vmatprep.subr.mxu0 0.0
    %300 = vmatpush1.msra.mxu0 %v283
    %301 = vmatprep.subr.mxu0 0.0
    %302 = vmatpush1.msra.mxu0 %v282
    %303 = vmatprep.subr.mxu0 0.0
    %304 = vmatpush1.msra.mxu0 %v281
    %305 = vmatprep.subr.mxu0 0.0
    %306 = vmatpush1.msra.mxu0 %v280
    %307 = vmatprep.subr.mxu0 0.0
    %308 = vmatpush1.msra.mxu0 %v279
    %309 = vmatprep.subr.mxu0 0.0
    %310 = vmatpush1.msra.mxu0 %v278
    %311 = vmatprep.subr.mxu0 0.0
    %312 = vmatpush1.msra.mxu0 %v277
    %313 = vmatprep.subr.mxu0 0.0
    %314 = vmatpush1.msra.mxu0 %v276
    %315 = vmatprep.subr.mxu0 0.0
    %316 = vmatpush1.msra.mxu0 %v275
    %317 = vmatprep.subr.mxu0 0.0
    %318 = vmatpush1.msra.mxu0 %v274
    %319 = vmatprep.subr.mxu0 0.0
    %320 = vmatpush1.msra.mxu0 %v273
    %321 = vmatprep.subr.mxu0 0.0
    %322 = vmatpush2.msra.mxu0 0.0
    %323 = vmatprep.subr.mxu0 0.0
    %324 = vmatpush2.msra.mxu0 0.0
    %325 = vmatprep.subr.mxu0 0.0
    %326 = vmatpush2.msra.mxu0 0.0
    %327 = vmatprep.subr.mxu0 0.0
    %328 = vmatpush2.msra.mxu0 0.0
    %329 = vmatprep.subr.mxu0 0.0
    %330 = vmatpush2.msra.mxu0 0.0
    %331 = vmatprep.subr.mxu0 0.0
    %332 = vmatpush2.msra.mxu0 0.0
    %333 = vmatprep.subr.mxu0 0.0
    %334 = vmatpush2.msra.mxu0 0.0
    %335 = vmatprep.subr.mxu0 0.0
    %336 = vmatpush2.msra.mxu0 0.0
    %337 = vmatprep.subr.mxu0 0.0
    %338 = vmatpush2.msra.mxu0 0.0
    %339 = vmatprep.subr.mxu0 0.0
    %340 = vmatpush2.msra.mxu0 0.0
    %341 = vmatprep.subr.mxu0 0.0
    %342 = vmatpush2.msra.mxu0 0.0
    %343 = vmatprep.subr.mxu0 0.0
    %344 = vmatpush2.msra.mxu0 0.0
    %345 = vmatprep.subr.mxu0 0.0
    %346 = vmatpush2.msra.mxu0 0.0
    %347 = vmatprep.subr.mxu0 0.0
    %348 = vmatpush2.msra.mxu0 0.0
    %349 = vmatprep.subr.mxu0 0.0
    %350 = vmatpush2.msra.mxu0 0.0
    %351 = vmatprep.subr.mxu0 0.0
    %352 = vmatpush2.msra.mxu0 0.0
    %353 = vmatprep.mubr.f32.mxu0 0.0
    %354 = vmatmul.mubr.f32.gmra.mxu0 0.0
    %v355 = vpop.f32.mrf.mxu0
    %v356 = vadd.f32 %v271, %v355
    %v357 = vpop.f32.mrf.mxu0
    %358 = vmatprep.mubr.f32.mxu0 0.0
    %359 = vmatmul.mubr.f32.gmra.mxu0 0.0
    %v360 = vpop.f32.mrf.mxu0
    %v361 = vadd.f32 %v272, %v360
    %v362 = vpop.f32.mrf.mxu0
    %363 = vdwg.mxu0
    %v364 = vxor.u32 %v356, 2147483648
    %v365 = vxor.u32 %v361, 2147483648
    %v366 = vmul.f32 %v364, 1.442695
    %v367 = vpow.pop %v366
    %v368 = vmul.f32 %v365, 1.442695
    %v369 = vpow.pop %v368
    %v370 = vadd.f32 %v367, 1.0
    %v371 = vadd.f32 %v369, 1.0
    %v372 = vrcp.pop %v370
    %v373 = vmul.f32 1.0, %v372
    %v374 = vrcp.pop %v371
    %v375 = vmul.f32 1.0, %v374
    %v376 = vtanh.pop %v356
    %v377 = vtanh.pop %v361
    %v378 = vadd.f32 %v376, 0.0
    %v379 = vadd.f32 %v377, 0.0
    %v380 = vmul.f32 %v373, %v378
    %v381 = vmul.f32 %v375, %v379
    %v382 = vtanh.pop %v380
    %v383 = vtanh.pop %v381
    %v384 = vmul.f32 %v373, %v382
    %v385 = vmul.f32 %v375, %v383
    %v386 = vadd.f32 %v384, %v385
    %v387 = vmul.f32 %v386, 0.5
    %388 = vst [vmem:[#allocation3] sm:$0xff] %v387
    %v389 = vld [vmem:[#allocation2 + $0x8] sm:$0xff]
    %v390 = vld [vmem:[#allocation2 + $0x30] sm:$0xff]
    %v391 = vld [vmem:[%s3] sm:$0xff]
    %v392 = vld [vmem:[%s3 + $0x8] sm:$0xff]
    %v393 = vld [vmem:[%s3 + $0x10] sm:$0xff]
    %v394 = vld [vmem:[%s3 + $0x18] sm:$0xff]
    %v395 = vld [vmem:[%s3 + $0x20] sm:$0xff]
    %v396 = vld [vmem:[%s3 + $0x28] sm:$0xff]
    %v397 = vld [vmem:[%s3 + $0x30] sm:$0xff]
    %v398 = vld [vmem:[%s3 + $0x38] sm:$0xff]
    %v399 = vld [vmem:[%s3 + $0x40] sm:$0xff]
    %v400 = vld [vmem:[%s3 + $0x48] sm:$0xff]
    %v401 = vld [vmem:[%s3 + $0x50] sm:$0xff]
    %v402 = vld [vmem:[%s3 + $0x58] sm:$0xff]
    %v403 = vld [vmem:[%s3 + $0x60] sm:$0xff]
    %v404 = vld [vmem:[%s3 + $0x68] sm:$0xff]
    %v405 = vld [vmem:[%s3 + $0x70] sm:$0xff]
    %v406 = vld [vmem:[%s3 + $0x78] sm:$0xff]
    %407 = vmatprep.subr.mxu0 0.0
    %408 = vmatpush1.msra.mxu0 %v406
    %409 = vmatprep.subr.mxu0 0.0
    %410 = vmatpush1.msra.mxu0 %v405
    %411 = vmatprep.subr.mxu0 0.0
    %412 = vmatpush1.msra.mxu0 %v404
    %413 = vmatprep.subr.mxu0 0.0
    %414 = vmatpush1.msra.mxu0 %v403
    %415 = vmatprep.subr.mxu0 0.0
    %416 = vmatpush1.msra.mxu0 %v402
    %417 = vmatprep.subr.mxu0 0.0
    %418 = vmatpush1.msra.mxu0 %v401
    %419 = vmatprep.subr.mxu0 0.0
    %420 = vmatpush1.msra.mxu0 %v400
    %421 = vmatprep.subr.mxu0 0.0
    %422 = vmatpush1.msra.mxu0 %v399
    %423 = vmatprep.subr.mxu0 0.0
    %424 = vmatpush1.msra.mxu0 %v398
    %425 = vmatprep.subr.mxu0 0.0
    %426 = vmatpush1.msra.mxu0 %v397
    %427 = vmatprep.subr.mxu0 0.0
    %428 = vmatpush1.msra.mxu0 %v396
    %429 = vmatprep.subr.mxu0 0.0
    %430 = vmatpush1.msra.mxu0 %v395
    %431 = vmatprep.subr.mxu0 0.0
    %432 = vmatpush1.msra.mxu0 %v394
    %433 = vmatprep.subr.mxu0 0.0
    %434 = vmatpush1.msra.mxu0 %v393
    %435 = vmatprep.subr.mxu0 0.0
    %436 = vmatpush1.msra.mxu0 %v392
    %437 = vmatprep.subr.mxu0 0.0
    %438 = vmatpush1.msra.mxu0 %v391
    %439 = vmatprep.subr.mxu0 0.0
    %440 = vmatpush2.msra.mxu0 0.0
    %441 = vmatprep.subr.mxu0 0.0
    %442 = vmatpush2.msra.mxu0 0.0
    %443 = vmatprep.subr.mxu0 0.0
    %444 = vmatpush2.msra.mxu0 0.0
    %445 = vmatprep.subr.mxu0 0.0
    %446 = vmatpush2.msra.mxu0 0.0
    %447 = vmatprep.subr.mxu0 0.0
    %448 = vmatpush2.msra.mxu0 0.0
    %449 = vmatprep.subr.mxu0 0.0
    %450 = vmatpush2.msra.mxu0 0.0
    %451 = vmatprep.subr.mxu0 0.0
    %452 = vmatpush2.msra.mxu0 0.0
    %453 = vmatprep.subr.mxu0 0.0
    %454 = vmatpush2.msra.mxu0 0.0
    %455 = vmatprep.subr.mxu0 0.0
    %456 = vmatpush2.msra.mxu0 0.0
    %457 = vmatprep.subr.mxu0 0.0
    %458 = vmatpush2.msra.mxu0 0.0
    %459 = vmatprep.subr.mxu0 0.0
    %460 = vmatpush2.msra.mxu0 0.0
    %461 = vmatprep.subr.mxu0 0.0
    %462 = vmatpush2.msra.mxu0 0.0
    %463 = vmatprep.subr.mxu0 0.0
    %464 = vmatpush2.msra.mxu0 0.0
    %465 = vmatprep.subr.mxu0 0.0
    %466 = vmatpush2.msra.mxu0 0.0
    %467 = vmatprep.subr.mxu0 0.0
    %468 = vmatpush2.msra.mxu0 0.0
    %469 = vmatprep.subr.mxu0 0.0
    %470 = vmatpush2.msra.mxu0 0.0
    %471 = vmatprep.mubr.f32.mxu0 0.0
    %472 = vmatmul.mubr.f32.gmra.mxu0 %v384
    %v473 = vpop.f32.mrf.mxu0
    %v474 = vadd.f32 %v389, %v473
    %v475 = vpop.f32.mrf.mxu0
    %476 = vmatprep.mubr.f32.mxu0 0.0
    %477 = vmatmul.mubr.f32.gmra.mxu0 %v385
    %v478 = vpop.f32.mrf.mxu0
    %v479 = vadd.f32 %v390, %v478
    %v480 = vpop.f32.mrf.mxu0
    %481 = vdwg.mxu0
    %v482 = vxor.u32 %v474, 2147483648
    %v483 = vxor.u32 %v479, 2147483648
    %v484 = vmul.f32 %v482, 1.442695
    %v485 = vpow.pop %v484
    %v486 = vmul.f32 %v483, 1.442695
    %v487 = vpow.pop %v486
    %v488 = vadd.f32 %v485, 1.0
    %v489 = vadd.f32 %v487, 1.0
    %v490 = vrcp.pop %v488
    %v491 = vmul.f32 1.0, %v490
    %v492 = vrcp.pop %v489
    %v493 = vmul.f32 1.0, %v492
    %v494 = vtanh.pop %v474
    %v495 = vtanh.pop %v479
    %v496 = vadd.f32 %v380, %v494
    %v497 = vadd.f32 %v381, %v495
    %v498 = vmul.f32 %v491, %v496
    %v499 = vmul.f32 %v493, %v497
    %v500 = vtanh.pop %v498
    %v501 = vtanh.pop %v499
    %v502 = vmul.f32 %v491, %v500
    %v503 = vmul.f32 %v493, %v501
    %v504 = vadd.f32 %v502, %v503
    %v505 = vmul.f32 %v504, 0.5
    %506 = vst [vmem:[#allocation3 + $0x8] sm:$0xff] %v505
    %v507 = vld [vmem:[#allocation2 + $0x10] sm:$0xff]
    %v508 = vld [vmem:[#allocation2 + $0x28] sm:$0xff]
    %v509 = vld [vmem:[%s3] sm:$0xff]
    %v510 = vld [vmem:[%s3 + $0x8] sm:$0xff]
    %v511 = vld [vmem:[%s3 + $0x10] sm:$0xff]
    %v512 = vld [vmem:[%s3 + $0x18] sm:$0xff]
    %v513 = vld [vmem:[%s3 + $0x20] sm:$0xff]
    %v514 = vld [vmem:[%s3 + $0x28] sm:$0xff]
    %v515 = vld [vmem:[%s3 + $0x30] sm:$0xff]
    %v516 = vld [vmem:[%s3 + $0x38] sm:$0xff]
    %v517 = vld [vmem:[%s3 + $0x40] sm:$0xff]
    %v518 = vld [vmem:[%s3 + $0x48] sm:$0xff]
    %v519 = vld [vmem:[%s3 + $0x50] sm:$0xff]
    %v520 = vld [vmem:[%s3 + $0x58] sm:$0xff]
    %v521 = vld [vmem:[%s3 + $0x60] sm:$0xff]
    %v522 = vld [vmem:[%s3 + $0x68] sm:$0xff]
    %v523 = vld [vmem:[%s3 + $0x70] sm:$0xff]
    %v524 = vld [vmem:[%s3 + $0x78] sm:$0xff]
    %525 = vmatprep.subr.mxu0 0.0
    %526 = vmatpush1.msra.mxu0 %v524
    %527 = vmatprep.subr.mxu0 0.0
    %528 = vmatpush1.msra.mxu0 %v523
    %529 = vmatprep.subr.mxu0 0.0
    %530 = vmatpush1.msra.mxu0 %v522
    %531 = vmatprep.subr.mxu0 0.0
    %532 = vmatpush1.msra.mxu0 %v521
    %533 = vmatprep.subr.mxu0 0.0
    %534 = vmatpush1.msra.mxu0 %v520
    %535 = vmatprep.subr.mxu0 0.0
    %536 = vmatpush1.msra.mxu0 %v519
    %537 = vmatprep.subr.mxu0 0.0
    %538 = vmatpush1.msra.mxu0 %v518
    %539 = vmatprep.subr.mxu0 0.0
    %540 = vmatpush1.msra.mxu0 %v517
    %541 = vmatprep.subr.mxu0 0.0
    %542 = vmatpush1.msra.mxu0 %v516
    %543 = vmatprep.subr.mxu0 0.0
    %544 = vmatpush1.msra.mxu0 %v515
    %545 = vmatprep.subr.mxu0 0.0
    %546 = vmatpush1.msra.mxu0 %v514
    %547 = vmatprep.subr.mxu0 0.0
    %548 = vmatpush1.msra.mxu0 %v513
    %549 = vmatprep.subr.mxu0 0.0
    %550 = vmatpush1.msra.mxu0 %v512
    %551 = vmatprep.subr.mxu0 0.0
    %552 = vmatpush1.msra.mxu0 %v511
    %553 = vmatprep.subr.mxu0 0.0
    %554 = vmatpush1.msra.mxu0 %v510
    %555 = vmatprep.subr.mxu0 0.0
    %556 = vmatpush1.msra.mxu0 %v509
    %557 = vmatprep.subr.mxu0 0.0
    %558 = vmatpush2.msra.mxu0 0.0
    %559 = vmatprep.subr.mxu0 0.0
    %560 = vmatpush2.msra.mxu0 0.0
    %561 = vmatprep.subr.mxu0 0.0
    %562 = vmatpush2.msra.mxu0 0.0
    %563 = vmatprep.subr.mxu0 0.0
    %564 = vmatpush2.msra.mxu0 0.0
    %565 = vmatprep.subr.mxu0 0.0
    %566 = vmatpush2.msra.mxu0 0.0
    %567 = vmatprep.subr.mxu0 0.0
    %568 = vmatpush2.msra.mxu0 0.0
    %569 = vmatprep.subr.mxu0 0.0
    %570 = vmatpush2.msra.mxu0 0.0
    %571 = vmatprep.subr.mxu0 0.0
    %572 = vmatpush2.msra.mxu0 0.0
    %573 = vmatprep.subr.mxu0 0.0
    %574 = vmatpush2.msra.mxu0 0.0
    %575 = vmatprep.subr.mxu0 0.0
    %576 = vmatpush2.msra.mxu0 0.0
    %577 = vmatprep.subr.mxu0 0.0
    %578 = vmatpush2.msra.mxu0 0.0
    %579 = vmatprep.subr.mxu0 0.0
    %580 = vmatpush2.msra.mxu0 0.0
    %581 = vmatprep.subr.mxu0 0.0
    %582 = vmatpush2.msra.mxu0 0.0
    %583 = vmatprep.subr.mxu0 0.0
    %584 = vmatpush2.msra.mxu0 0.0
    %585 = vmatprep.subr.mxu0 0.0
    %586 = vmatpush2.msra.mxu0 0.0
    %587 = vmatprep.subr.mxu0 0.0
    %588 = vmatpush2.msra.mxu0 0.0
    %589 = vmatprep.mubr.f32.mxu0 0.0
    %590 = vmatmul.mubr.f32.gmra.mxu0 %v502
    %v591 = vpop.f32.mrf.mxu0
    %v592 = vadd.f32 %v507, %v591
    %v593 = vpop.f32.mrf.mxu0
    %594 = vmatprep.mubr.f32.mxu0 0.0
    %595 = vmatmul.mubr.f32.gmra.mxu0 %v503
    %v596 = vpop.f32.mrf.mxu0
    %v597 = vadd.f32 %v508, %v596
    %v598 = vpop.f32.mrf.mxu0
    %599 = vdwg.mxu0
    %v600 = vxor.u32 %v592, 2147483648
    %v601 = vxor.u32 %v597, 2147483648
    %v602 = vmul.f32 %v600, 1.442695
    %v603 = vpow.pop %v602
    %v604 = vmul.f32 %v601, 1.442695
    %v605 = vpow.pop %v604
    %v606 = vadd.f32 %v603, 1.0
    %v607 = vadd.f32 %v605, 1.0
    %v608 = vrcp.pop %v606
    %v609 = vmul.f32 1.0, %v608
    %v610 = vrcp.pop %v607
    %v611 = vmul.f32 1.0, %v610
    %v612 = vtanh.pop %v592
    %v613 = vtanh.pop %v597
    %v614 = vadd.f32 %v498, %v612
    %v615 = vadd.f32 %v499, %v613
    %v616 = vmul.f32 %v609, %v614
    %v617 = vmul.f32 %v611, %v615
    %v618 = vtanh.pop %v616
    %v619 = vtanh.pop %v617
    %v620 = vmul.f32 %v609, %v618
    %v621 = vmul.f32 %v611, %v619
    %v622 = vadd.f32 %v620, %v621
    %v623 = vmul.f32 %v622, 0.5
    %624 = vst [vmem:[#allocation3 + $0x10] sm:$0xff] %v623
    %v625 = vld [vmem:[#allocation2 + $0x18] sm:$0xff]
    %v626 = vld [vmem:[#allocation2 + $0x20] sm:$0xff]
    %v627 = vld [vmem:[%s3] sm:$0xff]
    %v628 = vld [vmem:[%s3 + $0x8] sm:$0xff]
    %v629 = vld [vmem:[%s3 + $0x10] sm:$0xff]
    %v630 = vld [vmem:[%s3 + $0x18] sm:$0xff]
    %v631 = vld [vmem:[%s3 + $0x20] sm:$0xff]
    %v632 = vld [vmem:[%s3 + $0x28] sm:$0xff]
    %v633 = vld [vmem:[%s3 + $0x30] sm:$0xff]
    %v634 = vld [vmem:[%s3 + $0x38] sm:$0xff]
    %v635 = vld [vmem:[%s3 + $0x40] sm:$0xff]
    %v636 = vld [vmem:[%s3 + $0x48] sm:$0xff]
    %v637 = vld [vmem:[%s3 + $0x50] sm:$0xff]
    %v638 = vld [vmem:[%s3 + $0x58] sm:$0xff]
    %v639 = vld [vmem:[%s3 + $0x60] sm:$0xff]
    %v640 = vld [vmem:[%s3 + $0x68] sm:$0xff]
    %v641 = vld [vmem:[%s3 + $0x70] sm:$0xff]
    %v642 = vld [vmem:[%s3 + $0x78] sm:$0xff]
    %643 = vmatprep.subr.mxu0 0.0
    %644 = vmatpush1.msra.mxu0 %v642
    %645 = vmatprep.subr.mxu0 0.0
    %646 = vmatpush1.msra.mxu0 %v641
    %647 = vmatprep.subr.mxu0 0.0
    %648 = vmatpush1.msra.mxu0 %v640
    %649 = vmatprep.subr.mxu0 0.0
    %650 = vmatpush1.msra.mxu0 %v639
    %651 = vmatprep.subr.mxu0 0.0
    %652 = vmatpush1.msra.mxu0 %v638
    %653 = vmatprep.subr.mxu0 0.0
    %654 = vmatpush1.msra.mxu0 %v637
    %655 = vmatprep.subr.mxu0 0.0
    %656 = vmatpush1.msra.mxu0 %v636
    %657 = vmatprep.subr.mxu0 0.0
    %658 = vmatpush1.msra.mxu0 %v635
    %659 = vmatprep.subr.mxu0 0.0
    %660 = vmatpush1.msra.mxu0 %v634
    %661 = vmatprep.subr.mxu0 0.0
    %662 = vmatpush1.msra.mxu0 %v633
    %663 = vmatprep.subr.mxu0 0.0
    %664 = vmatpush1.msra.mxu0 %v632
    %665 = vmatprep.subr.mxu0 0.0
    %666 = vmatpush1.msra.mxu0 %v631
    %667 = vmatprep.subr.mxu0 0.0
    %668 = vmatpush1.msra.mxu0 %v630
    %669 = vmatprep.subr.mxu0 0.0
    %670 = vmatpush1.msra.mxu0 %v629
    %671 = vmatprep.subr.mxu0 0.0
    %672 = vmatpush1.msra.mxu0 %v628
    %673 = vmatprep.subr.mxu0 0.0
    %674 = vmatpush1.msra.mxu0 %v627
    %675 = vmatprep.subr.mxu0 0.0
    %676 = vmatpush2.msra.mxu0 0.0
    %677 = vmatprep.subr.mxu0 0.0
    %678 = vmatpush2.msra.mxu0 0.0
    %679 = vmatprep.subr.mxu0 0.0
    %680 = vmatpush2.msra.mxu0 0.0
    %681 = vmatprep.subr.mxu0 0.0
    %682 = vmatpush2.msra.mxu0 0.0
    %683 = vmatprep.subr.mxu0 0.0
    %684 = vmatpush2.msra.mxu0 0.0
    %685 = vmatprep.subr.mxu0 0.0
    %686 = vmatpush2.msra.mxu0 0.0
    %687 = vmatprep.subr.mxu0 0.0
    %688 = vmatpush2.msra.mxu0 0.0
    %689 = vmatprep.subr.mxu0 0.0
    %690 = vmatpush2.msra.mxu0 0.0
    %691 = vmatprep.subr.mxu0 0.0
    %692 = vmatpush2.msra.mxu0 0.0
    %693 = vmatprep.subr.mxu0 0.0
    %694 = vmatpush2.msra.mxu0 0.0
    %695 = vmatprep.subr.mxu0 0.0
    %696 = vmatpush2.msra.mxu0 0.0
    %697 = vmatprep.subr.mxu0 0.0
    %698 = vmatpush2.msra.mxu0 0.0
    %699 = vmatprep.subr.mxu0 0.0
    %700 = vmatpush2.msra.mxu0 0.0
    %701 = vmatprep.subr.mxu0 0.0
    %702 = vmatpush2.msra.mxu0 0.0
    %703 = vmatprep.subr.mxu0 0.0
    %704 = vmatpush2.msra.mxu0 0.0
    %705 = vmatprep.subr.mxu0 0.0
    %706 = vmatpush2.msra.mxu0 0.0
    %707 = vmatprep.mubr.f32.mxu0 0.0
    %708 = vmatmul.mubr.f32.gmra.mxu0 %v620
    %v709 = vpop.f32.mrf.mxu0
    %v710 = vadd.f32 %v625, %v709
    %v711 = vpop.f32.mrf.mxu0
    %712 = vmatprep.mubr.f32.mxu0 0.0
    %713 = vmatmul.mubr.f32.gmra.mxu0 %v621
    %v714 = vpop.f32.mrf.mxu0
    %v715 = vadd.f32 %v626, %v714
    %v716 = vpop.f32.mrf.mxu0
    %717 = vdwg.mxu0
    %v718 = vxor.u32 %v710, 2147483648
    %v719 = vxor.u32 %v715, 2147483648
    %v720 = vmul.f32 %v718, 1.442695
    %v721 = vpow.pop %v720
    %v722 = vmul.f32 %v719, 1.442695
    %v723 = vpow.pop %v722
    %v724 = vadd.f32 %v721, 1.0
    %v725 = vadd.f32 %v723, 1.0
    %v726 = vrcp.pop %v724
    %v727 = vmul.f32 1.0, %v726
    %v728 = vrcp.pop %v725
    %v729 = vmul.f32 1.0, %v728
    %v730 = vtanh.pop %v710
    %v731 = vtanh.pop %v715
    %v732 = vadd.f32 %v616, %v730
    %v733 = vadd.f32 %v617, %v731
    %v734 = vmul.f32 %v727, %v732
    %v735 = vmul.f32 %v729, %v733
    %v736 = vtanh.pop %v734
    %v737 = vtanh.pop %v735
    %v738 = vmul.f32 %v727, %v736
    %v739 = vmul.f32 %v729, %v737
    %v740 = vadd.f32 %v738, %v739
    %v741 = vmul.f32 %v740, 0.5
    %742 = vst [vmem:[#allocation3 + $0x18] sm:$0xff] %v741
    %v743 = vld [vmem:[#allocation2 + $0x20] sm:$0xff]
    %v744 = vld [vmem:[#allocation2 + $0x18] sm:$0xff]
    %v745 = vld [vmem:[%s3] sm:$0xff]
    %v746 = vld [vmem:[%s3 + $0x8] sm:$0xff]
    %v747 = vld [vmem:[%s3 + $0x10] sm:$0xff]
    %v748 = vld [vmem:[%s3 + $0x18] sm:$0xff]
    %v749 = vld [vmem:[%s3 + $0x20] sm:$0xff]
    %v750 = vld [vmem:[%s3 + $0x28] sm:$0xff]
    %v751 = vld [vmem:[%s3 + $0x30] sm:$0xff]
    %v752 = vld [vmem:[%s3 + $0x38] sm:$0xff]
    %v753 = vld [vmem:[%s3 + $0x40] sm:$0xff]
    %v754 = vld [vmem:[%s3 + $0x48] sm:$0xff]
    %v755 = vld [vmem:[%s3 + $0x50] sm:$0xff]
    %v756 = vld [vmem:[%s3 + $0x58] sm:$0xff]
    %v757 = vld [vmem:[%s3 + $0x60] sm:$0xff]
    %v758 = vld [vmem:[%s3 + $0x68] sm:$0xff]
    %v759 = vld [vmem:[%s3 + $0x70] sm:$0xff]
    %v760 = vld [vmem:[%s3 + $0x78] sm:$0xff]
    %761 = vmatprep.subr.mxu0 0.0
    %762 = vmatpush1.msra.mxu0 %v760
    %763 = vmatprep.subr.mxu0 0.0
    %764 = vmatpush1.msra.mxu0 %v759
    %765 = vmatprep.subr.mxu0 0.0
    %766 = vmatpush1.msra.mxu0 %v758
    %767 = vmatprep.subr.mxu0 0.0
    %768 = vmatpush1.msra.mxu0 %v757
    %769 = vmatprep.subr.mxu0 0.0
    %770 = vmatpush1.msra.mxu0 %v756
    %771 = vmatprep.subr.mxu0 0.0
    %772 = vmatpush1.msra.mxu0 %v755
    %773 = vmatprep.subr.mxu0 0.0
    %774 = vmatpush1.msra.mxu0 %v754
    %775 = vmatprep.subr.mxu0 0.0
    %776 = vmatpush1.msra.mxu0 %v753
    %777 = vmatprep.subr.mxu0 0.0
    %778 = vmatpush1.msra.mxu0 %v752
    %779 = vmatprep.subr.mxu0 0.0
    %780 = vmatpush1.msra.mxu0 %v751
    %781 = vmatprep.subr.mxu0 0.0
    %782 = vmatpush1.msra.mxu0 %v750
    %783 = vmatprep.subr.mxu0 0.0
    %784 = vmatpush1.msra.mxu0 %v749
    %785 = vmatprep.subr.mxu0 0.0
    %786 = vmatpush1.msra.mxu0 %v748
    %787 = vmatprep.subr.mxu0 0.0
    %788 = vmatpush1.msra.mxu0 %v747
    %789 = vmatprep.subr.mxu0 0.0
    %790 = vmatpush1.msra.mxu0 %v746
    %791 = vmatprep.subr.mxu0 0.0
    %792 = vmatpush1.msra.mxu0 %v745
    %793 = vmatprep.subr.mxu0 0.0
    %794 = vmatpush2.msra.mxu0 0.0
    %795 = vmatprep.subr.mxu0 0.0
    %796 = vmatpush2.msra.mxu0 0.0
    %797 = vmatprep.subr.mxu0 0.0
    %798 = vmatpush2.msra.mxu0 0.0
    %799 = vmatprep.subr.mxu0 0.0
    %800 = vmatpush2.msra.mxu0 0.0
    %801 = vmatprep.subr.mxu0 0.0
    %802 = vmatpush2.msra.mxu0 0.0
    %803 = vmatprep.subr.mxu0 0.0
    %804 = vmatpush2.msra.mxu0 0.0
    %805 = vmatprep.subr.mxu0 0.0
    %806 = vmatpush2.msra.mxu0 0.0
    %807 = vmatprep.subr.mxu0 0.0
    %808 = vmatpush2.msra.mxu0 0.0
    %809 = vmatprep.subr.mxu0 0.0
    %810 = vmatpush2.msra.mxu0 0.0
    %811 = vmatprep.subr.mxu0 0.0
    %812 = vmatpush2.msra.mxu0 0.0
    %813 = vmatprep.subr.mxu0 0.0
    %814 = vmatpush2.msra.mxu0 0.0
    %815 = vmatprep.subr.mxu0 0.0
    %816 = vmatpush2.msra.mxu0 0.0
    %817 = vmatprep.subr.mxu0 0.0
    %818 = vmatpush2.msra.mxu0 0.0
    %819 = vmatprep.subr.mxu0 0.0
    %820 = vmatpush2.msra.mxu0 0.0
    %821 = vmatprep.subr.mxu0 0.0
    %822 = vmatpush2.msra.mxu0 0.0
    %823 = vmatprep.subr.mxu0 0.0
    %824 = vmatpush2.msra.mxu0 0.0
    %825 = vmatprep.mubr.f32.mxu0 0.0
    %826 = vmatmul.mubr.f32.gmra.mxu0 %v738
    %v827 = vpop.f32.mrf.mxu0
    %v828 = vadd.f32 %v743, %v827
    %v829 = vpop.f32.mrf.mxu0
    %830 = vmatprep.mubr.f32.mxu0 0.0
    %831 = vmatmul.mubr.f32.gmra.mxu0 %v739
    %v832 = vpop.f32.mrf.mxu0
    %v833 = vadd.f32 %v744, %v832
    %v834 = vpop.f32.mrf.mxu0
    %835 = vdwg.mxu0
    %v836 = vxor.u32 %v828, 2147483648
    %v837 = vxor.u32 %v833, 2147483648
    %v838 = vmul.f32 %v836, 1.442695
    %v839 = vpow.pop %v838
    %v840 = vmul.f32 %v837, 1.442695
    %v841 = vpow.pop %v840
    %v842 = vadd.f32 %v839, 1.0
    %v843 = vadd.f32 %v841, 1.0
    %v844 = vrcp.pop %v842
    %v845 = vmul.f32 1.0, %v844
    %v846 = vrcp.pop %v843
    %v847 = vmul.f32 1.0, %v846
    %v848 = vtanh.pop %v828
    %v849 = vtanh.pop %v833
    %v850 = vadd.f32 %v734, %v848
    %v851 = vadd.f32 %v735, %v849
    %v852 = vmul.f32 %v845, %v850
    %v853 = vmul.f32 %v847, %v851
    %v854 = vtanh.pop %v852
    %v855 = vtanh.pop %v853
    %v856 = vmul.f32 %v845, %v854
    %v857 = vmul.f32 %v847, %v855
    %v858 = vadd.f32 %v856, %v857
    %v859 = vmul.f32 %v858, 0.5
    %860 = vst [vmem:[#allocation3 + $0x20] sm:$0xff] %v859
    %v861 = vld [vmem:[#allocation2 + $0x28] sm:$0xff]
    %v862 = vld [vmem:[#allocation2 + $0x10] sm:$0xff]
    %v863 = vld [vmem:[%s3] sm:$0xff]
    %v864 = vld [vmem:[%s3 + $0x8] sm:$0xff]
    %v865 = vld [vmem:[%s3 + $0x10] sm:$0xff]
    %v866 = vld [vmem:[%s3 + $0x18] sm:$0xff]
    %v867 = vld [vmem:[%s3 + $0x20] sm:$0xff]
    %v868 = vld [vmem:[%s3 + $0x28] sm:$0xff]
    %v869 = vld [vmem:[%s3 + $0x30] sm:$0xff]
    %v870 = vld [vmem:[%s3 + $0x38] sm:$0xff]
    %v871 = vld [vmem:[%s3 + $0x40] sm:$0xff]
    %v872 = vld [vmem:[%s3 + $0x48] sm:$0xff]
    %v873 = vld [vmem:[%s3 + $0x50] sm:$0xff]
    %v874 = vld [vmem:[%s3 + $0x58] sm:$0xff]
    %v875 = vld [vmem:[%s3 + $0x60] sm:$0xff]
    %v876 = vld [vmem:[%s3 + $0x68] sm:$0xff]
    %v877 = vld [vmem:[%s3 + $0x70] sm:$0xff]
    %v878 = vld [vmem:[%s3 + $0x78] sm:$0xff]
    %879 = vmatprep.subr.mxu0 0.0
    %880 = vmatpush1.msra.mxu0 %v878
    %881 = vmatprep.subr.mxu0 0.0
    %882 = vmatpush1.msra.mxu0 %v877
    %883 = vmatprep.subr.mxu0 0.0
    %884 = vmatpush1.msra.mxu0 %v876
    %885 = vmatprep.subr.mxu0 0.0
    %886 = vmatpush1.msra.mxu0 %v875
    %887 = vmatprep.subr.mxu0 0.0
    %888 = vmatpush1.msra.mxu0 %v874
    %889 = vmatprep.subr.mxu0 0.0
    %890 = vmatpush1.msra.mxu0 %v873
    %891 = vmatprep.subr.mxu0 0.0
    %892 = vmatpush1.msra.mxu0 %v872
    %893 = vmatprep.subr.mxu0 0.0
    %894 = vmatpush1.msra.mxu0 %v871
    %895 = vmatprep.subr.mxu0 0.0
    %896 = vmatpush1.msra.mxu0 %v870
    %897 = vmatprep.subr.mxu0 0.0
    %898 = vmatpush1.msra.mxu0 %v869
    %899 = vmatprep.subr.mxu0 0.0
    %900 = vmatpush1.msra.mxu0 %v868
    %901 = vmatprep.subr.mxu0 0.0
    %902 = vmatpush1.msra.mxu0 %v867
    %903 = vmatprep.subr.mxu0 0.0
    %904 = vmatpush1.msra.mxu0 %v866
    %905 = vmatprep.subr.mxu0 0.0
    %906 = vmatpush1.msra.mxu0 %v865
    %907 = vmatprep.subr.mxu0 0.0
    %908 = vmatpush1.msra.mxu0 %v864
    %909 = vmatprep.subr.mxu0 0.0
    %910 = vmatpush1.msra.mxu0 %v863
    %911 = vmatprep.subr.mxu0 0.0
    %912 = vmatpush2.msra.mxu0 0.0
    %913 = vmatprep.subr.mxu0 0.0
    %914 = vmatpush2.msra.mxu0 0.0
    %915 = vmatprep.subr.mxu0 0.0
    %916 = vmatpush2.msra.mxu0 0.0
    %917 = vmatprep.subr.mxu0 0.0
    %918 = vmatpush2.msra.mxu0 0.0
    %919 = vmatprep.subr.mxu0 0.0
    %920 = vmatpush2.msra.mxu0 0.0
    %921 = vmatprep.subr.mxu0 0.0
    %922 = vmatpush2.msra.mxu0 0.0
    %923 = vmatprep.subr.mxu0 0.0
    %924 = vmatpush2.msra.mxu0 0.0
    %925 = vmatprep.subr.mxu0 0.0
    %926 = vmatpush2.msra.mxu0 0.0
    %927 = vmatprep.subr.mxu0 0.0
    %928 = vmatpush2.msra.mxu0 0.0
    %929 = vmatprep.subr.mxu0 0.0
    %930 = vmatpush2.msra.mxu0 0.0
    %931 = vmatprep.subr.mxu0 0.0
    %932 = vmatpush2.msra.mxu0 0.0
    %933 = vmatprep.subr.mxu0 0.0
    %934 = vmatpush2.msra.mxu0 0.0
    %935 = vmatprep.subr.mxu0 0.0
    %936 = vmatpush2.msra.mxu0 0.0
    %937 = vmatprep.subr.mxu0 0.0
    %938 = vmatpush2.msra.mxu0 0.0
    %939 = vmatprep.subr.mxu0 0.0
    %940 = vmatpush2.msra.mxu0 0.0
    %941 = vmatprep.subr.mxu0 0.0
    %942 = vmatpush2.msra.mxu0 0.0
    %943 = vmatprep.mubr.f32.mxu0 0.0
    %944 = vmatmul.mubr.f32.gmra.mxu0 %v856
    %v945 = vpop.f32.mrf.mxu0
    %v946 = vadd.f32 %v861, %v945
    %v947 = vpop.f32.mrf.mxu0
    %948 = vmatprep.mubr.f32.mxu0 0.0
    %949 = vmatmul.mubr.f32.gmra.mxu0 %v857
    %v950 = vpop.f32.mrf.mxu0
    %v951 = vadd.f32 %v862, %v950
    %v952 = vpop.f32.mrf.mxu0
    %953 = vdwg.mxu0
    %v954 = vxor.u32 %v946, 2147483648
    %v955 = vxor.u32 %v951, 2147483648
    %v956 = vmul.f32 %v954, 1.442695
    %v957 = vpow.pop %v956
    %v958 = vmul.f32 %v955, 1.442695
    %v959 = vpow.pop %v958
    %v960 = vadd.f32 %v957, 1.0
    %v961 = vadd.f32 %v959, 1.0
    %v962 = vrcp.pop %v960
    %v963 = vmul.f32 1.0, %v962
    %v964 = vrcp.pop %v961
    %v965 = vmul.f32 1.0, %v964
    %v966 = vtanh.pop %v946
    %v967 = vtanh.pop %v951
    %v968 = vadd.f32 %v852, %v966
    %v969 = vadd.f32 %v853, %v967
    %v970 = vmul.f32 %v963, %v968
    %v971 = vmul.f32 %v965, %v969
    %v972 = vtanh.pop %v970
    %v973 = vtanh.pop %v971
    %v974 = vmul.f32 %v963, %v972
    %v975 = vmul.f32 %v965, %v973
    %v976 = vadd.f32 %v974, %v975
    %v977 = vmul.f32 %v976, 0.5
    %978 = vst [vmem:[#allocation3 + $0x28] sm:$0xff] %v977
    %v979 = vld [vmem:[#allocation2 + $0x30] sm:$0xff]
    %v980 = vld [vmem:[#allocation2 + $0x8] sm:$0xff]
    %v981 = vld [vmem:[%s3] sm:$0xff]
    %v982 = vld [vmem:[%s3 + $0x8] sm:$0xff]
    %v983 = vld [vmem:[%s3 + $0x10] sm:$0xff]
    %v984 = vld [vmem:[%s3 + $0x18] sm:$0xff]
    %v985 = vld [vmem:[%s3 + $0x20] sm:$0xff]
    %v986 = vld [vmem:[%s3 + $0x28] sm:$0xff]
    %v987 = vld [vmem:[%s3 + $0x30] sm:$0xff]
    %v988 = vld [vmem:[%s3 + $0x38] sm:$0xff]
    %v989 = vld [vmem:[%s3 + $0x40] sm:$0xff]
    %v990 = vld [vmem:[%s3 + $0x48] sm:$0xff]
    %v991 = vld [vmem:[%s3 + $0x50] sm:$0xff]
    %v992 = vld [vmem:[%s3 + $0x58] sm:$0xff]
    %v993 = vld [vmem:[%s3 + $0x60] sm:$0xff]
    %v994 = vld [vmem:[%s3 + $0x68] sm:$0xff]
    %v995 = vld [vmem:[%s3 + $0x70] sm:$0xff]
    %v996 = vld [vmem:[%s3 + $0x78] sm:$0xff]
    %997 = vmatprep.subr.mxu0 0.0
    %998 = vmatpush1.msra.mxu0 %v996
    %999 = vmatprep.subr.mxu0 0.0
    %1000 = vmatpush1.msra.mxu0 %v995
    %1001 = vmatprep.subr.mxu0 0.0
    %1002 = vmatpush1.msra.mxu0 %v994
    %1003 = vmatprep.subr.mxu0 0.0
    %1004 = vmatpush1.msra.mxu0 %v993
    %1005 = vmatprep.subr.mxu0 0.0
    %1006 = vmatpush1.msra.mxu0 %v992
    %1007 = vmatprep.subr.mxu0 0.0
    %1008 = vmatpush1.msra.mxu0 %v991
    %1009 = vmatprep.subr.mxu0 0.0
    %1010 = vmatpush1.msra.mxu0 %v990
    %1011 = vmatprep.subr.mxu0 0.0
    %1012 = vmatpush1.msra.mxu0 %v989
    %1013 = vmatprep.subr.mxu0 0.0
    %1014 = vmatpush1.msra.mxu0 %v988
    %1015 = vmatprep.subr.mxu0 0.0
    %1016 = vmatpush1.msra.mxu0 %v987
    %1017 = vmatprep.subr.mxu0 0.0
    %1018 = vmatpush1.msra.mxu0 %v986
    %1019 = vmatprep.subr.mxu0 0.0
    %1020 = vmatpush1.msra.mxu0 %v985
    %1021 = vmatprep.subr.mxu0 0.0
    %1022 = vmatpush1.msra.mxu0 %v984
    %1023 = vmatprep.subr.mxu0 0.0
    %1024 = vmatpush1.msra.mxu0 %v983
    %1025 = vmatprep.subr.mxu0 0.0
    %1026 = vmatpush1.msra.mxu0 %v982
    %1027 = vmatprep.subr.mxu0 0.0
    %1028 = vmatpush1.msra.mxu0 %v981
    %1029 = vmatprep.subr.mxu0 0.0
    %1030 = vmatpush2.msra.mxu0 0.0
    %1031 = vmatprep.subr.mxu0 0.0
    %1032 = vmatpush2.msra.mxu0 0.0
    %1033 = vmatprep.subr.mxu0 0.0
    %1034 = vmatpush2.msra.mxu0 0.0
    %1035 = vmatprep.subr.mxu0 0.0
    %1036 = vmatpush2.msra.mxu0 0.0
    %1037 = vmatprep.subr.mxu0 0.0
    %1038 = vmatpush2.msra.mxu0 0.0
    %1039 = vmatprep.subr.mxu0 0.0
    %1040 = vmatpush2.msra.mxu0 0.0
    %1041 = vmatprep.subr.mxu0 0.0
    %1042 = vmatpush2.msra.mxu0 0.0
    %1043 = vmatprep.subr.mxu0 0.0
    %1044 = vmatpush2.msra.mxu0 0.0
    %1045 = vmatprep.subr.mxu0 0.0
    %1046 = vmatpush2.msra.mxu0 0.0
    %1047 = vmatprep.subr.mxu0 0.0
    %1048 = vmatpush2.msra.mxu0 0.0
    %1049 = vmatprep.subr.mxu0 0.0
    %1050 = vmatpush2.msra.mxu0 0.0
    %1051 = vmatprep.subr.mxu0 0.0
    %1052 = vmatpush2.msra.mxu0 0.0
    %1053 = vmatprep.subr.mxu0 0.0
    %1054 = vmatpush2.msra.mxu0 0.0
    %1055 = vmatprep.subr.mxu0 0.0
    %1056 = vmatpush2.msra.mxu0 0.0
    %1057 = vmatprep.subr.mxu0 0.0
    %1058 = vmatpush2.msra.mxu0 0.0
    %1059 = vmatprep.subr.mxu0 0.0
    %1060 = vmatpush2.msra.mxu0 0.0
    %1061 = vmatprep.mubr.f32.mxu0 0.0
    %1062 = vmatmul.mubr.f32.gmra.mxu0 %v974
    %v1063 = vpop.f32.mrf.mxu0
    %v1064 = vadd.f32 %v979, %v1063
    %v1065 = vpop.f32.mrf.mxu0
    %1066 = vmatprep.mubr.f32.mxu0 0.0
    %1067 = vmatmul.mubr.f32.gmra.mxu0 %v975
    %v1068 = vpop.f32.mrf.mxu0
    %v1069 = vadd.f32 %v980, %v1068
    %v1070 = vpop.f32.mrf.mxu0
    %1071 = vdwg.mxu0
    %v1072 = vxor.u32 %v1064, 2147483648
    %v1073 = vxor.u32 %v1069, 2147483648
    %v1074 = vmul.f32 %v1072, 1.442695
    %v1075 = vpow.pop %v1074
    %v1076 = vmul.f32 %v1073, 1.442695
    %v1077 = vpow.pop %v1076
    %v1078 = vadd.f32 %v1075, 1.0
    %v1079 = vadd.f32 %v1077, 1.0
    %v1080 = vrcp.pop %v1078
    %v1081 = vmul.f32 1.0, %v1080
    %v1082 = vrcp.pop %v1079
    %v1083 = vmul.f32 1.0, %v1082
    %v1084 = vtanh.pop %v1064
    %v1085 = vtanh.pop %v1069
    %v1086 = vadd.f32 %v970, %v1084
    %v1087 = vadd.f32 %v971, %v1085
    %v1088 = vmul.f32 %v1081, %v1086
    %v1089 = vmul.f32 %v1083, %v1087
    %v1090 = vtanh.pop %v1088
    %v1091 = vtanh.pop %v1089
    %v1092 = vmul.f32 %v1081, %v1090
    %v1093 = vmul.f32 %v1083, %v1091
    %v1094 = vadd.f32 %v1092, %v1093
    %v1095 = vmul.f32 %v1094, 0.5
    %1096 = vst [vmem:[#allocation3 + $0x30] sm:$0xff] %v1095
    %v1097 = vld [vmem:[#allocation2 + $0x38] sm:$0xff]
    %v1098 = vld [vmem:[#allocation2] sm:$0xff]
    %v1099 = vld [vmem:[%s3] sm:$0xff]
    %v1100 = vld [vmem:[%s3 + $0x8] sm:$0xff]
    %v1101 = vld [vmem:[%s3 + $0x10] sm:$0xff]
    %v1102 = vld [vmem:[%s3 + $0x18] sm:$0xff]
    %v1103 = vld [vmem:[%s3 + $0x20] sm:$0xff]
    %v1104 = vld [vmem:[%s3 + $0x28] sm:$0xff]
    %v1105 = vld [vmem:[%s3 + $0x30] sm:$0xff]
    %v1106 = vld [vmem:[%s3 + $0x38] sm:$0xff]
    %v1107 = vld [vmem:[%s3 + $0x40] sm:$0xff]
    %v1108 = vld [vmem:[%s3 + $0x48] sm:$0xff]
    %v1109 = vld [vmem:[%s3 + $0x50] sm:$0xff]
    %v1110 = vld [vmem:[%s3 + $0x58] sm:$0xff]
    %v1111 = vld [vmem:[%s3 + $0x60] sm:$0xff]
    %v1112 = vld [vmem:[%s3 + $0x68] sm:$0xff]
    %v1113 = vld [vmem:[%s3 + $0x70] sm:$0xff]
    %v1114 = vld [vmem:[%s3 + $0x78] sm:$0xff]
    %1115 = vmatprep.subr.mxu0 0.0
    %1116 = vmatpush1.msra.mxu0 %v1114
    %1117 = vmatprep.subr.mxu0 0.0
    %1118 = vmatpush1.msra.mxu0 %v1113
    %1119 = vmatprep.subr.mxu0 0.0
    %1120 = vmatpush1.msra.mxu0 %v1112
    %1121 = vmatprep.subr.mxu0 0.0
    %1122 = vmatpush1.msra.mxu0 %v1111
    %1123 = vmatprep.subr.mxu0 0.0
    %1124 = vmatpush1.msra.mxu0 %v1110
    %1125 = vmatprep.subr.mxu0 0.0
    %1126 = vmatpush1.msra.mxu0 %v1109
    %1127 = vmatprep.subr.mxu0 0.0
    %1128 = vmatpush1.msra.mxu0 %v1108
    %1129 = vmatprep.subr.mxu0 0.0
    %1130 = vmatpush1.msra.mxu0 %v1107
    %1131 = vmatprep.subr.mxu0 0.0
    %1132 = vmatpush1.msra.mxu0 %v1106
    %1133 = vmatprep.subr.mxu0 0.0
    %1134 = vmatpush1.msra.mxu0 %v1105
    %1135 = vmatprep.subr.mxu0 0.0
    %1136 = vmatpush1.msra.mxu0 %v1104
    %1137 = vmatprep.subr.mxu0 0.0
    %1138 = vmatpush1.msra.mxu0 %v1103
    %1139 = vmatprep.subr.mxu0 0.0
    %1140 = vmatpush1.msra.mxu0 %v1102
    %1141 = vmatprep.subr.mxu0 0.0
    %1142 = vmatpush1.msra.mxu0 %v1101
    %1143 = vmatprep.subr.mxu0 0.0
    %1144 = vmatpush1.msra.mxu0 %v1100
    %1145 = vmatprep.subr.mxu0 0.0
    %1146 = vmatpush1.msra.mxu0 %v1099
    %1147 = vmatprep.subr.mxu0 0.0
    %1148 = vmatpush2.msra.mxu0 0.0
    %1149 = vmatprep.subr.mxu0 0.0
    %1150 = vmatpush2.msra.mxu0 0.0
    %1151 = vmatprep.subr.mxu0 0.0
    %1152 = vmatpush2.msra.mxu0 0.0
    %1153 = vmatprep.subr.mxu0 0.0
    %1154 = vmatpush2.msra.mxu0 0.0
    %1155 = vmatprep.subr.mxu0 0.0
    %1156 = vmatpush2.msra.mxu0 0.0
    %1157 = vmatprep.subr.mxu0 0.0
    %1158 = vmatpush2.msra.mxu0 0.0
    %1159 = vmatprep.subr.mxu0 0.0
    %1160 = vmatpush2.msra.mxu0 0.0
    %1161 = vmatprep.subr.mxu0 0.0
    %1162 = vmatpush2.msra.mxu0 0.0
    %1163 = vmatprep.subr.mxu0 0.0
    %1164 = vmatpush2.msra.mxu0 0.0
    %1165 = vmatprep.subr.mxu0 0.0
    %1166 = vmatpush2.msra.mxu0 0.0
    %1167 = vmatprep.subr.mxu0 0.0
    %1168 = vmatpush2.msra.mxu0 0.0
    %1169 = vmatprep.subr.mxu0 0.0
    %1170 = vmatpush2.msra.mxu0 0.0
    %1171 = vmatprep.subr.mxu0 0.0
    %1172 = vmatpush2.msra.mxu0 0.0
    %1173 = vmatprep.subr.mxu0 0.0
    %1174 = vmatpush2.msra.mxu0 0.0
    %1175 = vmatprep.subr.mxu0 0.0
    %1176 = vmatpush2.msra.mxu0 0.0
    %1177 = vmatprep.subr.mxu0 0.0
    %1178 = vmatpush2.msra.mxu0 0.0
    %1179 = vmatprep.mubr.f32.mxu0 0.0
    %1180 = vmatmul.mubr.f32.gmra.mxu0 %v1092
    %v1181 = vpop.f32.mrf.mxu0
    %v1182 = vadd.f32 %v1097, %v1181
    %v1183 = vpop.f32.mrf.mxu0
    %1184 = vmatprep.mubr.f32.mxu0 0.0
    %1185 = vmatmul.mubr.f32.gmra.mxu0 %v1093
    %v1186 = vpop.f32.mrf.mxu0
    %v1187 = vadd.f32 %v1098, %v1186
    %v1188 = vpop.f32.mrf.mxu0
    %1189 = vdwg.mxu0
    %v1190 = vxor.u32 %v1182, 2147483648
    %v1191 = vxor.u32 %v1187, 2147483648
    %v1192 = vmul.f32 %v1190, 1.442695
    %v1193 = vpow.pop %v1192
    %v1194 = vmul.f32 %v1191, 1.442695
    %v1195 = vpow.pop %v1194
    %v1196 = vadd.f32 %v1193, 1.0
    %v1197 = vadd.f32 %v1195, 1.0
    %v1198 = vrcp.pop %v1196
    %v1199 = vmul.f32 1.0, %v1198
    %v1200 = vrcp.pop %v1197
    %v1201 = vmul.f32 1.0, %v1200
    %v1202 = vtanh.pop %v1182
    %v1203 = vtanh.pop %v1187
    %v1204 = vadd.f32 %v1088, %v1202
    %v1205 = vadd.f32 %v1089, %v1203
    %v1206 = vmul.f32 %v1199, %v1204
    %v1207 = vmul.f32 %v1201, %v1205
    %v1208 = vtanh.pop %v1206
    %v1209 = vtanh.pop %v1207
    %v1210 = vmul.f32 %v1199, %v1208
    %v1211 = vmul.f32 %v1201, %v1209
    %v1212 = vadd.f32 %v1210, %v1211
    %v1213 = vmul.f32 %v1212, 0.5
    %1214 = vst [vmem:[#allocation3 + $0x38] sm:$0xff] %v1213
    %v1215 = vld [vmem:[#allocation3] sm:$0xff]
    %v1216 = vld [vmem:[#allocation3 + $0x8] sm:$0xff]
    %v1217 = vld [vmem:[#allocation3 + $0x10] sm:$0xff]
    %v1218 = vld [vmem:[#allocation3 + $0x18] sm:$0xff]
    %v1219 = vld [vmem:[#allocation3 + $0x20] sm:$0xff]
    %v1220 = vld [vmem:[#allocation3 + $0x28] sm:$0xff]
    %v1221 = vld [vmem:[#allocation3 + $0x30] sm:$0xff]
    %v1222 = vld [vmem:[#allocation3 + $0x38] sm:$0xff]
    %v1223 = vld [vmem:[%s3] sm:$0xff]
    %v1224 = vld [vmem:[%s3 + $0x8] sm:$0xff]
    %v1225 = vld [vmem:[%s3 + $0x10] sm:$0xff]
    %v1226 = vld [vmem:[%s3 + $0x18] sm:$0xff]
    %v1227 = vld [vmem:[%s3 + $0x20] sm:$0xff]
    %v1228 = vld [vmem:[%s3 + $0x28] sm:$0xff]
    %v1229 = vld [vmem:[%s3 + $0x30] sm:$0xff]
    %v1230 = vld [vmem:[%s3 + $0x38] sm:$0xff]
    %v1231 = vld [vmem:[%s3 + $0x40] sm:$0xff]
    %v1232 = vld [vmem:[%s3 + $0x48] sm:$0xff]
    %v1233 = vld [vmem:[%s3 + $0x50] sm:$0xff]
    %v1234 = vld [vmem:[%s3 + $0x58] sm:$0xff]
    %v1235 = vld [vmem:[%s3 + $0x60] sm:$0xff]
    %v1236 = vld [vmem:[%s3 + $0x68] sm:$0xff]
    %v1237 = vld [vmem:[%s3 + $0x70] sm:$0xff]
    %v1238 = vld [vmem:[%s3 + $0x78] sm:$0xff]
    %1239 = vmatprep.subr.mxu0 0.0
    %1240 = vmatpush1.msra.mxu0 %v1238
    %1241 = vmatprep.subr.mxu0 0.0
    %1242 = vmatpush1.msra.mxu0 %v1237
    %1243 = vmatprep.subr.mxu0 0.0
    %1244 = vmatpush1.msra.mxu0 %v1236
    %1245 = vmatprep.subr.mxu0 0.0
    %1246 = vmatpush1.msra.mxu0 %v1235
    %1247 = vmatprep.subr.mxu0 0.0
    %1248 = vmatpush1.msra.mxu0 %v1234
    %1249 = vmatprep.subr.mxu0 0.0
    %1250 = vmatpush1.msra.mxu0 %v1233
    %1251 = vmatprep.subr.mxu0 0.0
    %1252 = vmatpush1.msra.mxu0 %v1232
    %1253 = vmatprep.subr.mxu0 0.0
    %1254 = vmatpush1.msra.mxu0 %v1231
    %1255 = vmatprep.subr.mxu0 0.0
    %1256 = vmatpush1.msra.mxu0 %v1230
    %1257 = vmatprep.subr.mxu0 0.0
    %1258 = vmatpush1.msra.mxu0 %v1229
    %1259 = vmatprep.subr.mxu0 0.0
    %1260 = vmatpush1.msra.mxu0 %v1228
    %1261 = vmatprep.subr.mxu0 0.0
    %1262 = vmatpush1.msra.mxu0 %v1227
    %1263 = vmatprep.subr.mxu0 0.0
    %1264 = vmatpush1.msra.mxu0 %v1226
    %1265 = vmatprep.subr.mxu0 0.0
    %1266 = vmatpush1.msra.mxu0 %v1225
    %1267 = vmatprep.subr.mxu0 0.0
    %1268 = vmatpush1.msra.mxu0 %v1224
    %1269 = vmatprep.subr.mxu0 0.0
    %1270 = vmatpush1.msra.mxu0 %v1223
    %1271 = vmatprep.subr.mxu0 0.0
    %1272 = vmatpush2.msra.mxu0 0.0
    %1273 = vmatprep.subr.mxu0 0.0
    %1274 = vmatpush2.msra.mxu0 0.0
    %1275 = vmatprep.subr.mxu0 0.0
    %1276 = vmatpush2.msra.mxu0 0.0
    %1277 = vmatprep.subr.mxu0 0.0
    %1278 = vmatpush2.msra.mxu0 0.0
    %1279 = vmatprep.subr.mxu0 0.0
    %1280 = vmatpush2.msra.mxu0 0.0
    %1281 = vmatprep.subr.mxu0 0.0
    %1282 = vmatpush2.msra.mxu0 0.0
    %1283 = vmatprep.subr.mxu0 0.0
    %1284 = vmatpush2.msra.mxu0 0.0
    %1285 = vmatprep.subr.mxu0 0.0
    %1286 = vmatpush2.msra.mxu0 0.0
    %1287 = vmatprep.subr.mxu0 0.0
    %1288 = vmatpush2.msra.mxu0 0.0
    %1289 = vmatprep.subr.mxu0 0.0
    %1290 = vmatpush2.msra.mxu0 0.0
    %1291 = vmatprep.subr.mxu0 0.0
    %1292 = vmatpush2.msra.mxu0 0.0
    %1293 = vmatprep.subr.mxu0 0.0
    %1294 = vmatpush2.msra.mxu0 0.0
    %1295 = vmatprep.subr.mxu0 0.0
    %1296 = vmatpush2.msra.mxu0 0.0
    %1297 = vmatprep.subr.mxu0 0.0
    %1298 = vmatpush2.msra.mxu0 0.0
    %1299 = vmatprep.subr.mxu0 0.0
    %1300 = vmatpush2.msra.mxu0 0.0
    %1301 = vmatprep.subr.mxu0 0.0
    %1302 = vmatpush2.msra.mxu0 0.0
    %1303 = vmatprep.mubr.f32.mxu0 0.0
    %1304 = vmatmul.mubr.f32.gmra.mxu0 %v1215
    %v1305 = vpop.f32.mrf.mxu0
    %v1306 = vadd.f32 0.0, %v1305
    %v1307 = vpop.f32.mrf.mxu0
    %1308 = vmatprep.mubr.f32.mxu0 0.0
    %1309 = vmatmul.mubr.f32.gmra.mxu0 %v1216
    %v1310 = vpop.f32.mrf.mxu0
    %v1311 = vadd.f32 0.0, %v1310
    %v1312 = vpop.f32.mrf.mxu0
    %1313 = vmatprep.mubr.f32.mxu0 0.0
    %1314 = vmatmul.mubr.f32.gmra.mxu0 %v1217
    %v1315 = vpop.f32.mrf.mxu0
    %v1316 = vadd.f32 0.0, %v1315
    %v1317 = vpop.f32.mrf.mxu0
    %1318 = vmatprep.mubr.f32.mxu0 0.0
    %1319 = vmatmul.mubr.f32.gmra.mxu0 %v1218
    %v1320 = vpop.f32.mrf.mxu0
    %v1321 = vadd.f32 0.0, %v1320
    %v1322 = vpop.f32.mrf.mxu0
    %1323 = vmatprep.mubr.f32.mxu0 0.0
    %1324 = vmatmul.mubr.f32.gmra.mxu0 %v1219
    %v1325 = vpop.f32.mrf.mxu0
    %v1326 = vadd.f32 0.0, %v1325
    %v1327 = vpop.f32.mrf.mxu0
    %1328 = vmatprep.mubr.f32.mxu0 0.0
    %1329 = vmatmul.mubr.f32.gmra.mxu0 %v1220
    %v1330 = vpop.f32.mrf.mxu0
    %v1331 = vadd.f32 0.0, %v1330
    %v1332 = vpop.f32.mrf.mxu0
    %1333 = vmatprep.mubr.f32.mxu0 0.0
    %1334 = vmatmul.mubr.f32.gmra.mxu0 %v1221
    %v1335 = vpop.f32.mrf.mxu0
    %v1336 = vadd.f32 0.0, %v1335
    %v1337 = vpop.f32.mrf.mxu0
    %1338 = vmatprep.mubr.f32.mxu0 0.0
    %1339 = vmatmul.mubr.f32.gmra.mxu0 %v1222
    %v1340 = vpop.f32.mrf.mxu0
    %v1341 = vadd.f32 0.0, %v1340
    %v1342 = vpop.f32.mrf.mxu0
    %1343 = vdwg.mxu0
    %1344 = vst [vmem:[#allocation4] sm:$0xff] %v1306
    %1345 = vst [vmem:[#allocation4 + $0x8] sm:$0xff] %v1311
    %1346 = vst [vmem:[#allocation4 + $0x10] sm:$0xff] %v1316
    %1347 = vst [vmem:[#allocation4 + $0x18] sm:$0xff] %v1321
    %1348 = vst [vmem:[#allocation4 + $0x20] sm:$0xff] %v1326
    %1349 = vst [vmem:[#allocation4 + $0x28] sm:$0xff] %v1331
    %1350 = vst [vmem:[#allocation4 + $0x30] sm:$0xff] %v1336
    %1351 = vst [vmem:[#allocation4 + $0x38] sm:$0xff] %v1341
    %v1352 = vld [vmem:[#allocation3] sm:$0xff]
    %v1353 = vld [vmem:[#allocation3 + $0x8] sm:$0xff]
    %v1354 = vld [vmem:[#allocation3 + $0x10] sm:$0xff]
    %v1355 = vld [vmem:[#allocation3 + $0x18] sm:$0xff]
    %v1356 = vld [vmem:[#allocation3 + $0x20] sm:$0xff]
    %v1357 = vld [vmem:[#allocation3 + $0x28] sm:$0xff]
    %v1358 = vld [vmem:[#allocation3 + $0x30] sm:$0xff]
    %v1359 = vld [vmem:[#allocation3 + $0x38] sm:$0xff]
    %v1360 = vld [vmem:[#allocation4] sm:$0xff]
    %v1361 = vld [vmem:[#allocation4 + $0x8] sm:$0xff]
    %v1362 = vld [vmem:[#allocation4 + $0x10] sm:$0xff]
    %v1363 = vld [vmem:[#allocation4 + $0x18] sm:$0xff]
    %v1364 = vld [vmem:[#allocation4 + $0x20] sm:$0xff]
    %v1365 = vld [vmem:[#allocation4 + $0x28] sm:$0xff]
    %v1366 = vld [vmem:[#allocation4 + $0x30] sm:$0xff]
    %v1367 = vld [vmem:[#allocation4 + $0x38] sm:$0xff]
    %v1368 = vld [vmem:[#allocation2] sm:$0xff]
    %v1369 = vld [vmem:[%s3] sm:$0xff]
    %v1370 = vld [vmem:[%s3 + $0x8] sm:$0xff]
    %v1371 = vld [vmem:[%s3 + $0x10] sm:$0xff]
    %v1372 = vld [vmem:[%s3 + $0x18] sm:$0xff]
    %v1373 = vld [vmem:[%s3 + $0x20] sm:$0xff]
    %v1374 = vld [vmem:[%s3 + $0x28] sm:$0xff]
    %v1375 = vld [vmem:[%s3 + $0x30] sm:$0xff]
    %v1376 = vld [vmem:[%s3 + $0x38] sm:$0xff]
    %v1377 = vld [vmem:[%s3 + $0x40] sm:$0xff]
    %v1378 = vld [vmem:[%s3 + $0x48] sm:$0xff]
    %v1379 = vld [vmem:[%s3 + $0x50] sm:$0xff]
    %v1380 = vld [vmem:[%s3 + $0x58] sm:$0xff]
    %v1381 = vld [vmem:[%s3 + $0x60] sm:$0xff]
    %v1382 = vld [vmem:[%s3 + $0x68] sm:$0xff]
    %v1383 = vld [vmem:[%s3 + $0x70] sm:$0xff]
    %v1384 = vld [vmem:[%s3 + $0x78] sm:$0xff]
    %v1385 = vmul.f32 %v1352, %v1211
    %v1386 = vmul.f32 %v1353, %v1211
    %v1387 = vmul.f32 %v1354, %v1211
    %v1388 = vmul.f32 %v1355, %v1211
    %v1389 = vmul.f32 %v1356, %v1211
    %v1390 = vmul.f32 %v1357, %v1211
    %v1391 = vmul.f32 %v1358, %v1211
    %v1392 = vmul.f32 %v1359, %v1211
    %1393 = vadd.xlane.f32.xlu0 %v1385
    %v1394 = vpop.xlane.xlu0 %1393
    %1395 = vadd.xlane.f32.xlu0 %v1386
    %v1396 = vpop.xlane.xlu0 %1395
    %1397 = vadd.xlane.f32.xlu0 %v1387
    %v1398 = vpop.xlane.xlu0 %1397
    %1399 = vadd.xlane.f32.xlu0 %v1388
    %v1400 = vpop.xlane.xlu0 %1399
    %1401 = vadd.xlane.f32.xlu0 %v1389
    %v1402 = vpop.xlane.xlu0 %1401
    %1403 = vadd.xlane.f32.xlu0 %v1390
    %v1404 = vpop.xlane.xlu0 %1403
    %1405 = vadd.xlane.f32.xlu0 %v1391
    %v1406 = vpop.xlane.xlu0 %1405
    %1407 = vadd.xlane.f32.xlu0 %v1392
    %v1408 = vpop.xlane.xlu0 %1407
    %v1409 = vrot.slane %v1394, 4
    %v1410 = vadd.f32 %v1394, %v1409
    %v1411 = vrot.slane %v1410, 2
    %v1412 = vadd.f32 %v1410, %v1411
    %v1413 = vrot.slane %v1412, 1
    %v1414 = vadd.f32 %v1412, %v1413
    %v1415 = vrot.slane %v1396, 4
    %v1416 = vadd.f32 %v1396, %v1415
    %v1417 = vrot.slane %v1416, 2
    %v1418 = vadd.f32 %v1416, %v1417
    %v1419 = vrot.slane %v1418, 1
    %v1420 = vadd.f32 %v1418, %v1419
    %v1421 = vrot.slane %v1398, 4
    %v1422 = vadd.f32 %v1398, %v1421
    %v1423 = vrot.slane %v1422, 2
    %v1424 = vadd.f32 %v1422, %v1423
    %v1425 = vrot.slane %v1424, 1
    %v1426 = vadd.f32 %v1424, %v1425
    %v1427 = vrot.slane %v1400, 4
    %v1428 = vadd.f32 %v1400, %v1427
    %v1429 = vrot.slane %v1428, 2
    %v1430 = vadd.f32 %v1428, %v1429
    %v1431 = vrot.slane %v1430, 1
    %v1432 = vadd.f32 %v1430, %v1431
    %v1433 = vrot.slane %v1402, 4
    %v1434 = vadd.f32 %v1402, %v1433
    %v1435 = vrot.slane %v1434, 2
    %v1436 = vadd.f32 %v1434, %v1435
    %v1437 = vrot.slane %v1436, 1
    %v1438 = vadd.f32 %v1436, %v1437
    %v1439 = vrot.slane %v1404, 4
    %v1440 = vadd.f32 %v1404, %v1439
    %v1441 = vrot.slane %v1440, 2
    %v1442 = vadd.f32 %v1440, %v1441
    %v1443 = vrot.slane %v1442, 1
    %v1444 = vadd.f32 %v1442, %v1443
    %v1445 = vrot.slane %v1406, 4
    %v1446 = vadd.f32 %v1406, %v1445
    %v1447 = vrot.slane %v1446, 2
    %v1448 = vadd.f32 %v1446, %v1447
    %v1449 = vrot.slane %v1448, 1
    %v1450 = vadd.f32 %v1448, %v1449
    %v1451 = vrot.slane %v1408, 4
    %v1452 = vadd.f32 %v1408, %v1451
    %v1453 = vrot.slane %v1452, 2
    %v1454 = vadd.f32 %v1452, %v1453
    %v1455 = vrot.slane %v1454, 1
    %v1456 = vadd.f32 %v1454, %v1455
    %v1457 = vmax.f32 %v1414, %v1438
    %v1458 = vmax.f32 %v1420, %v1444
    %v1459 = vmax.f32 %v1426, %v1450
    %v1460 = vmax.f32 %v1432, %v1456
    %v1461 = vmax.f32 %v1457, %v1458
    %v1462 = vmax.f32 %v1459, %v1460
    %v1463 = vmax.f32 %v1461, %v1462
    %v1464 = vsub.f32 %v1414, %v1463
    %v1465 = vsub.f32 %v1420, %v1463
    %v1466 = vsub.f32 %v1426, %v1463
    %v1467 = vsub.f32 %v1432, %v1463
    %v1468 = vsub.f32 %v1438, %v1463
    %v1469 = vsub.f32 %v1444, %v1463
    %v1470 = vsub.f32 %v1450, %v1463
    %v1471 = vsub.f32 %v1456, %v1463
    %v1472 = vmul.f32 %v1464, 1.442695
    %v1473 = vpow.pop %v1472
    %v1474 = vmul.f32 %v1465, 1.442695
    %v1475 = vpow.pop %v1474
    %v1476 = vmul.f32 %v1466, 1.442695
    %v1477 = vpow.pop %v1476
    %v1478 = vmul.f32 %v1467, 1.442695
    %v1479 = vpow.pop %v1478
    %v1480 = vmul.f32 %v1468, 1.442695
    %v1481 = vpow.pop %v1480
    %v1482 = vmul.f32 %v1469, 1.442695
    %v1483 = vpow.pop %v1482
    %v1484 = vmul.f32 %v1470, 1.442695
    %v1485 = vpow.pop %v1484
    %v1486 = vmul.f32 %v1471, 1.442695
    %v1487 = vpow.pop %v1486
    %v1488 = vadd.f32 %v1473, %v1475
    %v1489 = vadd.f32 %v1488, %v1477
    %v1490 = vadd.f32 %v1489, %v1479
    %v1491 = vadd.f32 %v1490, %v1481
    %v1492 = vadd.f32 %v1491, %v1483
    %v1493 = vadd.f32 %v1492, %v1485
    %v1494 = vadd.f32 %v1493, %v1487
    %v1495 = vrcp.pop %v1494
    %v1496 = vmul.f32 %v1473, %v1495
    %v1497 = vmul.f32 %v1475, %v1495
    %v1498 = vmul.f32 %v1477, %v1495
    %v1499 = vmul.f32 %v1479, %v1495
    %v1500 = vmul.f32 %v1481, %v1495
    %v1501 = vmul.f32 %v1483, %v1495
    %v1502 = vmul.f32 %v1485, %v1495
    %v1503 = vmul.f32 %v1487, %v1495
    %v1504 = vmul.f32 %v1360, %v1496
    %v1505 = vmul.f32 %v1361, %v1497
    %v1506 = vmul.f32 %v1362, %v1498
    %v1507 = vmul.f32 %v1363, %v1499
    %v1508 = vmul.f32 %v1364, %v1500
    %v1509 = vmul.f32 %v1365, %v1501
    %v1510 = vmul.f32 %v1366, %v1502
    %v1511 = vmul.f32 %v1367, %v1503
    %v1512 = vadd.f32 %v1504, %v1505
    %v1513 = vadd.f32 %v1512, %v1506
    %v1514 = vadd.f32 %v1513, %v1507
    %v1515 = vadd.f32 %v1514, %v1508
    %v1516 = vadd.f32 %v1515, %v1509
    %v1517 = vadd.f32 %v1516, %v1510
    %v1518 = vadd.f32 %v1517, %v1511
    %1519 = vmatprep.subr.mxu0 0.0
    %1520 = vmatpush1.msra.mxu0 %v1384
    %1521 = vmatprep.subr.mxu0 0.0
    %1522 = vmatpush1.msra.mxu0 %v1383
    %1523 = vmatprep.subr.mxu0 0.0
    %1524 = vmatpush1.msra.mxu0 %v1382
    %1525 = vmatprep.subr.mxu0 0.0
    %1526 = vmatpush1.msra.mxu0 %v1381
    %1527 = vmatprep.subr.mxu0 0.0
    %1528 = vmatpush1.msra.mxu0 %v1380
    %1529 = vmatprep.subr.mxu0 0.0
    %1530 = vmatpush1.msra.mxu0 %v1379
    %1531 = vmatprep.subr.mxu0 0.0
    %1532 = vmatpush1.msra.mxu0 %v1378
    %1533 = vmatprep.subr.mxu0 0.0
    %1534 = vmatpush1.msra.mxu0 %v1377
    %1535 = vmatprep.subr.mxu0 0.0
    %1536 = vmatpush1.msra.mxu0 %v1376
    %1537 = vmatprep.subr.mxu0 0.0
    %1538 = vmatpush1.msra.mxu0 %v1375
    %1539 = vmatprep.subr.mxu0 0.0
    %1540 = vmatpush1.msra.mxu0 %v1374
    %1541 = vmatprep.subr.mxu0 0.0
    %1542 = vmatpush1.msra.mxu0 %v1373
    %1543 = vmatprep.subr.mxu0 0.0
    %1544 = vmatpush1.msra.mxu0 %v1372
    %1545 = vmatprep.subr.mxu0 0.0
    %1546 = vmatpush1.msra.mxu0 %v1371
    %1547 = vmatprep.subr.mxu0 0.0
    %1548 = vmatpush1.msra.mxu0 %v1370
    %1549 = vmatprep.subr.mxu0 0.0
    %1550 = vmatpush1.msra.mxu0 %v1369
    %1551 = vmatprep.subr.mxu0 0.0
    %1552 = vmatpush2.msra.mxu0 0.0
    %1553 = vmatprep.subr.mxu0 0.0
    %1554 = vmatpush2.msra.mxu0 0.0
    %1555 = vmatprep.subr.mxu0 0.0
    %1556 = vmatpush2.msra.mxu0 0.0
    %1557 = vmatprep.subr.mxu0 0.0
    %1558 = vmatpush2.msra.mxu0 0.0
    %1559 = vmatprep.subr.mxu0 0.0
    %1560 = vmatpush2.msra.mxu0 0.0
    %1561 = vmatprep.subr.mxu0 0.0
    %1562 = vmatpush2.msra.mxu0 0.0
    %1563 = vmatprep.subr.mxu0 0.0
    %1564 = vmatpush2.msra.mxu0 0.0
    %1565 = vmatprep.subr.mxu0 0.0
    %1566 = vmatpush2.msra.mxu0 0.0
    %1567 = vmatprep.subr.mxu0 0.0
    %1568 = vmatpush2.msra.mxu0 0.0
    %1569 = vmatprep.subr.mxu0 0.0
    %1570 = vmatpush2.msra.mxu0 0.0
    %1571 = vmatprep.subr.mxu0 0.0
    %1572 = vmatpush2.msra.mxu0 0.0
    %1573 = vmatprep.subr.mxu0 0.0
    %1574 = vmatpush2.msra.mxu0 0.0
    %1575 = vmatprep.subr.mxu0 0.0
    %1576 = vmatpush2.msra.mxu0 0.0
    %1577 = vmatprep.subr.mxu0 0.0
    %1578 = vmatpush2.msra.mxu0 0.0
    %1579 = vmatprep.subr.mxu0 0.0
    %1580 = vmatpush2.msra.mxu0 0.0
    %1581 = vmatprep.subr.mxu0 0.0
    %1582 = vmatpush2.msra.mxu0 0.0
    %1583 = vmatprep.mubr.f32.mxu0 0.0
    %1584 = vmatmul.mubr.f32.gmra.mxu0 %v1211
    %v1585 = vpop.f32.mrf.mxu0
    %v1586 = vadd.f32 %v1518, %v1585
    %v1587 = vpop.f32.mrf.mxu0
    %1588 = vdwg.mxu0
    %v1589 = vadd.f32 %v1586, %v1368
    %v1590 = vxor.u32 %v1589, 2147483648
    %v1591 = vmul.f32 %v1590, 1.442695
    %v1592 = vpow.pop %v1591
    %v1593 = vadd.f32 %v1592, 1.0
    %v1594 = vrcp.pop %v1593
    %v1595 = vmul.f32 1.0, %v1594
    %v1596 = vtanh.pop %v1589
    %v1597 = vadd.f32 %v1207, %v1596
    %v1598 = vmul.f32 %v1595, %v1597
    %v1599 = vtanh.pop %v1598
    %v1600 = vmul.f32 %v1595, %v1599
    %1601 = vst [vmem:[#allocation5] sm:$0xff] %v1600
    %v1602 = vld [vmem:[#allocation2 + $0x8] sm:$0xff]
    %v1603 = vld [vmem:[%s3] sm:$0xff]
    %v1604 = vld [vmem:[%s3 + $0x8] sm:$0xff]
    %v1605 = vld [vmem:[%s3 + $0x10] sm:$0xff]
    %v1606 = vld [vmem:[%s3 + $0x18] sm:$0xff]
    %v1607 = vld [vmem:[%s3 + $0x20] sm:$0xff]
    %v1608 = vld [vmem:[%s3 + $0x28] sm:$0xff]
    %v1609 = vld [vmem:[%s3 + $0x30] sm:$0xff]
    %v1610 = vld [vmem:[%s3 + $0x38] sm:$0xff]
    %v1611 = vld [vmem:[%s3 + $0x40] sm:$0xff]
    %v1612 = vld [vmem:[%s3 + $0x48] sm:$0xff]
    %v1613 = vld [vmem:[%s3 + $0x50] sm:$0xff]
    %v1614 = vld [vmem:[%s3 + $0x58] sm:$0xff]
    %v1615 = vld [vmem:[%s3 + $0x60] sm:$0xff]
    %v1616 = vld [vmem:[%s3 + $0x68] sm:$0xff]
    %v1617 = vld [vmem:[%s3 + $0x70] sm:$0xff]
    %v1618 = vld [vmem:[%s3 + $0x78] sm:$0xff]
    %v1619 = vmul.f32 %v1352, %v1600
    %v1620 = vmul.f32 %v1353, %v1600
    %v1621 = vmul.f32 %v1354, %v1600
    %v1622 = vmul.f32 %v1355, %v1600
    %v1623 = vmul.f32 %v1356, %v1600
    %v1624 = vmul.f32 %v1357, %v1600
    %v1625 = vmul.f32 %v1358, %v1600
    %v1626 = vmul.f32 %v1359, %v1600
    %1627 = vadd.xlane.f32.xlu0 %v1619
    %v1628 = vpop.xlane.xlu0 %1627
    %1629 = vadd.xlane.f32.xlu0 %v1620
    %v1630 = vpop.xlane.xlu0 %1629
    %1631 = vadd.xlane.f32.xlu0 %v1621
    %v1632 = vpop.xlane.xlu0 %1631
    %1633 = vadd.xlane.f32.xlu0 %v1622
    %v1634 = vpop.xlane.xlu0 %1633
    %1635 = vadd.xlane.f32.xlu0 %v1623
    %v1636 = vpop.xlane.xlu0 %1635
    %1637 = vadd.xlane.f32.xlu0 %v1624
    %v1638 = vpop.xlane.xlu0 %1637
    %1639 = vadd.xlane.f32.xlu0 %v1625
    %v1640 = vpop.xlane.xlu0 %1639
    %1641 = vadd.xlane.f32.xlu0 %v1626
    %v1642 = vpop.xlane.xlu0 %1641
    %v1643 = vrot.slane %v1628, 4
    %v1644 = vadd.f32 %v1628, %v1643
    %v1645 = vrot.slane %v1644, 2
    %v1646 = vadd.f32 %v1644, %v1645
    %v1647 = vrot.slane %v1646, 1
    %v1648 = vadd.f32 %v1646, %v1647
    %v1649 = vrot.slane %v1630, 4
    %v1650 = vadd.f32 %v1630, %v1649
    %v1651 = vrot.slane %v1650, 2
    %v1652 = vadd.f32 %v1650, %v1651
    %v1653 = vrot.slane %v1652, 1
    %v1654 = vadd.f32 %v1652, %v1653
    %v1655 = vrot.slane %v1632, 4
    %v1656 = vadd.f32 %v1632, %v1655
    %v1657 = vrot.slane %v1656, 2
    %v1658 = vadd.f32 %v1656, %v1657
    %v1659 = vrot.slane %v1658, 1
    %v1660 = vadd.f32 %v1658, %v1659
    %v1661 = vrot.slane %v1634, 4
    %v1662 = vadd.f32 %v1634, %v1661
    %v1663 = vrot.slane %v1662, 2
    %v1664 = vadd.f32 %v1662, %v1663
    %v1665 = vrot.slane %v1664, 1
    %v1666 = vadd.f32 %v1664, %v1665
    %v1667 = vrot.slane %v1636, 4
    %v1668 = vadd.f32 %v1636, %v1667
    %v1669 = vrot.slane %v1668, 2
    %v1670 = vadd.f32 %v1668, %v1669
    %v1671 = vrot.slane %v1670, 1
    %v1672 = vadd.f32 %v1670, %v1671
    %v1673 = vrot.slane %v1638, 4
    %v1674 = vadd.f32 %v1638, %v1673
    %v1675 = vrot.slane %v1674, 2
    %v1676 = vadd.f32 %v1674, %v1675
    %v1677 = vrot.slane %v1676, 1
    %v1678 = vadd.f32 %v1676, %v1677
    %v1679 = vrot.slane %v1640, 4
    %v1680 = vadd.f32 %v1640, %v1679
    %v1681 = vrot.slane %v1680, 2
    %v1682 = vadd.f32 %v1680, %v1681
    %v1683 = vrot.slane %v1682, 1
    %v1684 = vadd.f32 %v1682, %v1683
    %v1685 = vrot.slane %v1642, 4
    %v1686 = vadd.f32 %v1642, %v1685
    %v1687 = vrot.slane %v1686, 2
    %v1688 = vadd.f32 %v1686, %v1687
    %v1689 = vrot.slane %v1688, 1
    %v1690 = vadd.f32 %v1688, %v1689
    %v1691 = vmax.f32 %v1648, %v1672
    %v1692 = vmax.f32 %v1654, %v1678
    %v1693 = vmax.f32 %v1660, %v1684
    %v1694 = vmax.f32 %v1666, %v1690
    %v1695 = vmax.f32 %v1691, %v1692
    %v1696 = vmax.f32 %v1693, %v1694
    %v1697 = vmax.f32 %v1695, %v1696
    %v1698 = vsub.f32 %v1648, %v1697
    %v1699 = vsub.f32 %v1654, %v1697
    %v1700 = vsub.f32 %v1660, %v1697
    %v1701 = vsub.f32 %v1666, %v1697
    %v1702 = vsub.f32 %v1672, %v1697
    %v1703 = vsub.f32 %v1678, %v1697
    %v1704 = vsub.f32 %v1684, %v1697
    %v1705 = vsub.f32 %v1690, %v1697
    %v1706 = vmul.f32 %v1698, 1.442695
    %v1707 = vpow.pop %v1706
    %v1708 = vmul.f32 %v1699, 1.442695
    %v1709 = vpow.pop %v1708
    %v1710 = vmul.f32 %v1700, 1.442695
    %v1711 = vpow.pop %v1710
    %v1712 = vmul.f32 %v1701, 1.442695
    %v1713 = vpow.pop %v1712
    %v1714 = vmul.f32 %v1702, 1.442695
    %v1715 = vpow.pop %v1714
    %v1716 = vmul.f32 %v1703, 1.442695
    %v1717 = vpow.pop %v1716
    %v1718 = vmul.f32 %v1704, 1.442695
    %v1719 = vpow.pop %v1718
    %v1720 = vmul.f32 %v1705, 1.442695
    %v1721 = vpow.pop %v1720
    %v1722 = vadd.f32 %v1707, %v1709
    %v1723 = vadd.f32 %v1722, %v1711
    %v1724 = vadd.f32 %v1723, %v1713
    %v1725 = vadd.f32 %v1724, %v1715
    %v1726 = vadd.f32 %v1725, %v1717
    %v1727 = vadd.f32 %v1726, %v1719
    %v1728 = vadd.f32 %v1727, %v1721
    %v1729 = vrcp.pop %v1728
    %v1730 = vmul.f32 %v1707, %v1729
    %v1731 = vmul.f32 %v1709, %v1729
    %v1732 = vmul.f32 %v1711, %v1729
    %v1733 = vmul.f32 %v1713, %v1729
    %v1734 = vmul.f32 %v1715, %v1729
    %v1735 = vmul.f32 %v1717, %v1729
    %v1736 = vmul.f32 %v1719, %v1729
    %v1737 = vmul.f32 %v1721, %v1729
    %v1738 = vmul.f32 %v1360, %v1730
    %v1739 = vmul.f32 %v1361, %v1731
    %v1740 = vmul.f32 %v1362, %v1732
    %v1741 = vmul.f32 %v1363, %v1733
    %v1742 = vmul.f32 %v1364, %v1734
    %v1743 = vmul.f32 %v1365, %v1735
    %v1744 = vmul.f32 %v1366, %v1736
    %v1745 = vmul.f32 %v1367, %v1737
    %v1746 = vadd.f32 %v1738, %v1739
    %v1747 = vadd.f32 %v1746, %v1740
    %v1748 = vadd.f32 %v1747, %v1741
    %v1749 = vadd.f32 %v1748, %v1742
    %v1750 = vadd.f32 %v1749, %v1743
    %v1751 = vadd.f32 %v1750, %v1744
    %v1752 = vadd.f32 %v1751, %v1745
    %1753 = vmatprep.subr.mxu0 0.0
    %1754 = vmatpush1.msra.mxu0 %v1618
    %1755 = vmatprep.subr.mxu0 0.0
    %1756 = vmatpush1.msra.mxu0 %v1617
    %1757 = vmatprep.subr.mxu0 0.0
    %1758 = vmatpush1.msra.mxu0 %v1616
    %1759 = vmatprep.subr.mxu0 0.0
    %1760 = vmatpush1.msra.mxu0 %v1615
    %1761 = vmatprep.subr.mxu0 0.0
    %1762 = vmatpush1.msra.mxu0 %v1614
    %1763 = vmatprep.subr.mxu0 0.0
    %1764 = vmatpush1.msra.mxu0 %v1613
    %1765 = vmatprep.subr.mxu0 0.0
    %1766 = vmatpush1.msra.mxu0 %v1612
    %1767 = vmatprep.subr.mxu0 0.0
    %1768 = vmatpush1.msra.mxu0 %v1611
    %1769 = vmatprep.subr.mxu0 0.0
    %1770 = vmatpush1.msra.mxu0 %v1610
    %1771 = vmatprep.subr.mxu0 0.0
    %1772 = vmatpush1.msra.mxu0 %v1609
    %1773 = vmatprep.subr.mxu0 0.0
    %1774 = vmatpush1.msra.mxu0 %v1608
    %1775 = vmatprep.subr.mxu0 0.0
    %1776 = vmatpush1.msra.mxu0 %v1607
    %1777 = vmatprep.subr.mxu0 0.0
    %1778 = vmatpush1.msra.mxu0 %v1606
    %1779 = vmatprep.subr.mxu0 0.0
    %1780 = vmatpush1.msra.mxu0 %v1605
    %1781 = vmatprep.subr.mxu0 0.0
    %1782 = vmatpush1.msra.mxu0 %v1604
    %1783 = vmatprep.subr.mxu0 0.0
    %1784 = vmatpush1.msra.mxu0 %v1603
    %1785 = vmatprep.subr.mxu0 0.0
    %1786 = vmatpush2.msra.mxu0 0.0
    %1787 = vmatprep.subr.mxu0 0.0
    %1788 = vmatpush2.msra.mxu0 0.0
    %1789 = vmatprep.subr.mxu0 0.0
    %1790 = vmatpush2.msra.mxu0 0.0
    %1791 = vmatprep.subr.mxu0 0.0
    %1792 = vmatpush2.msra.mxu0 0.0
    %1793 = vmatprep.subr.mxu0 0.0
    %1794 = vmatpush2.msra.mxu0 0.0
    %1795 = vmatprep.subr.mxu0 0.0
    %1796 = vmatpush2.msra.mxu0 0.0
    %1797 = vmatprep.subr.mxu0 0.0
    %1798 = vmatpush2.msra.mxu0 0.0
    %1799 = vmatprep.subr.mxu0 0.0
    %1800 = vmatpush2.msra.mxu0 0.0
    %1801 = vmatprep.subr.mxu0 0.0
    %1802 = vmatpush2.msra.mxu0 0.0
    %1803 = vmatprep.subr.mxu0 0.0
    %1804 = vmatpush2.msra.mxu0 0.0
    %1805 = vmatprep.subr.mxu0 0.0
    %1806 = vmatpush2.msra.mxu0 0.0
    %1807 = vmatprep.subr.mxu0 0.0
    %1808 = vmatpush2.msra.mxu0 0.0
    %1809 = vmatprep.subr.mxu0 0.0
    %1810 = vmatpush2.msra.mxu0 0.0
    %1811 = vmatprep.subr.mxu0 0.0
    %1812 = vmatpush2.msra.mxu0 0.0
    %1813 = vmatprep.subr.mxu0 0.0
    %1814 = vmatpush2.msra.mxu0 0.0
    %1815 = vmatprep.subr.mxu0 0.0
    %1816 = vmatpush2.msra.mxu0 0.0
    %1817 = vmatprep.mubr.f32.mxu0 0.0
    %1818 = vmatmul.mubr.f32.gmra.mxu0 %v1600
    %v1819 = vpop.f32.mrf.mxu0
    %v1820 = vadd.f32 %v1752, %v1819
    %v1821 = vpop.f32.mrf.mxu0
    %1822 = vdwg.mxu0
    %v1823 = vadd.f32 %v1820, %v1602
    %v1824 = vxor.u32 %v1823, 2147483648
    %v1825 = vmul.f32 %v1824, 1.442695
    %v1826 = vpow.pop %v1825
    %v1827 = vadd.f32 %v1826, 1.0
    %v1828 = vrcp.pop %v1827
    %v1829 = vmul.f32 1.0, %v1828
    %v1830 = vtanh.pop %v1823
    %v1831 = vadd.f32 %v1598, %v1830
    %v1832 = vmul.f32 %v1829, %v1831
    %v1833 = vtanh.pop %v1832
    %v1834 = vmul.f32 %v1829, %v1833
    %1835 = vst [vmem:[#allocation5 + $0x8] sm:$0xff] %v1834
    %v1836 = vld [vmem:[#allocation2 + $0x10] sm:$0xff]
    %v1837 = vld [vmem:[%s3] sm:$0xff]
    %v1838 = vld [vmem:[%s3 + $0x8] sm:$0xff]
    %v1839 = vld [vmem:[%s3 + $0x10] sm:$0xff]
    %v1840 = vld [vmem:[%s3 + $0x18] sm:$0xff]
    %v1841 = vld [vmem:[%s3 + $0x20] sm:$0xff]
    %v1842 = vld [vmem:[%s3 + $0x28] sm:$0xff]
    %v1843 = vld [vmem:[%s3 + $0x30] sm:$0xff]
    %v1844 = vld [vmem:[%s3 + $0x38] sm:$0xff]
    %v1845 = vld [vmem:[%s3 + $0x40] sm:$0xff]
    %v1846 = vld [vmem:[%s3 + $0x48] sm:$0xff]
    %v1847 = vld [vmem:[%s3 + $0x50] sm:$0xff]
    %v1848 = vld [vmem:[%s3 + $0x58] sm:$0xff]
    %v1849 = vld [vmem:[%s3 + $0x60] sm:$0xff]
    %v1850 = vld [vmem:[%s3 + $0x68] sm:$0xff]
    %v1851 = vld [vmem:[%s3 + $0x70] sm:$0xff]
    %v1852 = vld [vmem:[%s3 + $0x78] sm:$0xff]
    %v1853 = vmul.f32 %v1352, %v1834
    %v1854 = vmul.f32 %v1353, %v1834
    %v1855 = vmul.f32 %v1354, %v1834
    %v1856 = vmul.f32 %v1355, %v1834
    %v1857 = vmul.f32 %v1356, %v1834
    %v1858 = vmul.f32 %v1357, %v1834
    %v1859 = vmul.f32 %v1358, %v1834
    %v1860 = vmul.f32 %v1359, %v1834
    %1861 = vadd.xlane.f32.xlu0 %v1853
    %v1862 = vpop.xlane.xlu0 %1861
    %1863 = vadd.xlane.f32.xlu0 %v1854
    %v1864 = vpop.xlane.xlu0 %1863
    %1865 = vadd.xlane.f32.xlu0 %v1855
    %v1866 = vpop.xlane.xlu0 %1865
    %1867 = vadd.xlane.f32.xlu0 %v1856
    %v1868 = vpop.xlane.xlu0 %1867
    %1869 = vadd.xlane.f32.xlu0 %v1857
    %v1870 = vpop.xlane.xlu0 %1869
    %1871 = vadd.xlane.f32.xlu0 %v1858
    %v1872 = vpop.xlane.xlu0 %1871
    %1873 = vadd.xlane.f32.xlu0 %v1859
    %v1874 = vpop.xlane.xlu0 %1873
    %1875 = vadd.xlane.f32.xlu0 %v1860
    %v1876 = vpop.xlane.xlu0 %1875
    %v1877 = vrot.slane %v1862, 4
    %v1878 = vadd.f32 %v1862, %v1877
    %v1879 = vrot.slane %v1878, 2
    %v1880 = vadd.f32 %v1878, %v1879
    %v1881 = vrot.slane %v1880, 1
    %v1882 = vadd.f32 %v1880, %v1881
    %v1883 = vrot.slane %v1864, 4
    %v1884 = vadd.f32 %v1864, %v1883
    %v1885 = vrot.slane %v1884, 2
    %v1886 = vadd.f32 %v1884, %v1885
    %v1887 = vrot.slane %v1886, 1
    %v1888 = vadd.f32 %v1886, %v1887
    %v1889 = vrot.slane %v1866, 4
    %v1890 = vadd.f32 %v1866, %v1889
    %v1891 = vrot.slane %v1890, 2
    %v1892 = vadd.f32 %v1890, %v1891
    %v1893 = vrot.slane %v1892, 1
    %v1894 = vadd.f32 %v1892, %v1893
    %v1895 = vrot.slane %v1868, 4
    %v1896 = vadd.f32 %v1868, %v1895
    %v1897 = vrot.slane %v1896, 2
    %v1898 = vadd.f32 %v1896, %v1897
    %v1899 = vrot.slane %v1898, 1
    %v1900 = vadd.f32 %v1898, %v1899
    %v1901 = vrot.slane %v1870, 4
    %v1902 = vadd.f32 %v1870, %v1901
    %v1903 = vrot.slane %v1902, 2
    %v1904 = vadd.f32 %v1902, %v1903
    %v1905 = vrot.slane %v1904, 1
    %v1906 = vadd.f32 %v1904, %v1905
    %v1907 = vrot.slane %v1872, 4
    %v1908 = vadd.f32 %v1872, %v1907
    %v1909 = vrot.slane %v1908, 2
    %v1910 = vadd.f32 %v1908, %v1909
    %v1911 = vrot.slane %v1910, 1
    %v1912 = vadd.f32 %v1910, %v1911
    %v1913 = vrot.slane %v1874, 4
    %v1914 = vadd.f32 %v1874, %v1913
    %v1915 = vrot.slane %v1914, 2
    %v1916 = vadd.f32 %v1914, %v1915
    %v1917 = vrot.slane %v1916, 1
    %v1918 = vadd.f32 %v1916, %v1917
    %v1919 = vrot.slane %v1876, 4
    %v1920 = vadd.f32 %v1876, %v1919
    %v1921 = vrot.slane %v1920, 2
    %v1922 = vadd.f32 %v1920, %v1921
    %v1923 = vrot.slane %v1922, 1
    %v1924 = vadd.f32 %v1922, %v1923
    %v1925 = vmax.f32 %v1882, %v1906
    %v1926 = vmax.f32 %v1888, %v1912
    %v1927 = vmax.f32 %v1894, %v1918
    %v1928 = vmax.f32 %v1900, %v1924
    %v1929 = vmax.f32 %v1925, %v1926
    %v1930 = vmax.f32 %v1927, %v1928
    %v1931 = vmax.f32 %v1929, %v1930
    %v1932 = vsub.f32 %v1882, %v1931
    %v1933 = vsub.f32 %v1888, %v1931
    %v1934 = vsub.f32 %v1894, %v1931
    %v1935 = vsub.f32 %v1900, %v1931
    %v1936 = vsub.f32 %v1906, %v1931
    %v1937 = vsub.f32 %v1912, %v1931
    %v1938 = vsub.f32 %v1918, %v1931
    %v1939 = vsub.f32 %v1924, %v1931
    %v1940 = vmul.f32 %v1932, 1.442695
    %v1941 = vpow.pop %v1940
    %v1942 = vmul.f32 %v1933, 1.442695
    %v1943 = vpow.pop %v1942
    %v1944 = vmul.f32 %v1934, 1.442695
    %v1945 = vpow.pop %v1944
    %v1946 = vmul.f32 %v1935, 1.442695
    %v1947 = vpow.pop %v1946
    %v1948 = vmul.f32 %v1936, 1.442695
    %v1949 = vpow.pop %v1948
    %v1950 = vmul.f32 %v1937, 1.442695
    %v1951 = vpow.pop %v1950
    %v1952 = vmul.f32 %v1938, 1.442695
    %v1953 = vpow.pop %v1952
    %v1954 = vmul.f32 %v1939, 1.442695
    %v1955 = vpow.pop %v1954
    %v1956 = vadd.f32 %v1941, %v1943
    %v1957 = vadd.f32 %v1956, %v1945
    %v1958 = vadd.f32 %v1957, %v1947
    %v1959 = vadd.f32 %v1958, %v1949
    %v1960 = vadd.f32 %v1959, %v1951
    %v1961 = vadd.f32 %v1960, %v1953
    %v1962 = vadd.f32 %v1961, %v1955
    %v1963 = vrcp.pop %v1962
    %v1964 = vmul.f32 %v1941, %v1963
    %v1965 = vmul.f32 %v1943, %v1963
    %v1966 = vmul.f32 %v1945, %v1963
    %v1967 = vmul.f32 %v1947, %v1963
    %v1968 = vmul.f32 %v1949, %v1963
    %v1969 = vmul.f32 %v1951, %v1963
    %v1970 = vmul.f32 %v1953, %v1963
    %v1971 = vmul.f32 %v1955, %v1963
    %v1972 = vmul.f32 %v1360, %v1964
    %v1973 = vmul.f32 %v1361, %v1965
    %v1974 = vmul.f32 %v1362, %v1966
    %v1975 = vmul.f32 %v1363, %v1967
    %v1976 = vmul.f32 %v1364, %v1968
    %v1977 = vmul.f32 %v1365, %v1969
    %v1978 = vmul.f32 %v1366, %v1970
    %v1979 = vmul.f32 %v1367, %v1971
    %v1980 = vadd.f32 %v1972, %v1973
    %v1981 = vadd.f32 %v1980, %v1974
    %v1982 = vadd.f32 %v1981, %v1975
    %v1983 = vadd.f32 %v1982, %v1976
    %v1984 = vadd.f32 %v1983, %v1977
    %v1985 = vadd.f32 %v1984, %v1978
    %v1986 = vadd.f32 %v1985, %v1979
    %1987 = vmatprep.subr.mxu0 0.0
    %1988 = vmatpush1.msra.mxu0 %v1852
    %1989 = vmatprep.subr.mxu0 0.0
    %1990 = vmatpush1.msra.mxu0 %v1851
    %1991 = vmatprep.subr.mxu0 0.0
    %1992 = vmatpush1.msra.mxu0 %v1850
    %1993 = vmatprep.subr.mxu0 0.0
    %1994 = vmatpush1.msra.mxu0 %v1849
    %1995 = vmatprep.subr.mxu0 0.0
    %1996 = vmatpush1.msra.mxu0 %v1848
    %1997 = vmatprep.subr.mxu0 0.0
    %1998 = vmatpush1.msra.mxu0 %v1847
    %1999 = vmatprep.subr.mxu0 0.0
    %2000 = vmatpush1.msra.mxu0 %v1846
    %2001 = vmatprep.subr.mxu0 0.0
    %2002 = vmatpush1.msra.mxu0 %v1845
    %2003 = vmatprep.subr.mxu0 0.0
    %2004 = vmatpush1.msra.mxu0 %v1844
    %2005 = vmatprep.subr.mxu0 0.0
    %2006 = vmatpush1.msra.mxu0 %v1843
    %2007 = vmatprep.subr.mxu0 0.0
    %2008 = vmatpush1.msra.mxu0 %v1842
    %2009 = vmatprep.subr.mxu0 0.0
    %2010 = vmatpush1.msra.mxu0 %v1841
    %2011 = vmatprep.subr.mxu0 0.0
    %2012 = vmatpush1.msra.mxu0 %v1840
    %2013 = vmatprep.subr.mxu0 0.0
    %2014 = vmatpush1.msra.mxu0 %v1839
    %2015 = vmatprep.subr.mxu0 0.0
    %2016 = vmatpush1.msra.mxu0 %v1838
    %2017 = vmatprep.subr.mxu0 0.0
    %2018 = vmatpush1.msra.mxu0 %v1837
    %2019 = vmatprep.subr.mxu0 0.0
    %2020 = vmatpush2.msra.mxu0 0.0
    %2021 = vmatprep.subr.mxu0 0.0
    %2022 = vmatpush2.msra.mxu0 0.0
    %2023 = vmatprep.subr.mxu0 0.0
    %2024 = vmatpush2.msra.mxu0 0.0
    %2025 = vmatprep.subr.mxu0 0.0
    %2026 = vmatpush2.msra.mxu0 0.0
    %2027 = vmatprep.subr.mxu0 0.0
    %2028 = vmatpush2.msra.mxu0 0.0
    %2029 = vmatprep.subr.mxu0 0.0
    %2030 = vmatpush2.msra.mxu0 0.0
    %2031 = vmatprep.subr.mxu0 0.0
    %2032 = vmatpush2.msra.mxu0 0.0
    %2033 = vmatprep.subr.mxu0 0.0
    %2034 = vmatpush2.msra.mxu0 0.0
    %2035 = vmatprep.subr.mxu0 0.0
    %2036 = vmatpush2.msra.mxu0 0.0
    %2037 = vmatprep.subr.mxu0 0.0
    %2038 = vmatpush2.msra.mxu0 0.0
    %2039 = vmatprep.subr.mxu0 0.0
    %2040 = vmatpush2.msra.mxu0 0.0
    %2041 = vmatprep.subr.mxu0 0.0
    %2042 = vmatpush2.msra.mxu0 0.0
    %2043 = vmatprep.subr.mxu0 0.0
    %2044 = vmatpush2.msra.mxu0 0.0
    %2045 = vmatprep.subr.mxu0 0.0
    %2046 = vmatpush2.msra.mxu0 0.0
    %2047 = vmatprep.subr.mxu0 0.0
    %2048 = vmatpush2.msra.mxu0 0.0
    %2049 = vmatprep.subr.mxu0 0.0
    %2050 = vmatpush2.msra.mxu0 0.0
    %2051 = vmatprep.mubr.f32.mxu0 0.0
    %2052 = vmatmul.mubr.f32.gmra.mxu0 %v1834
    %v2053 = vpop.f32.mrf.mxu0
    %v2054 = vadd.f32 %v1986, %v2053
    %v2055 = vpop.f32.mrf.mxu0
    %2056 = vdwg.mxu0
    %v2057 = vadd.f32 %v2054, %v1836
    %v2058 = vxor.u32 %v2057, 2147483648
    %v2059 = vmul.f32 %v2058, 1.442695
    %v2060 = vpow.pop %v2059
    %v2061 = vadd.f32 %v2060, 1.0
    %v2062 = vrcp.pop %v2061
    %v2063 = vmul.f32 1.0, %v2062
    %v2064 = vtanh.pop %v2057
    %v2065 = vadd.f32 %v1832, %v2064
    %v2066 = vmul.f32 %v2063, %v2065
    %v2067 = vtanh.pop %v2066
    %v2068 = vmul.f32 %v2063, %v2067
    %2069 = vst [vmem:[#allocation5 + $0x10] sm:$0xff] %v2068
    %v2070 = vld [vmem:[#allocation2 + $0x18] sm:$0xff]
    %v2071 = vld [vmem:[%s3] sm:$0xff]
    %v2072 = vld [vmem:[%s3 + $0x8] sm:$0xff]
    %v2073 = vld [vmem:[%s3 + $0x10] sm:$0xff]
    %v2074 = vld [vmem:[%s3 + $0x18] sm:$0xff]
    %v2075 = vld [vmem:[%s3 + $0x20] sm:$0xff]
    %v2076 = vld [vmem:[%s3 + $0x28] sm:$0xff]
    %v2077 = vld [vmem:[%s3 + $0x30] sm:$0xff]
    %v2078 = vld [vmem:[%s3 + $0x38] sm:$0xff]
    %v2079 = vld [vmem:[%s3 + $0x40] sm:$0xff]
    %v2080 = vld [vmem:[%s3 + $0x48] sm:$0xff]
    %v2081 = vld [vmem:[%s3 + $0x50] sm:$0xff]
    %v2082 = vld [vmem:[%s3 + $0x58] sm:$0xff]
    %v2083 = vld [vmem:[%s3 + $0x60] sm:$0xff]
    %v2084 = vld [vmem:[%s3 + $0x68] sm:$0xff]
    %v2085 = vld [vmem:[%s3 + $0x70] sm:$0xff]
    %v2086 = vld [vmem:[%s3 + $0x78] sm:$0xff]
    %v2087 = vmul.f32 %v1352, %v2068
    %v2088 = vmul.f32 %v1353, %v2068
    %v2089 = vmul.f32 %v1354, %v2068
    %v2090 = vmul.f32 %v1355, %v2068
    %v2091 = vmul.f32 %v1356, %v2068
    %v2092 = vmul.f32 %v1357, %v2068
    %v2093 = vmul.f32 %v1358, %v2068
    %v2094 = vmul.f32 %v1359, %v2068
    %2095 = vadd.xlane.f32.xlu0 %v2087
    %v2096 = vpop.xlane.xlu0 %2095
    %2097 = vadd.xlane.f32.xlu0 %v2088
    %v2098 = vpop.xlane.xlu0 %2097
    %2099 = vadd.xlane.f32.xlu0 %v2089
    %v2100 = vpop.xlane.xlu0 %2099
    %2101 = vadd.xlane.f32.xlu0 %v2090
    %v2102 = vpop.xlane.xlu0 %2101
    %2103 = vadd.xlane.f32.xlu0 %v2091
    %v2104 = vpop.xlane.xlu0 %2103
    %2105 = vadd.xlane.f32.xlu0 %v2092
    %v2106 = vpop.xlane.xlu0 %2105
    %2107 = vadd.xlane.f32.xlu0 %v2093
    %v2108 = vpop.xlane.xlu0 %2107
    %2109 = vadd.xlane.f32.xlu0 %v2094
    %v2110 = vpop.xlane.xlu0 %2109
    %v2111 = vrot.slane %v2096, 4
    %v2112 = vadd.f32 %v2096, %v2111
    %v2113 = vrot.slane %v2112, 2
    %v2114 = vadd.f32 %v2112, %v2113
    %v2115 = vrot.slane %v2114, 1
    %v2116 = vadd.f32 %v2114, %v2115
    %v2117 = vrot.slane %v2098, 4
    %v2118 = vadd.f32 %v2098, %v2117
    %v2119 = vrot.slane %v2118, 2
    %v2120 = vadd.f32 %v2118, %v2119
    %v2121 = vrot.slane %v2120, 1
    %v2122 = vadd.f32 %v2120, %v2121
    %v2123 = vrot.slane %v2100, 4
    %v2124 = vadd.f32 %v2100, %v2123
    %v2125 = vrot.slane %v2124, 2
    %v2126 = vadd.f32 %v2124, %v2125
    %v2127 = vrot.slane %v2126, 1
    %v2128 = vadd.f32 %v2126, %v2127
    %v2129 = vrot.slane %v2102, 4
    %v2130 = vadd.f32 %v2102, %v2129
    %v2131 = vrot.slane %v2130, 2
    %v2132 = vadd.f32 %v2130, %v2131
    %v2133 = vrot.slane %v2132, 1
    %v2134 = vadd.f32 %v2132, %v2133
    %v2135 = vrot.slane %v2104, 4
    %v2136 = vadd.f32 %v2104, %v2135
    %v2137 = vrot.slane %v2136, 2
    %v2138 = vadd.f32 %v2136, %v2137
    %v2139 = vrot.slane %v2138, 1
    %v2140 = vadd.f32 %v2138, %v2139
    %v2141 = vrot.slane %v2106, 4
    %v2142 = vadd.f32 %v2106, %v2141
    %v2143 = vrot.slane %v2142, 2
    %v2144 = vadd.f32 %v2142, %v2143
    %v2145 = vrot.slane %v2144, 1
    %v2146 = vadd.f32 %v2144, %v2145
    %v2147 = vrot.slane %v2108, 4
    %v2148 = vadd.f32 %v2108, %v2147
    %v2149 = vrot.slane %v2148, 2
    %v2150 = vadd.f32 %v2148, %v2149
    %v2151 = vrot.slane %v2150, 1
    %v2152 = vadd.f32 %v2150, %v2151
    %v2153 = vrot.slane %v2110, 4
    %v2154 = vadd.f32 %v2110, %v2153
    %v2155 = vrot.slane %v2154, 2
    %v2156 = vadd.f32 %v2154, %v2155
    %v2157 = vrot.slane %v2156, 1
    %v2158 = vadd.f32 %v2156, %v2157
    %v2159 = vmax.f32 %v2116, %v2140
    %v2160 = vmax.f32 %v2122, %v2146
    %v2161 = vmax.f32 %v2128, %v2152
    %v2162 = vmax.f32 %v2134, %v2158
    %v2163 = vmax.f32 %v2159, %v2160
    %v2164 = vmax.f32 %v2161, %v2162
    %v2165 = vmax.f32 %v2163, %v2164
    %v2166 = vsub.f32 %v2116, %v2165
    %v2167 = vsub.f32 %v2122, %v2165
    %v2168 = vsub.f32 %v2128, %v2165
    %v2169 = vsub.f32 %v2134, %v2165
    %v2170 = vsub.f32 %v2140, %v2165
    %v2171 = vsub.f32 %v2146, %v2165
    %v2172 = vsub.f32 %v2152, %v2165
    %v2173 = vsub.f32 %v2158, %v2165
    %v2174 = vmul.f32 %v2166, 1.442695
    %v2175 = vpow.pop %v2174
    %v2176 = vmul.f32 %v2167, 1.442695
    %v2177 = vpow.pop %v2176
    %v2178 = vmul.f32 %v2168, 1.442695
    %v2179 = vpow.pop %v2178
    %v2180 = vmul.f32 %v2169, 1.442695
    %v2181 = vpow.pop %v2180
    %v2182 = vmul.f32 %v2170, 1.442695
    %v2183 = vpow.pop %v2182
    %v2184 = vmul.f32 %v2171, 1.442695
    %v2185 = vpow.pop %v2184
    %v2186 = vmul.f32 %v2172, 1.442695
    %v2187 = vpow.pop %v2186
    %v2188 = vmul.f32 %v2173, 1.442695
    %v2189 = vpow.pop %v2188
    %v2190 = vadd.f32 %v2175, %v2177
    %v2191 = vadd.f32 %v2190, %v2179
    %v2192 = vadd.f32 %v2191, %v2181
    %v2193 = vadd.f32 %v2192, %v2183
    %v2194 = vadd.f32 %v2193, %v2185
    %v2195 = vadd.f32 %v2194, %v2187
    %v2196 = vadd.f32 %v2195, %v2189
    %v2197 = vrcp.pop %v2196
    %v2198 = vmul.f32 %v2175, %v2197
    %v2199 = vmul.f32 %v2177, %v2197
    %v2200 = vmul.f32 %v2179, %v2197
    %v2201 = vmul.f32 %v2181, %v2197
    %v2202 = vmul.f32 %v2183, %v2197
    %v2203 = vmul.f32 %v2185, %v2197
    %v2204 = vmul.f32 %v2187, %v2197
    %v2205 = vmul.f32 %v2189, %v2197
    %v2206 = vmul.f32 %v1360, %v2198
    %v2207 = vmul.f32 %v1361, %v2199
    %v2208 = vmul.f32 %v1362, %v2200
    %v2209 = vmul.f32 %v1363, %v2201
    %v2210 = vmul.f32 %v1364, %v2202
    %v2211 = vmul.f32 %v1365, %v2203
    %v2212 = vmul.f32 %v1366, %v2204
    %v2213 = vmul.f32 %v1367, %v2205
    %v2214 = vadd.f32 %v2206, %v2207
    %v2215 = vadd.f32 %v2214, %v2208
    %v2216 = vadd.f32 %v2215, %v2209
    %v2217 = vadd.f32 %v2216, %v2210
    %v2218 = vadd.f32 %v2217, %v2211
    %v2219 = vadd.f32 %v2218, %v2212
    %v2220 = vadd.f32 %v2219, %v2213
    %2221 = vmatprep.subr.mxu0 0.0
    %2222 = vmatpush1.msra.mxu0 %v2086
    %2223 = vmatprep.subr.mxu0 0.0
    %2224 = vmatpush1.msra.mxu0 %v2085
    %2225 = vmatprep.subr.mxu0 0.0
    %2226 = vmatpush1.msra.mxu0 %v2084
    %2227 = vmatprep.subr.mxu0 0.0
    %2228 = vmatpush1.msra.mxu0 %v2083
    %2229 = vmatprep.subr.mxu0 0.0
    %2230 = vmatpush1.msra.mxu0 %v2082
    %2231 = vmatprep.subr.mxu0 0.0
    %2232 = vmatpush1.msra.mxu0 %v2081
    %2233 = vmatprep.subr.mxu0 0.0
    %2234 = vmatpush1.msra.mxu0 %v2080
    %2235 = vmatprep.subr.mxu0 0.0
    %2236 = vmatpush1.msra.mxu0 %v2079
    %2237 = vmatprep.subr.mxu0 0.0
    %2238 = vmatpush1.msra.mxu0 %v2078
    %2239 = vmatprep.subr.mxu0 0.0
    %2240 = vmatpush1.msra.mxu0 %v2077
    %2241 = vmatprep.subr.mxu0 0.0
    %2242 = vmatpush1.msra.mxu0 %v2076
    %2243 = vmatprep.subr.mxu0 0.0
    %2244 = vmatpush1.msra.mxu0 %v2075
    %2245 = vmatprep.subr.mxu0 0.0
    %2246 = vmatpush1.msra.mxu0 %v2074
    %2247 = vmatprep.subr.mxu0 0.0
    %2248 = vmatpush1.msra.mxu0 %v2073
    %2249 = vmatprep.subr.mxu0 0.0
    %2250 = vmatpush1.msra.mxu0 %v2072
    %2251 = vmatprep.subr.mxu0 0.0
    %2252 = vmatpush1.msra.mxu0 %v2071
    %2253 = vmatprep.subr.mxu0 0.0
    %2254 = vmatpush2.msra.mxu0 0.0
    %2255 = vmatprep.subr.mxu0 0.0
    %2256 = vmatpush2.msra.mxu0 0.0
    %2257 = vmatprep.subr.mxu0 0.0
    %2258 = vmatpush2.msra.mxu0 0.0
    %2259 = vmatprep.subr.mxu0 0.0
    %2260 = vmatpush2.msra.mxu0 0.0
    %2261 = vmatprep.subr.mxu0 0.0
    %2262 = vmatpush2.msra.mxu0 0.0
    %2263 = vmatprep.subr.mxu0 0.0
    %2264 = vmatpush2.msra.mxu0 0.0
    %2265 = vmatprep.subr.mxu0 0.0
    %2266 = vmatpush2.msra.mxu0 0.0
    %2267 = vmatprep.subr.mxu0 0.0
    %2268 = vmatpush2.msra.mxu0 0.0
    %2269 = vmatprep.subr.mxu0 0.0
    %2270 = vmatpush2.msra.mxu0 0.0
    %2271 = vmatprep.subr.mxu0 0.0
    %2272 = vmatpush2.msra.mxu0 0.0
    %2273 = vmatprep.subr.mxu0 0.0
    %2274 = vmatpush2.msra.mxu0 0.0
    %2275 = vmatprep.subr.mxu0 0.0
    %2276 = vmatpush2.msra.mxu0 0.0
    %2277 = vmatprep.subr.mxu0 0.0
    %2278 = vmatpush2.msra.mxu0 0.0
    %2279 = vmatprep.subr.mxu0 0.0
    %2280 = vmatpush2.msra.mxu0 0.0
    %2281 = vmatprep.subr.mxu0 0.0
    %2282 = vmatpush2.msra.mxu0 0.0
    %2283 = vmatprep.subr.mxu0 0.0
    %2284 = vmatpush2.msra.mxu0 0.0
    %2285 = vmatprep.mubr.f32.mxu0 0.0
    %2286 = vmatmul.mubr.f32.gmra.mxu0 %v2068
    %v2287 = vpop.f32.mrf.mxu0
    %v2288 = vadd.f32 %v2220, %v2287
    %v2289 = vpop.f32.mrf.mxu0
    %2290 = vdwg.mxu0
    %v2291 = vadd.f32 %v2288, %v2070
    %v2292 = vxor.u32 %v2291, 2147483648
    %v2293 = vmul.f32 %v2292, 1.442695
    %v2294 = vpow.pop %v2293
    %v2295 = vadd.f32 %v2294, 1.0
    %v2296 = vrcp.pop %v2295
    %v2297 = vmul.f32 1.0, %v2296
    %v2298 = vtanh.pop %v2291
    %v2299 = vadd.f32 %v2066, %v2298
    %v2300 = vmul.f32 %v2297, %v2299
    %v2301 = vtanh.pop %v2300
    %v2302 = vmul.f32 %v2297, %v2301
    %2303 = vst [vmem:[#allocation5 + $0x18] sm:$0xff] %v2302
    %v2304 = vld [vmem:[#allocation2 + $0x20] sm:$0xff]
    %v2305 = vld [vmem:[%s3] sm:$0xff]
    %v2306 = vld [vmem:[%s3 + $0x8] sm:$0xff]
    %v2307 = vld [vmem:[%s3 + $0x10] sm:$0xff]
    %v2308 = vld [vmem:[%s3 + $0x18] sm:$0xff]
    %v2309 = vld [vmem:[%s3 + $0x20] sm:$0xff]
    %v2310 = vld [vmem:[%s3 + $0x28] sm:$0xff]
    %v2311 = vld [vmem:[%s3 + $0x30] sm:$0xff]
    %v2312 = vld [vmem:[%s3 + $0x38] sm:$0xff]
    %v2313 = vld [vmem:[%s3 + $0x40] sm:$0xff]
    %v2314 = vld [vmem:[%s3 + $0x48] sm:$0xff]
    %v2315 = vld [vmem:[%s3 + $0x50] sm:$0xff]
    %v2316 = vld [vmem:[%s3 + $0x58] sm:$0xff]
    %v2317 = vld [vmem:[%s3 + $0x60] sm:$0xff]
    %v2318 = vld [vmem:[%s3 + $0x68] sm:$0xff]
    %v2319 = vld [vmem:[%s3 + $0x70] sm:$0xff]
    %v2320 = vld [vmem:[%s3 + $0x78] sm:$0xff]
    %v2321 = vmul.f32 %v1352, %v2302
    %v2322 = vmul.f32 %v1353, %v2302
    %v2323 = vmul.f32 %v1354, %v2302
    %v2324 = vmul.f32 %v1355, %v2302
    %v2325 = vmul.f32 %v1356, %v2302
    %v2326 = vmul.f32 %v1357, %v2302
    %v2327 = vmul.f32 %v1358, %v2302
    %v2328 = vmul.f32 %v1359, %v2302
    %2329 = vadd.xlane.f32.xlu0 %v2321
    %v2330 = vpop.xlane.xlu0 %2329
    %2331 = vadd.xlane.f32.xlu0 %v2322
    %v2332 = vpop.xlane.xlu0 %2331
    %2333 = vadd.xlane.f32.xlu0 %v2323
    %v2334 = vpop.xlane.xlu0 %2333
    %2335 = vadd.xlane.f32.xlu0 %v2324
    %v2336 = vpop.xlane.xlu0 %2335
    %2337 = vadd.xlane.f32.xlu0 %v2325
    %v2338 = vpop.xlane.xlu0 %2337
    %2339 = vadd.xlane.f32.xlu0 %v2326
    %v2340 = vpop.xlane.xlu0 %2339
    %2341 = vadd.xlane.f32.xlu0 %v2327
    %v2342 = vpop.xlane.xlu0 %2341
    %2343 = vadd.xlane.f32.xlu0 %v2328
    %v2344 = vpop.xlane.xlu0 %2343
    %v2345 = vrot.slane %v2330, 4
    %v2346 = vadd.f32 %v2330, %v2345
    %v2347 = vrot.slane %v2346, 2
    %v2348 = vadd.f32 %v2346, %v2347
    %v2349 = vrot.slane %v2348, 1
    %v2350 = vadd.f32 %v2348, %v2349
    %v2351 = vrot.slane %v2332, 4
    %v2352 = vadd.f32 %v2332, %v2351
    %v2353 = vrot.slane %v2352, 2
    %v2354 = vadd.f32 %v2352, %v2353
    %v2355 = vrot.slane %v2354, 1
    %v2356 = vadd.f32 %v2354, %v2355
    %v2357 = vrot.slane %v2334, 4
    %v2358 = vadd.f32 %v2334, %v2357
    %v2359 = vrot.slane %v2358, 2
    %v2360 = vadd.f32 %v2358, %v2359
    %v2361 = vrot.slane %v2360, 1
    %v2362 = vadd.f32 %v2360, %v2361
    %v2363 = vrot.slane %v2336, 4
    %v2364 = vadd.f32 %v2336, %v2363
    %v2365 = vrot.slane %v2364, 2
    %v2366 = vadd.f32 %v2364, %v2365
    %v2367 = vrot.slane %v2366, 1
    %v2368 = vadd.f32 %v2366, %v2367
    %v2369 = vrot.slane %v2338, 4
    %v2370 = vadd.f32 %v2338, %v2369
    %v2371 = vrot.slane %v2370, 2
    %v2372 = vadd.f32 %v2370, %v2371
    %v2373 = vrot.slane %v2372, 1
    %v2374 = vadd.f32 %v2372, %v2373
    %v2375 = vrot.slane %v2340, 4
    %v2376 = vadd.f32 %v2340, %v2375
    %v2377 = vrot.slane %v2376, 2
    %v2378 = vadd.f32 %v2376, %v2377
    %v2379 = vrot.slane %v2378, 1
    %v2380 = vadd.f32 %v2378, %v2379
    %v2381 = vrot.slane %v2342, 4
    %v2382 = vadd.f32 %v2342, %v2381
    %v2383 = vrot.slane %v2382, 2
    %v2384 = vadd.f32 %v2382, %v2383
    %v2385 = vrot.slane %v2384, 1
    %v2386 = vadd.f32 %v2384, %v2385
    %v2387 = vrot.slane %v2344, 4
    %v2388 = vadd.f32 %v2344, %v2387
    %v2389 = vrot.slane %v2388, 2
    %v2390 = vadd.f32 %v2388, %v2389
    %v2391 = vrot.slane %v2390, 1
    %v2392 = vadd.f32 %v2390, %v2391
    %v2393 = vmax.f32 %v2350, %v2374
    %v2394 = vmax.f32 %v2356, %v2380
    %v2395 = vmax.f32 %v2362, %v2386
    %v2396 = vmax.f32 %v2368, %v2392
    %v2397 = vmax.f32 %v2393, %v2394
    %v2398 = vmax.f32 %v2395, %v2396
    %v2399 = vmax.f32 %v2397, %v2398
    %v2400 = vsub.f32 %v2350, %v2399
    %v2401 = vsub.f32 %v2356, %v2399
    %v2402 = vsub.f32 %v2362, %v2399
    %v2403 = vsub.f32 %v2368, %v2399
    %v2404 = vsub.f32 %v2374, %v2399
    %v2405 = vsub.f32 %v2380, %v2399
    %v2406 = vsub.f32 %v2386, %v2399
    %v2407 = vsub.f32 %v2392, %v2399
    %v2408 = vmul.f32 %v2400, 1.442695
    %v2409 = vpow.pop %v2408
    %v2410 = vmul.f32 %v2401, 1.442695
    %v2411 = vpow.pop %v2410
    %v2412 = vmul.f32 %v2402, 1.442695
    %v2413 = vpow.pop %v2412
    %v2414 = vmul.f32 %v2403, 1.442695
    %v2415 = vpow.pop %v2414
    %v2416 = vmul.f32 %v2404, 1.442695
    %v2417 = vpow.pop %v2416
    %v2418 = vmul.f32 %v2405, 1.442695
    %v2419 = vpow.pop %v2418
    %v2420 = vmul.f32 %v2406, 1.442695
    %v2421 = vpow.pop %v2420
    %v2422 = vmul.f32 %v2407, 1.442695
    %v2423 = vpow.pop %v2422
    %v2424 = vadd.f32 %v2409, %v2411
    %v2425 = vadd.f32 %v2424, %v2413
    %v2426 = vadd.f32 %v2425, %v2415
    %v2427 = vadd.f32 %v2426, %v2417
    %v2428 = vadd.f32 %v2427, %v2419
    %v2429 = vadd.f32 %v2428, %v2421
    %v2430 = vadd.f32 %v2429, %v2423
    %v2431 = vrcp.pop %v2430
    %v2432 = vmul.f32 %v2409, %v2431
    %v2433 = vmul.f32 %v2411, %v2431
    %v2434 = vmul.f32 %v2413, %v2431
    %v2435 = vmul.f32 %v2415, %v2431
    %v2436 = vmul.f32 %v2417, %v2431
    %v2437 = vmul.f32 %v2419, %v2431
    %v2438 = vmul.f32 %v2421, %v2431
    %v2439 = vmul.f32 %v2423, %v2431
    %v2440 = vmul.f32 %v1360, %v2432
    %v2441 = vmul.f32 %v1361, %v2433
    %v2442 = vmul.f32 %v1362, %v2434
    %v2443 = vmul.f32 %v1363, %v2435
    %v2444 = vmul.f32 %v1364, %v2436
    %v2445 = vmul.f32 %v1365, %v2437
    %v2446 = vmul.f32 %v1366, %v2438
    %v2447 = vmul.f32 %v1367, %v2439
    %v2448 = vadd.f32 %v2440, %v2441
    %v2449 = vadd.f32 %v2448, %v2442
    %v2450 = vadd.f32 %v2449, %v2443
    %v2451 = vadd.f32 %v2450, %v2444
    %v2452 = vadd.f32 %v2451, %v2445
    %v2453 = vadd.f32 %v2452, %v2446
    %v2454 = vadd.f32 %v2453, %v2447
    %2455 = vmatprep.subr.mxu0 0.0
    %2456 = vmatpush1.msra.mxu0 %v2320
    %2457 = vmatprep.subr.mxu0 0.0
    %2458 = vmatpush1.msra.mxu0 %v2319
    %2459 = vmatprep.subr.mxu0 0.0
    %2460 = vmatpush1.msra.mxu0 %v2318
    %2461 = vmatprep.subr.mxu0 0.0
    %2462 = vmatpush1.msra.mxu0 %v2317
    %2463 = vmatprep.subr.mxu0 0.0
    %2464 = vmatpush1.msra.mxu0 %v2316
    %2465 = vmatprep.subr.mxu0 0.0
    %2466 = vmatpush1.msra.mxu0 %v2315
    %2467 = vmatprep.subr.mxu0 0.0
    %2468 = vmatpush1.msra.mxu0 %v2314
    %2469 = vmatprep.subr.mxu0 0.0
    %2470 = vmatpush1.msra.mxu0 %v2313
    %2471 = vmatprep.subr.mxu0 0.0
    %2472 = vmatpush1.msra.mxu0 %v2312
    %2473 = vmatprep.subr.mxu0 0.0
    %2474 = vmatpush1.msra.mxu0 %v2311
    %2475 = vmatprep.subr.mxu0 0.0
    %2476 = vmatpush1.msra.mxu0 %v2310
    %2477 = vmatprep.subr.mxu0 0.0
    %2478 = vmatpush1.msra.mxu0 %v2309
    %2479 = vmatprep.subr.mxu0 0.0
    %2480 = vmatpush1.msra.mxu0 %v2308
    %2481 = vmatprep.subr.mxu0 0.0
    %2482 = vmatpush1.msra.mxu0 %v2307
    %2483 = vmatprep.subr.mxu0 0.0
    %2484 = vmatpush1.msra.mxu0 %v2306
    %2485 = vmatprep.subr.mxu0 0.0
    %2486 = vmatpush1.msra.mxu0 %v2305
    %2487 = vmatprep.subr.mxu0 0.0
    %2488 = vmatpush2.msra.mxu0 0.0
    %2489 = vmatprep.subr.mxu0 0.0
    %2490 = vmatpush2.msra.mxu0 0.0
    %2491 = vmatprep.subr.mxu0 0.0
    %2492 = vmatpush2.msra.mxu0 0.0
    %2493 = vmatprep.subr.mxu0 0.0
    %2494 = vmatpush2.msra.mxu0 0.0
    %2495 = vmatprep.subr.mxu0 0.0
    %2496 = vmatpush2.msra.mxu0 0.0
    %2497 = vmatprep.subr.mxu0 0.0
    %2498 = vmatpush2.msra.mxu0 0.0
    %2499 = vmatprep.subr.mxu0 0.0
    %2500 = vmatpush2.msra.mxu0 0.0
    %2501 = vmatprep.subr.mxu0 0.0
    %2502 = vmatpush2.msra.mxu0 0.0
    %2503 = vmatprep.subr.mxu0 0.0
    %2504 = vmatpush2.msra.mxu0 0.0
    %2505 = vmatprep.subr.mxu0 0.0
    %2506 = vmatpush2.msra.mxu0 0.0
    %2507 = vmatprep.subr.mxu0 0.0
    %2508 = vmatpush2.msra.mxu0 0.0
    %2509 = vmatprep.subr.mxu0 0.0
    %2510 = vmatpush2.msra.mxu0 0.0
    %2511 = vmatprep.subr.mxu0 0.0
    %2512 = vmatpush2.msra.mxu0 0.0
    %2513 = vmatprep.subr.mxu0 0.0
    %2514 = vmatpush2.msra.mxu0 0.0
    %2515 = vmatprep.subr.mxu0 0.0
    %2516 = vmatpush2.msra.mxu0 0.0
    %2517 = vmatprep.subr.mxu0 0.0
    %2518 = vmatpush2.msra.mxu0 0.0
    %2519 = vmatprep.mubr.f32.mxu0 0.0
    %2520 = vmatmul.mubr.f32.gmra.mxu0 %v2302
    %v2521 = vpop.f32.mrf.mxu0
    %v2522 = vadd.f32 %v2454, %v2521
    %v2523 = vpop.f32.mrf.mxu0
    %2524 = vdwg.mxu0
    %v2525 = vadd.f32 %v2522, %v2304
    %v2526 = vxor.u32 %v2525, 2147483648
    %v2527 = vmul.f32 %v2526, 1.442695
    %v2528 = vpow.pop %v2527
    %v2529 = vadd.f32 %v2528, 1.0
    %v2530 = vrcp.pop %v2529
    %v2531 = vmul.f32 1.0, %v2530
    %v2532 = vtanh.pop %v2525
    %v2533 = vadd.f32 %v2300, %v2532
    %v2534 = vmul.f32 %v2531, %v2533
    %v2535 = vtanh.pop %v2534
    %v2536 = vmul.f32 %v2531, %v2535
    %2537 = vst [vmem:[#allocation5 + $0x20] sm:$0xff] %v2536
    %v2538 = vld [vmem:[#allocation2 + $0x28] sm:$0xff]
    %v2539 = vld [vmem:[%s3] sm:$0xff]
    %v2540 = vld [vmem:[%s3 + $0x8] sm:$0xff]
    %v2541 = vld [vmem:[%s3 + $0x10] sm:$0xff]
    %v2542 = vld [vmem:[%s3 + $0x18] sm:$0xff]
    %v2543 = vld [vmem:[%s3 + $0x20] sm:$0xff]
    %v2544 = vld [vmem:[%s3 + $0x28] sm:$0xff]
    %v2545 = vld [vmem:[%s3 + $0x30] sm:$0xff]
    %v2546 = vld [vmem:[%s3 + $0x38] sm:$0xff]
    %v2547 = vld [vmem:[%s3 + $0x40] sm:$0xff]
    %v2548 = vld [vmem:[%s3 + $0x48] sm:$0xff]
    %v2549 = vld [vmem:[%s3 + $0x50] sm:$0xff]
    %v2550 = vld [vmem:[%s3 + $0x58] sm:$0xff]
    %v2551 = vld [vmem:[%s3 + $0x60] sm:$0xff]
    %v2552 = vld [vmem:[%s3 + $0x68] sm:$0xff]
    %v2553 = vld [vmem:[%s3 + $0x70] sm:$0xff]
    %v2554 = vld [vmem:[%s3 + $0x78] sm:$0xff]
    %v2555 = vmul.f32 %v1352, %v2536
    %v2556 = vmul.f32 %v1353, %v2536
    %v2557 = vmul.f32 %v1354, %v2536
    %v2558 = vmul.f32 %v1355, %v2536
    %v2559 = vmul.f32 %v1356, %v2536
    %v2560 = vmul.f32 %v1357, %v2536
    %v2561 = vmul.f32 %v1358, %v2536
    %v2562 = vmul.f32 %v1359, %v2536
    %2563 = vadd.xlane.f32.xlu0 %v2555
    %v2564 = vpop.xlane.xlu0 %2563
    %2565 = vadd.xlane.f32.xlu0 %v2556
    %v2566 = vpop.xlane.xlu0 %2565
    %2567 = vadd.xlane.f32.xlu0 %v2557
    %v2568 = vpop.xlane.xlu0 %2567
    %2569 = vadd.xlane.f32.xlu0 %v2558
    %v2570 = vpop.xlane.xlu0 %2569
    %2571 = vadd.xlane.f32.xlu0 %v2559
    %v2572 = vpop.xlane.xlu0 %2571
    %2573 = vadd.xlane.f32.xlu0 %v2560
    %v2574 = vpop.xlane.xlu0 %2573
    %2575 = vadd.xlane.f32.xlu0 %v2561
    %v2576 = vpop.xlane.xlu0 %2575
    %2577 = vadd.xlane.f32.xlu0 %v2562
    %v2578 = vpop.xlane.xlu0 %2577
    %v2579 = vrot.slane %v2564, 4
    %v2580 = vadd.f32 %v2564, %v2579
    %v2581 = vrot.slane %v2580, 2
    %v2582 = vadd.f32 %v2580, %v2581
    %v2583 = vrot.slane %v2582, 1
    %v2584 = vadd.f32 %v2582, %v2583
    %v2585 = vrot.slane %v2566, 4
    %v2586 = vadd.f32 %v2566, %v2585
    %v2587 = vrot.slane %v2586, 2
    %v2588 = vadd.f32 %v2586, %v2587
    %v2589 = vrot.slane %v2588, 1
    %v2590 = vadd.f32 %v2588, %v2589
    %v2591 = vrot.slane %v2568, 4
    %v2592 = vadd.f32 %v2568, %v2591
    %v2593 = vrot.slane %v2592, 2
    %v2594 = vadd.f32 %v2592, %v2593
    %v2595 = vrot.slane %v2594, 1
    %v2596 = vadd.f32 %v2594, %v2595
    %v2597 = vrot.slane %v2570, 4
    %v2598 = vadd.f32 %v2570, %v2597
    %v2599 = vrot.slane %v2598, 2
    %v2600 = vadd.f32 %v2598, %v2599
    %v2601 = vrot.slane %v2600, 1
    %v2602 = vadd.f32 %v2600, %v2601
    %v2603 = vrot.slane %v2572, 4
    %v2604 = vadd.f32 %v2572, %v2603
    %v2605 = vrot.slane %v2604, 2
    %v2606 = vadd.f32 %v2604, %v2605
    %v2607 = vrot.slane %v2606, 1
    %v2608 = vadd.f32 %v2606, %v2607
    %v2609 = vrot.slane %v2574, 4
    %v2610 = vadd.f32 %v2574, %v2609
    %v2611 = vrot.slane %v2610, 2
    %v2612 = vadd.f32 %v2610, %v2611
    %v2613 = vrot.slane %v2612, 1
    %v2614 = vadd.f32 %v2612, %v2613
    %v2615 = vrot.slane %v2576, 4
    %v2616 = vadd.f32 %v2576, %v2615
    %v2617 = vrot.slane %v2616, 2
    %v2618 = vadd.f32 %v2616, %v2617
    %v2619 = vrot.slane %v2618, 1
    %v2620 = vadd.f32 %v2618, %v2619
    %v2621 = vrot.slane %v2578, 4
    %v2622 = vadd.f32 %v2578, %v2621
    %v2623 = vrot.slane %v2622, 2
    %v2624 = vadd.f32 %v2622, %v2623
    %v2625 = vrot.slane %v2624, 1
    %v2626 = vadd.f32 %v2624, %v2625
    %v2627 = vmax.f32 %v2584, %v2608
    %v2628 = vmax.f32 %v2590, %v2614
    %v2629 = vmax.f32 %v2596, %v2620
    %v2630 = vmax.f32 %v2602, %v2626
    %v2631 = vmax.f32 %v2627, %v2628
    %v2632 = vmax.f32 %v2629, %v2630
    %v2633 = vmax.f32 %v2631, %v2632
    %v2634 = vsub.f32 %v2584, %v2633
    %v2635 = vsub.f32 %v2590, %v2633
    %v2636 = vsub.f32 %v2596, %v2633
    %v2637 = vsub.f32 %v2602, %v2633
    %v2638 = vsub.f32 %v2608, %v2633
    %v2639 = vsub.f32 %v2614, %v2633
    %v2640 = vsub.f32 %v2620, %v2633
    %v2641 = vsub.f32 %v2626, %v2633
    %v2642 = vmul.f32 %v2634, 1.442695
    %v2643 = vpow.pop %v2642
    %v2644 = vmul.f32 %v2635, 1.442695
    %v2645 = vpow.pop %v2644
    %v2646 = vmul.f32 %v2636, 1.442695
    %v2647 = vpow.pop %v2646
    %v2648 = vmul.f32 %v2637, 1.442695
    %v2649 = vpow.pop %v2648
    %v2650 = vmul.f32 %v2638, 1.442695
    %v2651 = vpow.pop %v2650
    %v2652 = vmul.f32 %v2639, 1.442695
    %v2653 = vpow.pop %v2652
    %v2654 = vmul.f32 %v2640, 1.442695
    %v2655 = vpow.pop %v2654
    %v2656 = vmul.f32 %v2641, 1.442695
    %v2657 = vpow.pop %v2656
    %v2658 = vadd.f32 %v2643, %v2645
    %v2659 = vadd.f32 %v2658, %v2647
    %v2660 = vadd.f32 %v2659, %v2649
    %v2661 = vadd.f32 %v2660, %v2651
    %v2662 = vadd.f32 %v2661, %v2653
    %v2663 = vadd.f32 %v2662, %v2655
    %v2664 = vadd.f32 %v2663, %v2657
    %v2665 = vrcp.pop %v2664
    %v2666 = vmul.f32 %v2643, %v2665
    %v2667 = vmul.f32 %v2645, %v2665
    %v2668 = vmul.f32 %v2647, %v2665
    %v2669 = vmul.f32 %v2649, %v2665
    %v2670 = vmul.f32 %v2651, %v2665
    %v2671 = vmul.f32 %v2653, %v2665
    %v2672 = vmul.f32 %v2655, %v2665
    %v2673 = vmul.f32 %v2657, %v2665
    %v2674 = vmul.f32 %v1360, %v2666
    %v2675 = vmul.f32 %v1361, %v2667
    %v2676 = vmul.f32 %v1362, %v2668
    %v2677 = vmul.f32 %v1363, %v2669
    %v2678 = vmul.f32 %v1364, %v2670
    %v2679 = vmul.f32 %v1365, %v2671
    %v2680 = vmul.f32 %v1366, %v2672
    %v2681 = vmul.f32 %v1367, %v2673
    %v2682 = vadd.f32 %v2674, %v2675
    %v2683 = vadd.f32 %v2682, %v2676
    %v2684 = vadd.f32 %v2683, %v2677
    %v2685 = vadd.f32 %v2684, %v2678
    %v2686 = vadd.f32 %v2685, %v2679
    %v2687 = vadd.f32 %v2686, %v2680
    %v2688 = vadd.f32 %v2687, %v2681
    %2689 = vmatprep.subr.mxu0 0.0
    %2690 = vmatpush1.msra.mxu0 %v2554
    %2691 = vmatprep.subr.mxu0 0.0
    %2692 = vmatpush1.msra.mxu0 %v2553
    %2693 = vmatprep.subr.mxu0 0.0
    %2694 = vmatpush1.msra.mxu0 %v2552
    %2695 = vmatprep.subr.mxu0 0.0
    %2696 = vmatpush1.msra.mxu0 %v2551
    %2697 = vmatprep.subr.mxu0 0.0
    %2698 = vmatpush1.msra.mxu0 %v2550
    %2699 = vmatprep.subr.mxu0 0.0
    %2700 = vmatpush1.msra.mxu0 %v2549
    %2701 = vmatprep.subr.mxu0 0.0
    %2702 = vmatpush1.msra.mxu0 %v2548
    %2703 = vmatprep.subr.mxu0 0.0
    %2704 = vmatpush1.msra.mxu0 %v2547
    %2705 = vmatprep.subr.mxu0 0.0
    %2706 = vmatpush1.msra.mxu0 %v2546
    %2707 = vmatprep.subr.mxu0 0.0
    %2708 = vmatpush1.msra.mxu0 %v2545
    %2709 = vmatprep.subr.mxu0 0.0
    %2710 = vmatpush1.msra.mxu0 %v2544
    %2711 = vmatprep.subr.mxu0 0.0
    %2712 = vmatpush1.msra.mxu0 %v2543
    %2713 = vmatprep.subr.mxu0 0.0
    %2714 = vmatpush1.msra.mxu0 %v2542
    %2715 = vmatprep.subr.mxu0 0.0
    %2716 = vmatpush1.msra.mxu0 %v2541
    %2717 = vmatprep.subr.mxu0 0.0
    %2718 = vmatpush1.msra.mxu0 %v2540
    %2719 = vmatprep.subr.mxu0 0.0
    %2720 = vmatpush1.msra.mxu0 %v2539
    %2721 = vmatprep.subr.mxu0 0.0
    %2722 = vmatpush2.msra.mxu0 0.0
    %2723 = vmatprep.subr.mxu0 0.0
    %2724 = vmatpush2.msra.mxu0 0.0
    %2725 = vmatprep.subr.mxu0 0.0
    %2726 = vmatpush2.msra.mxu0 0.0
    %2727 = vmatprep.subr.mxu0 0.0
    %2728 = vmatpush2.msra.mxu0 0.0
    %2729 = vmatprep.subr.mxu0 0.0
    %2730 = vmatpush2.msra.mxu0 0.0
    %2731 = vmatprep.subr.mxu0 0.0
    %2732 = vmatpush2.msra.mxu0 0.0
    %2733 = vmatprep.subr.mxu0 0.0
    %2734 = vmatpush2.msra.mxu0 0.0
    %2735 = vmatprep.subr.mxu0 0.0
    %2736 = vmatpush2.msra.mxu0 0.0
    %2737 = vmatprep.subr.mxu0 0.0
    %2738 = vmatpush2.msra.mxu0 0.0
    %2739 = vmatprep.subr.mxu0 0.0
    %2740 = vmatpush2.msra.mxu0 0.0
    %2741 = vmatprep.subr.mxu0 0.0
    %2742 = vmatpush2.msra.mxu0 0.0
    %2743 = vmatprep.subr.mxu0 0.0
    %2744 = vmatpush2.msra.mxu0 0.0
    %2745 = vmatprep.subr.mxu0 0.0
    %2746 = vmatpush2.msra.mxu0 0.0
    %2747 = vmatprep.subr.mxu0 0.0
    %2748 = vmatpush2.msra.mxu0 0.0
    %2749 = vmatprep.subr.mxu0 0.0
    %2750 = vmatpush2.msra.mxu0 0.0
    %2751 = vmatprep.subr.mxu0 0.0
    %2752 = vmatpush2.msra.mxu0 0.0
    %2753 = vmatprep.mubr.f32.mxu0 0.0
    %2754 = vmatmul.mubr.f32.gmra.mxu0 %v2536
    %v2755 = vpop.f32.mrf.mxu0
    %v2756 = vadd.f32 %v2688, %v2755
    %v2757 = vpop.f32.mrf.mxu0
    %2758 = vdwg.mxu0
    %v2759 = vadd.f32 %v2756, %v2538
    %v2760 = vxor.u32 %v2759, 2147483648
    %v2761 = vmul.f32 %v2760, 1.442695
    %v2762 = vpow.pop %v2761
    %v2763 = vadd.f32 %v2762, 1.0
    %v2764 = vrcp.pop %v2763
    %v2765 = vmul.f32 1.0, %v2764
    %v2766 = vtanh.pop %v2759
    %v2767 = vadd.f32 %v2534, %v2766
    %v2768 = vmul.f32 %v2765, %v2767
    %v2769 = vtanh.pop %v2768
    %v2770 = vmul.f32 %v2765, %v2769
    %2771 = vst [vmem:[#allocation5 + $0x28] sm:$0xff] %v2770
    %v2772 = vld [vmem:[#allocation2 + $0x30] sm:$0xff]
    %v2773 = vld [vmem:[%s3] sm:$0xff]
    %v2774 = vld [vmem:[%s3 + $0x8] sm:$0xff]
    %v2775 = vld [vmem:[%s3 + $0x10] sm:$0xff]
    %v2776 = vld [vmem:[%s3 + $0x18] sm:$0xff]
    %v2777 = vld [vmem:[%s3 + $0x20] sm:$0xff]
    %v2778 = vld [vmem:[%s3 + $0x28] sm:$0xff]
    %v2779 = vld [vmem:[%s3 + $0x30] sm:$0xff]
    %v2780 = vld [vmem:[%s3 + $0x38] sm:$0xff]
    %v2781 = vld [vmem:[%s3 + $0x40] sm:$0xff]
    %v2782 = vld [vmem:[%s3 + $0x48] sm:$0xff]
    %v2783 = vld [vmem:[%s3 + $0x50] sm:$0xff]
    %v2784 = vld [vmem:[%s3 + $0x58] sm:$0xff]
    %v2785 = vld [vmem:[%s3 + $0x60] sm:$0xff]
    %v2786 = vld [vmem:[%s3 + $0x68] sm:$0xff]
    %v2787 = vld [vmem:[%s3 + $0x70] sm:$0xff]
    %v2788 = vld [vmem:[%s3 + $0x78] sm:$0xff]
    %v2789 = vmul.f32 %v1352, %v2770
    %v2790 = vmul.f32 %v1353, %v2770
    %v2791 = vmul.f32 %v1354, %v2770
    %v2792 = vmul.f32 %v1355, %v2770
    %v2793 = vmul.f32 %v1356, %v2770
    %v2794 = vmul.f32 %v1357, %v2770
    %v2795 = vmul.f32 %v1358, %v2770
    %v2796 = vmul.f32 %v1359, %v2770
    %2797 = vadd.xlane.f32.xlu0 %v2789
    %v2798 = vpop.xlane.xlu0 %2797
    %2799 = vadd.xlane.f32.xlu0 %v2790
    %v2800 = vpop.xlane.xlu0 %2799
    %2801 = vadd.xlane.f32.xlu0 %v2791
    %v2802 = vpop.xlane.xlu0 %2801
    %2803 = vadd.xlane.f32.xlu0 %v2792
    %v2804 = vpop.xlane.xlu0 %2803
    %2805 = vadd.xlane.f32.xlu0 %v2793
    %v2806 = vpop.xlane.xlu0 %2805
    %2807 = vadd.xlane.f32.xlu0 %v2794
    %v2808 = vpop.xlane.xlu0 %2807
    %2809 = vadd.xlane.f32.xlu0 %v2795
    %v2810 = vpop.xlane.xlu0 %2809
    %2811 = vadd.xlane.f32.xlu0 %v2796
    %v2812 = vpop.xlane.xlu0 %2811
    %v2813 = vrot.slane %v2798, 4
    %v2814 = vadd.f32 %v2798, %v2813
    %v2815 = vrot.slane %v2814, 2
    %v2816 = vadd.f32 %v2814, %v2815
    %v2817 = vrot.slane %v2816, 1
    %v2818 = vadd.f32 %v2816, %v2817
    %v2819 = vrot.slane %v2800, 4
    %v2820 = vadd.f32 %v2800, %v2819
    %v2821 = vrot.slane %v2820, 2
    %v2822 = vadd.f32 %v2820, %v2821
    %v2823 = vrot.slane %v2822, 1
    %v2824 = vadd.f32 %v2822, %v2823
    %v2825 = vrot.slane %v2802, 4
    %v2826 = vadd.f32 %v2802, %v2825
    %v2827 = vrot.slane %v2826, 2
    %v2828 = vadd.f32 %v2826, %v2827
    %v2829 = vrot.slane %v2828, 1
    %v2830 = vadd.f32 %v2828, %v2829
    %v2831 = vrot.slane %v2804, 4
    %v2832 = vadd.f32 %v2804, %v2831
    %v2833 = vrot.slane %v2832, 2
    %v2834 = vadd.f32 %v2832, %v2833
    %v2835 = vrot.slane %v2834, 1
    %v2836 = vadd.f32 %v2834, %v2835
    %v2837 = vrot.slane %v2806, 4
    %v2838 = vadd.f32 %v2806, %v2837
    %v2839 = vrot.slane %v2838, 2
    %v2840 = vadd.f32 %v2838, %v2839
    %v2841 = vrot.slane %v2840, 1
    %v2842 = vadd.f32 %v2840, %v2841
    %v2843 = vrot.slane %v2808, 4
    %v2844 = vadd.f32 %v2808, %v2843
    %v2845 = vrot.slane %v2844, 2
    %v2846 = vadd.f32 %v2844, %v2845
    %v2847 = vrot.slane %v2846, 1
    %v2848 = vadd.f32 %v2846, %v2847
    %v2849 = vrot.slane %v2810, 4
    %v2850 = vadd.f32 %v2810, %v2849
    %v2851 = vrot.slane %v2850, 2
    %v2852 = vadd.f32 %v2850, %v2851
    %v2853 = vrot.slane %v2852, 1
    %v2854 = vadd.f32 %v2852, %v2853
    %v2855 = vrot.slane %v2812, 4
    %v2856 = vadd.f32 %v2812, %v2855
    %v2857 = vrot.slane %v2856, 2
    %v2858 = vadd.f32 %v2856, %v2857
    %v2859 = vrot.slane %v2858, 1
    %v2860 = vadd.f32 %v2858, %v2859
    %v2861 = vmax.f32 %v2818, %v2842
    %v2862 = vmax.f32 %v2824, %v2848
    %v2863 = vmax.f32 %v2830, %v2854
    %v2864 = vmax.f32 %v2836, %v2860
    %v2865 = vmax.f32 %v2861, %v2862
    %v2866 = vmax.f32 %v2863, %v2864
    %v2867 = vmax.f32 %v2865, %v2866
    %v2868 = vsub.f32 %v2818, %v2867
    %v2869 = vsub.f32 %v2824, %v2867
    %v2870 = vsub.f32 %v2830, %v2867
    %v2871 = vsub.f32 %v2836, %v2867
    %v2872 = vsub.f32 %v2842, %v2867
    %v2873 = vsub.f32 %v2848, %v2867
    %v2874 = vsub.f32 %v2854, %v2867
    %v2875 = vsub.f32 %v2860, %v2867
    %v2876 = vmul.f32 %v2868, 1.442695
    %v2877 = vpow.pop %v2876
    %v2878 = vmul.f32 %v2869, 1.442695
    %v2879 = vpow.pop %v2878
    %v2880 = vmul.f32 %v2870, 1.442695
    %v2881 = vpow.pop %v2880
    %v2882 = vmul.f32 %v2871, 1.442695
    %v2883 = vpow.pop %v2882
    %v2884 = vmul.f32 %v2872, 1.442695
    %v2885 = vpow.pop %v2884
    %v2886 = vmul.f32 %v2873, 1.442695
    %v2887 = vpow.pop %v2886
    %v2888 = vmul.f32 %v2874, 1.442695
    %v2889 = vpow.pop %v2888
    %v2890 = vmul.f32 %v2875, 1.442695
    %v2891 = vpow.pop %v2890
    %v2892 = vadd.f32 %v2877, %v2879
    %v2893 = vadd.f32 %v2892, %v2881
    %v2894 = vadd.f32 %v2893, %v2883
    %v2895 = vadd.f32 %v2894, %v2885
    %v2896 = vadd.f32 %v2895, %v2887
    %v2897 = vadd.f32 %v2896, %v2889
    %v2898 = vadd.f32 %v2897, %v2891
    %v2899 = vrcp.pop %v2898
    %v2900 = vmul.f32 %v2877, %v2899
    %v2901 = vmul.f32 %v2879, %v2899
    %v2902 = vmul.f32 %v2881, %v2899
    %v2903 = vmul.f32 %v2883, %v2899
    %v2904 = vmul.f32 %v2885, %v2899
    %v2905 = vmul.f32 %v2887, %v2899
    %v2906 = vmul.f32 %v2889, %v2899
    %v2907 = vmul.f32 %v2891, %v2899
    %v2908 = vmul.f32 %v1360, %v2900
    %v2909 = vmul.f32 %v1361, %v2901
    %v2910 = vmul.f32 %v1362, %v2902
    %v2911 = vmul.f32 %v1363, %v2903
    %v2912 = vmul.f32 %v1364, %v2904
    %v2913 = vmul.f32 %v1365, %v2905
    %v2914 = vmul.f32 %v1366, %v2906
    %v2915 = vmul.f32 %v1367, %v2907
    %v2916 = vadd.f32 %v2908, %v2909
    %v2917 = vadd.f32 %v2916, %v2910
    %v2918 = vadd.f32 %v2917, %v2911
    %v2919 = vadd.f32 %v2918, %v2912
    %v2920 = vadd.f32 %v2919, %v2913
    %v2921 = vadd.f32 %v2920, %v2914
    %v2922 = vadd.f32 %v2921, %v2915
    %2923 = vmatprep.subr.mxu0 0.0
    %2924 = vmatpush1.msra.mxu0 %v2788
    %2925 = vmatprep.subr.mxu0 0.0
    %2926 = vmatpush1.msra.mxu0 %v2787
    %2927 = vmatprep.subr.mxu0 0.0
    %2928 = vmatpush1.msra.mxu0 %v2786
    %2929 = vmatprep.subr.mxu0 0.0
    %2930 = vmatpush1.msra.mxu0 %v2785
    %2931 = vmatprep.subr.mxu0 0.0
    %2932 = vmatpush1.msra.mxu0 %v2784
    %2933 = vmatprep.subr.mxu0 0.0
    %2934 = vmatpush1.msra.mxu0 %v2783
    %2935 = vmatprep.subr.mxu0 0.0
    %2936 = vmatpush1.msra.mxu0 %v2782
    %2937 = vmatprep.subr.mxu0 0.0
    %2938 = vmatpush1.msra.mxu0 %v2781
    %2939 = vmatprep.subr.mxu0 0.0
    %2940 = vmatpush1.msra.mxu0 %v2780
    %2941 = vmatprep.subr.mxu0 0.0
    %2942 = vmatpush1.msra.mxu0 %v2779
    %2943 = vmatprep.subr.mxu0 0.0
    %2944 = vmatpush1.msra.mxu0 %v2778
    %2945 = vmatprep.subr.mxu0 0.0
    %2946 = vmatpush1.msra.mxu0 %v2777
    %2947 = vmatprep.subr.mxu0 0.0
    %2948 = vmatpush1.msra.mxu0 %v2776
    %2949 = vmatprep.subr.mxu0 0.0
    %2950 = vmatpush1.msra.mxu0 %v2775
    %2951 = vmatprep.subr.mxu0 0.0
    %2952 = vmatpush1.msra.mxu0 %v2774
    %2953 = vmatprep.subr.mxu0 0.0
    %2954 = vmatpush1.msra.mxu0 %v2773
    %2955 = vmatprep.subr.mxu0 0.0
    %2956 = vmatpush2.msra.mxu0 0.0
    %2957 = vmatprep.subr.mxu0 0.0
    %2958 = vmatpush2.msra.mxu0 0.0
    %2959 = vmatprep.subr.mxu0 0.0
    %2960 = vmatpush2.msra.mxu0 0.0
    %2961 = vmatprep.subr.mxu0 0.0
    %2962 = vmatpush2.msra.mxu0 0.0
    %2963 = vmatprep.subr.mxu0 0.0
    %2964 = vmatpush2.msra.mxu0 0.0
    %2965 = vmatprep.subr.mxu0 0.0
    %2966 = vmatpush2.msra.mxu0 0.0
    %2967 = vmatprep.subr.mxu0 0.0
    %2968 = vmatpush2.msra.mxu0 0.0
    %2969 = vmatprep.subr.mxu0 0.0
    %2970 = vmatpush2.msra.mxu0 0.0
    %2971 = vmatprep.subr.mxu0 0.0
    %2972 = vmatpush2.msra.mxu0 0.0
    %2973 = vmatprep.subr.mxu0 0.0
    %2974 = vmatpush2.msra.mxu0 0.0
    %2975 = vmatprep.subr.mxu0 0.0
    %2976 = vmatpush2.msra.mxu0 0.0
    %2977 = vmatprep.subr.mxu0 0.0
    %2978 = vmatpush2.msra.mxu0 0.0
    %2979 = vmatprep.subr.mxu0 0.0
    %2980 = vmatpush2.msra.mxu0 0.0
    %2981 = vmatprep.subr.mxu0 0.0
    %2982 = vmatpush2.msra.mxu0 0.0
    %2983 = vmatprep.subr.mxu0 0.0
    %2984 = vmatpush2.msra.mxu0 0.0
    %2985 = vmatprep.subr.mxu0 0.0
    %2986 = vmatpush2.msra.mxu0 0.0
    %2987 = vmatprep.mubr.f32.mxu0 0.0
    %2988 = vmatmul.mubr.f32.gmra.mxu0 %v2770
    %v2989 = vpop.f32.mrf.mxu0
    %v2990 = vadd.f32 %v2922, %v2989
    %v2991 = vpop.f32.mrf.mxu0
    %2992 = vdwg.mxu0
    %v2993 = vadd.f32 %v2990, %v2772
    %v2994 = vxor.u32 %v2993, 2147483648
    %v2995 = vmul.f32 %v2994, 1.442695
    %v2996 = vpow.pop %v2995
    %v2997 = vadd.f32 %v2996, 1.0
    %v2998 = vrcp.pop %v2997
    %v2999 = vmul.f32 1.0, %v2998
    %v3000 = vtanh.pop %v2993
    %v3001 = vadd.f32 %v2768, %v3000
    %v3002 = vmul.f32 %v2999, %v3001
    %v3003 = vtanh.pop %v3002
    %v3004 = vmul.f32 %v2999, %v3003
    %3005 = vst [vmem:[#allocation5 + $0x30] sm:$0xff] %v3004
    %v3006 = vld [vmem:[#allocation2 + $0x38] sm:$0xff]
    %v3007 = vld [vmem:[%s3] sm:$0xff]
    %v3008 = vld [vmem:[%s3 + $0x8] sm:$0xff]
    %v3009 = vld [vmem:[%s3 + $0x10] sm:$0xff]
    %v3010 = vld [vmem:[%s3 + $0x18] sm:$0xff]
    %v3011 = vld [vmem:[%s3 + $0x20] sm:$0xff]
    %v3012 = vld [vmem:[%s3 + $0x28] sm:$0xff]
    %v3013 = vld [vmem:[%s3 + $0x30] sm:$0xff]
    %v3014 = vld [vmem:[%s3 + $0x38] sm:$0xff]
    %v3015 = vld [vmem:[%s3 + $0x40] sm:$0xff]
    %v3016 = vld [vmem:[%s3 + $0x48] sm:$0xff]
    %v3017 = vld [vmem:[%s3 + $0x50] sm:$0xff]
    %v3018 = vld [vmem:[%s3 + $0x58] sm:$0xff]
    %v3019 = vld [vmem:[%s3 + $0x60] sm:$0xff]
    %v3020 = vld [vmem:[%s3 + $0x68] sm:$0xff]
    %v3021 = vld [vmem:[%s3 + $0x70] sm:$0xff]
    %v3022 = vld [vmem:[%s3 + $0x78] sm:$0xff]
    %v3023 = vmul.f32 %v1352, %v3004
    %v3024 = vmul.f32 %v1353, %v3004
    %v3025 = vmul.f32 %v1354, %v3004
    %v3026 = vmul.f32 %v1355, %v3004
    %v3027 = vmul.f32 %v1356, %v3004
    %v3028 = vmul.f32 %v1357, %v3004
    %v3029 = vmul.f32 %v1358, %v3004
    %v3030 = vmul.f32 %v1359, %v3004
    %3031 = vadd.xlane.f32.xlu0 %v3023
    %v3032 = vpop.xlane.xlu0 %3031
    %3033 = vadd.xlane.f32.xlu0 %v3024
    %v3034 = vpop.xlane.xlu0 %3033
    %3035 = vadd.xlane.f32.xlu0 %v3025
    %v3036 = vpop.xlane.xlu0 %3035
    %3037 = vadd.xlane.f32.xlu0 %v3026
    %v3038 = vpop.xlane.xlu0 %3037
    %3039 = vadd.xlane.f32.xlu0 %v3027
    %v3040 = vpop.xlane.xlu0 %3039
    %3041 = vadd.xlane.f32.xlu0 %v3028
    %v3042 = vpop.xlane.xlu0 %3041
    %3043 = vadd.xlane.f32.xlu0 %v3029
    %v3044 = vpop.xlane.xlu0 %3043
    %3045 = vadd.xlane.f32.xlu0 %v3030
    %v3046 = vpop.xlane.xlu0 %3045
    %v3047 = vrot.slane %v3032, 4
    %v3048 = vadd.f32 %v3032, %v3047
    %v3049 = vrot.slane %v3048, 2
    %v3050 = vadd.f32 %v3048, %v3049
    %v3051 = vrot.slane %v3050, 1
    %v3052 = vadd.f32 %v3050, %v3051
    %v3053 = vrot.slane %v3034, 4
    %v3054 = vadd.f32 %v3034, %v3053
    %v3055 = vrot.slane %v3054, 2
    %v3056 = vadd.f32 %v3054, %v3055
    %v3057 = vrot.slane %v3056, 1
    %v3058 = vadd.f32 %v3056, %v3057
    %v3059 = vrot.slane %v3036, 4
    %v3060 = vadd.f32 %v3036, %v3059
    %v3061 = vrot.slane %v3060, 2
    %v3062 = vadd.f32 %v3060, %v3061
    %v3063 = vrot.slane %v3062, 1
    %v3064 = vadd.f32 %v3062, %v3063
    %v3065 = vrot.slane %v3038, 4
    %v3066 = vadd.f32 %v3038, %v3065
    %v3067 = vrot.slane %v3066, 2
    %v3068 = vadd.f32 %v3066, %v3067
    %v3069 = vrot.slane %v3068, 1
    %v3070 = vadd.f32 %v3068, %v3069
    %v3071 = vrot.slane %v3040, 4
    %v3072 = vadd.f32 %v3040, %v3071
    %v3073 = vrot.slane %v3072, 2
    %v3074 = vadd.f32 %v3072, %v3073
    %v3075 = vrot.slane %v3074, 1
    %v3076 = vadd.f32 %v3074, %v3075
    %v3077 = vrot.slane %v3042, 4
    %v3078 = vadd.f32 %v3042, %v3077
    %v3079 = vrot.slane %v3078, 2
    %v3080 = vadd.f32 %v3078, %v3079
    %v3081 = vrot.slane %v3080, 1
    %v3082 = vadd.f32 %v3080, %v3081
    %v3083 = vrot.slane %v3044, 4
    %v3084 = vadd.f32 %v3044, %v3083
    %v3085 = vrot.slane %v3084, 2
    %v3086 = vadd.f32 %v3084, %v3085
    %v3087 = vrot.slane %v3086, 1
    %v3088 = vadd.f32 %v3086, %v3087
    %v3089 = vrot.slane %v3046, 4
    %v3090 = vadd.f32 %v3046, %v3089
    %v3091 = vrot.slane %v3090, 2
    %v3092 = vadd.f32 %v3090, %v3091
    %v3093 = vrot.slane %v3092, 1
    %v3094 = vadd.f32 %v3092, %v3093
    %v3095 = vmax.f32 %v3052, %v3076
    %v3096 = vmax.f32 %v3058, %v3082
    %v3097 = vmax.f32 %v3064, %v3088
    %v3098 = vmax.f32 %v3070, %v3094
    %v3099 = vmax.f32 %v3095, %v3096
    %v3100 = vmax.f32 %v3097, %v3098
    %v3101 = vmax.f32 %v3099, %v3100
    %v3102 = vsub.f32 %v3052, %v3101
    %v3103 = vsub.f32 %v3058, %v3101
    %v3104 = vsub.f32 %v3064, %v3101
    %v3105 = vsub.f32 %v3070, %v3101
    %v3106 = vsub.f32 %v3076, %v3101
    %v3107 = vsub.f32 %v3082, %v3101
    %v3108 = vsub.f32 %v3088, %v3101
    %v3109 = vsub.f32 %v3094, %v3101
    %v3110 = vmul.f32 %v3102, 1.442695
    %v3111 = vpow.pop %v3110
    %v3112 = vmul.f32 %v3103, 1.442695
    %v3113 = vpow.pop %v3112
    %v3114 = vmul.f32 %v3104, 1.442695
    %v3115 = vpow.pop %v3114
    %v3116 = vmul.f32 %v3105, 1.442695
    %v3117 = vpow.pop %v3116
    %v3118 = vmul.f32 %v3106, 1.442695
    %v3119 = vpow.pop %v3118
    %v3120 = vmul.f32 %v3107, 1.442695
    %v3121 = vpow.pop %v3120
    %v3122 = vmul.f32 %v3108, 1.442695
    %v3123 = vpow.pop %v3122
    %v3124 = vmul.f32 %v3109, 1.442695
    %v3125 = vpow.pop %v3124
    %v3126 = vadd.f32 %v3111, %v3113
    %v3127 = vadd.f32 %v3126, %v3115
    %v3128 = vadd.f32 %v3127, %v3117
    %v3129 = vadd.f32 %v3128, %v3119
    %v3130 = vadd.f32 %v3129, %v3121
    %v3131 = vadd.f32 %v3130, %v3123
    %v3132 = vadd.f32 %v3131, %v3125
    %v3133 = vrcp.pop %v3132
    %v3134 = vmul.f32 %v3111, %v3133
    %v3135 = vmul.f32 %v3113, %v3133
    %v3136 = vmul.f32 %v3115, %v3133
    %v3137 = vmul.f32 %v3117, %v3133
    %v3138 = vmul.f32 %v3119, %v3133
    %v3139 = vmul.f32 %v3121, %v3133
    %v3140 = vmul.f32 %v3123, %v3133
    %v3141 = vmul.f32 %v3125, %v3133
    %v3142 = vmul.f32 %v1360, %v3134
    %v3143 = vmul.f32 %v1361, %v3135
    %v3144 = vmul.f32 %v1362, %v3136
    %v3145 = vmul.f32 %v1363, %v3137
    %v3146 = vmul.f32 %v1364, %v3138
    %v3147 = vmul.f32 %v1365, %v3139
    %v3148 = vmul.f32 %v1366, %v3140
    %v3149 = vmul.f32 %v1367, %v3141
    %v3150 = vadd.f32 %v3142, %v3143
    %v3151 = vadd.f32 %v3150, %v3144
    %v3152 = vadd.f32 %v3151, %v3145
    %v3153 = vadd.f32 %v3152, %v3146
    %v3154 = vadd.f32 %v3153, %v3147
    %v3155 = vadd.f32 %v3154, %v3148
    %v3156 = vadd.f32 %v3155, %v3149
    %3157 = vmatprep.subr.mxu0 0.0
    %3158 = vmatpush1.msra.mxu0 %v3022
    %3159 = vmatprep.subr.mxu0 0.0
    %3160 = vmatpush1.msra.mxu0 %v3021
    %3161 = vmatprep.subr.mxu0 0.0
    %3162 = vmatpush1.msra.mxu0 %v3020
    %3163 = vmatprep.subr.mxu0 0.0
    %3164 = vmatpush1.msra.mxu0 %v3019
    %3165 = vmatprep.subr.mxu0 0.0
    %3166 = vmatpush1.msra.mxu0 %v3018
    %3167 = vmatprep.subr.mxu0 0.0
    %3168 = vmatpush1.msra.mxu0 %v3017
    %3169 = vmatprep.subr.mxu0 0.0
    %3170 = vmatpush1.msra.mxu0 %v3016
    %3171 = vmatprep.subr.mxu0 0.0
    %3172 = vmatpush1.msra.mxu0 %v3015
    %3173 = vmatprep.subr.mxu0 0.0
    %3174 = vmatpush1.msra.mxu0 %v3014
    %3175 = vmatprep.subr.mxu0 0.0
    %3176 = vmatpush1.msra.mxu0 %v3013
    %3177 = vmatprep.subr.mxu0 0.0
    %3178 = vmatpush1.msra.mxu0 %v3012
    %3179 = vmatprep.subr.mxu0 0.0
    %3180 = vmatpush1.msra.mxu0 %v3011
    %3181 = vmatprep.subr.mxu0 0.0
    %3182 = vmatpush1.msra.mxu0 %v3010
    %3183 = vmatprep.subr.mxu0 0.0
    %3184 = vmatpush1.msra.mxu0 %v3009
    %3185 = vmatprep.subr.mxu0 0.0
    %3186 = vmatpush1.msra.mxu0 %v3008
    %3187 = vmatprep.subr.mxu0 0.0
    %3188 = vmatpush1.msra.mxu0 %v3007
    %3189 = vmatprep.subr.mxu0 0.0
    %3190 = vmatpush2.msra.mxu0 0.0
    %3191 = vmatprep.subr.mxu0 0.0
    %3192 = vmatpush2.msra.mxu0 0.0
    %3193 = vmatprep.subr.mxu0 0.0
    %3194 = vmatpush2.msra.mxu0 0.0
    %3195 = vmatprep.subr.mxu0 0.0
    %3196 = vmatpush2.msra.mxu0 0.0
    %3197 = vmatprep.subr.mxu0 0.0
    %3198 = vmatpush2.msra.mxu0 0.0
    %3199 = vmatprep.subr.mxu0 0.0
    %3200 = vmatpush2.msra.mxu0 0.0
    %3201 = vmatprep.subr.mxu0 0.0
    %3202 = vmatpush2.msra.mxu0 0.0
    %3203 = vmatprep.subr.mxu0 0.0
    %3204 = vmatpush2.msra.mxu0 0.0
    %3205 = vmatprep.subr.mxu0 0.0
    %3206 = vmatpush2.msra.mxu0 0.0
    %3207 = vmatprep.subr.mxu0 0.0
    %3208 = vmatpush2.msra.mxu0 0.0
    %3209 = vmatprep.subr.mxu0 0.0
    %3210 = vmatpush2.msra.mxu0 0.0
    %3211 = vmatprep.subr.mxu0 0.0
    %3212 = vmatpush2.msra.mxu0 0.0
    %3213 = vmatprep.subr.mxu0 0.0
    %3214 = vmatpush2.msra.mxu0 0.0
    %3215 = vmatprep.subr.mxu0 0.0
    %3216 = vmatpush2.msra.mxu0 0.0
    %3217 = vmatprep.subr.mxu0 0.0
    %3218 = vmatpush2.msra.mxu0 0.0
    %3219 = vmatprep.subr.mxu0 0.0
    %3220 = vmatpush2.msra.mxu0 0.0
    %3221 = vmatprep.mubr.f32.mxu0 0.0
    %3222 = vmatmul.mubr.f32.gmra.mxu0 %v3004
    %v3223 = vpop.f32.mrf.mxu0
    %v3224 = vadd.f32 %v3156, %v3223
    %v3225 = vpop.f32.mrf.mxu0
    %3226 = vdwg.mxu0
    %v3227 = vadd.f32 %v3224, %v3006
    %v3228 = vxor.u32 %v3227, 2147483648
    %v3229 = vmul.f32 %v3228, 1.442695
    %v3230 = vpow.pop %v3229
    %v3231 = vadd.f32 %v3230, 1.0
    %v3232 = vrcp.pop %v3231
    %v3233 = vmul.f32 1.0, %v3232
    %v3234 = vtanh.pop %v3227
    %v3235 = vadd.f32 %v3002, %v3234
    %v3236 = vmul.f32 %v3233, %v3235
    %v3237 = vtanh.pop %v3236
    %v3238 = vmul.f32 %v3233, %v3237
    %3239 = vst [vmem:[#allocation5 + $0x38] sm:$0xff] %v3238
    %v3240 = vld [vmem:[#allocation5] sm:$0xff]
    %v3241 = vld [vmem:[#allocation5 + $0x8] sm:$0xff]
    %v3242 = vld [vmem:[#allocation5 + $0x10] sm:$0xff]
    %v3243 = vld [vmem:[#allocation5 + $0x18] sm:$0xff]
    %v3244 = vld [vmem:[#allocation5 + $0x20] sm:$0xff]
    %v3245 = vld [vmem:[#allocation5 + $0x28] sm:$0xff]
    %v3246 = vld [vmem:[#allocation5 + $0x30] sm:$0xff]
    %v3247 = vld [vmem:[#allocation5 + $0x38] sm:$0xff]
    %v3248 = vld [vmem:[#allocation11] sm:$0xff]
    %v3249 = vld [vmem:[#allocation11 + $0x8] sm:$0xff]
    %v3250 = vld [vmem:[#allocation11 + $0x10] sm:$0xff]
    %v3251 = vld [vmem:[#allocation11 + $0x18] sm:$0xff]
    %v3252 = vld [vmem:[#allocation11 + $0x20] sm:$0xff]
    %v3253 = vld [vmem:[#allocation11 + $0x28] sm:$0xff]
    %v3254 = vld [vmem:[#allocation11 + $0x30] sm:$0xff]
    %v3255 = vld [vmem:[#allocation11 + $0x38] sm:$0xff]
    %v3256 = vld [vmem:[#allocation11 + $0x40] sm:$0xff]
    %v3257 = vld [vmem:[#allocation11 + $0x48] sm:$0xff]
    %v3258 = vld [vmem:[#allocation11 + $0x50] sm:$0xff]
    %v3259 = vld [vmem:[#allocation11 + $0x58] sm:$0xff]
    %v3260 = vld [vmem:[#allocation11 + $0x60] sm:$0xff]
    %v3261 = vld [vmem:[#allocation11 + $0x68] sm:$0xff]
    %v3262 = vld [vmem:[#allocation11 + $0x70] sm:$0xff]
    %v3263 = vld [vmem:[#allocation11 + $0x78] sm:$0xff]
    %v3264 = vld [vmem:[%s7] sm:$0x1]
    %v3266 = vlaneseq
    %v3267 = vshrl.u32 %v3266, 7
    %v3268 = vsub.s32 0, %v3267
    %v3269 = vrot.slane %v3264, %v3268
    %3271 = vmatprep.subr.mxu0 0.0
    %3272 = vmatpush1.msra.mxu0 %v3263
    %3273 = vmatprep.subr.mxu0 0.0
    %3274 = vmatpush1.msra.mxu0 %v3262
    %3275 = vmatprep.subr.mxu0 0.0
    %3276 = vmatpush1.msra.mxu0 %v3261
    %3277 = vmatprep.subr.mxu0 0.0
    %3278 = vmatpush1.msra.mxu0 %v3260
    %3279 = vmatprep.subr.mxu0 0.0
    %3280 = vmatpush1.msra.mxu0 %v3259
    %3281 = vmatprep.subr.mxu0 0.0
    %3282 = vmatpush1.msra.mxu0 %v3258
    %3283 = vmatprep.subr.mxu0 0.0
    %3284 = vmatpush1.msra.mxu0 %v3257
    %3285 = vmatprep.subr.mxu0 0.0
    %3286 = vmatpush1.msra.mxu0 %v3256
    %3287 = vmatprep.subr.mxu0 0.0
    %3288 = vmatpush1.msra.mxu0 %v3255
    %3289 = vmatprep.subr.mxu0 0.0
    %3290 = vmatpush1.msra.mxu0 %v3254
    %3291 = vmatprep.subr.mxu0 0.0
    %3292 = vmatpush1.msra.mxu0 %v3253
    %3293 = vmatprep.subr.mxu0 0.0
    %3294 = vmatpush1.msra.mxu0 %v3252
    %3295 = vmatprep.subr.mxu0 0.0
    %3296 = vmatpush1.msra.mxu0 %v3251
    %3297 = vmatprep.subr.mxu0 0.0
    %3298 = vmatpush1.msra.mxu0 %v3250
    %3299 = vmatprep.subr.mxu0 0.0
    %3300 = vmatpush1.msra.mxu0 %v3249
    %3301 = vmatprep.subr.mxu0 0.0
    %3302 = vmatpush1.msra.mxu0 %v3248
    %3303 = vmatprep.subr.mxu0 0.0
    %3304 = vmatpush2.msra.mxu0 0.0
    %3305 = vmatprep.subr.mxu0 0.0
    %3306 = vmatpush2.msra.mxu0 0.0
    %3307 = vmatprep.subr.mxu0 0.0
    %3308 = vmatpush2.msra.mxu0 0.0
    %3309 = vmatprep.subr.mxu0 0.0
    %3310 = vmatpush2.msra.mxu0 0.0
    %3311 = vmatprep.subr.mxu0 0.0
    %3312 = vmatpush2.msra.mxu0 0.0
    %3313 = vmatprep.subr.mxu0 0.0
    %3314 = vmatpush2.msra.mxu0 0.0
    %3315 = vmatprep.subr.mxu0 0.0
    %3316 = vmatpush2.msra.mxu0 0.0
    %3317 = vmatprep.subr.mxu0 0.0
    %3318 = vmatpush2.msra.mxu0 0.0
    %3319 = vmatprep.subr.mxu0 0.0
    %3320 = vmatpush2.msra.mxu0 0.0
    %3321 = vmatprep.subr.mxu0 0.0
    %3322 = vmatpush2.msra.mxu0 0.0
    %3323 = vmatprep.subr.mxu0 0.0
    %3324 = vmatpush2.msra.mxu0 0.0
    %3325 = vmatprep.subr.mxu0 0.0
    %3326 = vmatpush2.msra.mxu0 0.0
    %3327 = vmatprep.subr.mxu0 0.0
    %3328 = vmatpush2.msra.mxu0 0.0
    %3329 = vmatprep.subr.mxu0 0.0
    %3330 = vmatpush2.msra.mxu0 0.0
    %3331 = vmatprep.subr.mxu0 0.0
    %3332 = vmatpush2.msra.mxu0 0.0
    %3333 = vmatprep.subr.mxu0 0.0
    %3334 = vmatpush2.msra.mxu0 0.0
    %3335 = vmatprep.mubr.f32.mxu0 0.0
    %3336 = vmatmul.mubr.f32.gmra.mxu0 %v3240
    %v3337 = vpop.f32.mrf.mxu0
    %v3338 = vadd.f32 %v3269, %v3337
    %v3339 = vpop.f32.mrf.mxu0
    %3340 = vmatprep.mubr.f32.mxu0 0.0
    %3341 = vmatmul.mubr.f32.gmra.mxu0 %v3241
    %v3342 = vpop.f32.mrf.mxu0
    %v3343 = vadd.f32 %v3269, %v3342
    %v3344 = vpop.f32.mrf.mxu0
    %3345 = vmatprep.mubr.f32.mxu0 0.0
    %3346 = vmatmul.mubr.f32.gmra.mxu0 %v3242
    %v3347 = vpop.f32.mrf.mxu0
    %v3348 = vadd.f32 %v3269, %v3347
    %v3349 = vpop.f32.mrf.mxu0
    %3350 = vmatprep.mubr.f32.mxu0 0.0
    %3351 = vmatmul.mubr.f32.gmra.mxu0 %v3243
    %v3352 = vpop.f32.mrf.mxu0
    %v3353 = vadd.f32 %v3269, %v3352
    %v3354 = vpop.f32.mrf.mxu0
    %3355 = vmatprep.mubr.f32.mxu0 0.0
    %3356 = vmatmul.mubr.f32.gmra.mxu0 %v3244
    %v3357 = vpop.f32.mrf.mxu0
    %v3358 = vadd.f32 %v3269, %v3357
    %v3359 = vpop.f32.mrf.mxu0
    %3360 = vmatprep.mubr.f32.mxu0 0.0
    %3361 = vmatmul.mubr.f32.gmra.mxu0 %v3245
    %v3362 = vpop.f32.mrf.mxu0
    %v3363 = vadd.f32 %v3269, %v3362
    %v3364 = vpop.f32.mrf.mxu0
    %3365 = vmatprep.mubr.f32.mxu0 0.0
    %3366 = vmatmul.mubr.f32.gmra.mxu0 %v3246
    %v3367 = vpop.f32.mrf.mxu0
    %v3368 = vadd.f32 %v3269, %v3367
    %v3369 = vpop.f32.mrf.mxu0
    %3370 = vmatprep.mubr.f32.mxu0 0.0
    %3371 = vmatmul.mubr.f32.gmra.mxu0 %v3247
    %v3372 = vpop.f32.mrf.mxu0
    %v3373 = vadd.f32 %v3269, %v3372
    %v3374 = vpop.f32.mrf.mxu0
    %3375 = vdwg.mxu0
    %v3376 = vlaneseq
    %v3377 = vand.u32 %v3376, 127
    %vm3378 = vcmp.eq.s32.totalorder %v3377, 1
    %v3379 = vsel %vm3378, 1, 0
    %v3380 = vcvt.s32.f32 %v3379
    %v3381 = vld [vmem:[%s2] sm:$0xff]
    %v3382 = vld [vmem:[%s2 + $0x8] sm:$0xff]
    %v3383 = vld [vmem:[%s2 + $0x10] sm:$0xff]
    %v3384 = vld [vmem:[%s2 + $0x18] sm:$0xff]
    %v3385 = vld [vmem:[%s2 + $0x20] sm:$0xff]
    %v3386 = vld [vmem:[%s2 + $0x28] sm:$0xff]
    %v3387 = vld [vmem:[%s2 + $0x30] sm:$0xff]
    %v3388 = vld [vmem:[%s2 + $0x38] sm:$0xff]
    %vm3389 = vcmp.gt.f32.partialorder %v3381, 0.5
    %vm3390 = vcmp.gt.f32.partialorder %v3382, 0.5
    %vm3391 = vcmp.gt.f32.partialorder %v3383, 0.5
    %vm3392 = vcmp.gt.f32.partialorder %v3384, 0.5
    %vm3393 = vcmp.gt.f32.partialorder %v3385, 0.5
    %vm3394 = vcmp.gt.f32.partialorder %v3386, 0.5
    %vm3395 = vcmp.gt.f32.partialorder %v3387, 0.5
    %vm3396 = vcmp.gt.f32.partialorder %v3388, 0.5
    %v3397 = vsel %vm3389, 1, 0
    %v3398 = vsel %vm3390, 1, 0
    %v3399 = vsel %vm3391, 1, 0
    %v3400 = vsel %vm3392, 1, 0
    %v3401 = vsel %vm3393, 1, 0
    %v3402 = vsel %vm3394, 1, 0
    %v3403 = vsel %vm3395, 1, 0
    %v3404 = vsel %vm3396, 1, 0
    %3405 = vset.pattern.permute.xlu0 0
    %3406 = vperm.xlu0 %3405, %v3397
    %v3407 = vpop.permute.xlu0 %3406
    %3408 = vset.pattern.permute.xlu0 0
    %3409 = vperm.xlu0 %3408, %v3398
    %v3410 = vpop.permute.xlu0 %3409
    %3411 = vset.pattern.permute.xlu0 0
    %3412 = vperm.xlu0 %3411, %v3399
    %v3413 = vpop.permute.xlu0 %3412
    %3414 = vset.pattern.permute.xlu0 0
    %3415 = vperm.xlu0 %3414, %v3400
    %v3416 = vpop.permute.xlu0 %3415
    %3417 = vset.pattern.permute.xlu0 0
    %3418 = vperm.xlu0 %3417, %v3401
    %v3419 = vpop.permute.xlu0 %3418
    %3420 = vset.pattern.permute.xlu0 0
    %3421 = vperm.xlu0 %3420, %v3402
    %v3422 = vpop.permute.xlu0 %3421
    %3423 = vset.pattern.permute.xlu0 0
    %3424 = vperm.xlu0 %3423, %v3403
    %v3425 = vpop.permute.xlu0 %3424
    %3426 = vset.pattern.permute.xlu0 0
    %3427 = vperm.xlu0 %3426, %v3404
    %v3428 = vpop.permute.xlu0 %3427
    %vm3429 = vcmp.eq.s32.totalorder %v3407, 1
    %vm3430 = vcmp.eq.s32.totalorder %v3410, 1
    %vm3431 = vcmp.eq.s32.totalorder %v3413, 1
    %vm3432 = vcmp.eq.s32.totalorder %v3416, 1
    %vm3433 = vcmp.eq.s32.totalorder %v3419, 1
    %vm3434 = vcmp.eq.s32.totalorder %v3422, 1
    %vm3435 = vcmp.eq.s32.totalorder %v3425, 1
    %vm3436 = vcmp.eq.s32.totalorder %v3428, 1
    %v3437 = vsel %vm3429, %v3380, %v3338
    %v3438 = vsel %vm3430, %v3380, %v3343
    %v3439 = vsel %vm3431, %v3380, %v3348
    %v3440 = vsel %vm3432, %v3380, %v3353
    %v3441 = vsel %vm3433, %v3380, %v3358
    %v3442 = vsel %vm3434, %v3380, %v3363
    %v3443 = vsel %vm3435, %v3380, %v3368
    %v3444 = vsel %vm3436, %v3380, %v3373
    %3445 = vst [vmem:[#allocation12] sm:$0xff] %v3437
    %3446 = vst [vmem:[#allocation12 + $0x8] sm:$0xff] %v3438
    %3447 = vst [vmem:[#allocation12 + $0x10] sm:$0xff] %v3439
    %3448 = vst [vmem:[#allocation12 + $0x18] sm:$0xff] %v3440
    %3449 = vst [vmem:[#allocation12 + $0x20] sm:$0xff] %v3441
    %3450 = vst [vmem:[#allocation12 + $0x28] sm:$0xff] %v3442
    %3451 = vst [vmem:[#allocation12 + $0x30] sm:$0xff] %v3443
    %3452 = vst [vmem:[#allocation12 + $0x38] sm:$0xff] %v3444
    // Predicated region
    $region46: #{tpu_custom_call.1} parent=1 // pred_check
      _
    $region47: #{tpu_custom_call.1} parent=1 // pred_check_branch
      %3454 = sbr.rel (0) target = $region49
    $region48: #{tpu_custom_call.1} parent=1 // pred_region
      %s3456 = ssub.s32 1024, 1024
      %3457 = vsyncadd [#allocation8], %s3456
      %s3458 = sshll.u32 [#allocation12], 4
      %s3459 = int_to_ptr.vmem [resolvable:$true] %s3458
      %3464 = dma.vmem_to_hbm [thread:$0]  %s3459, 1024, %s8, [#allocation8], 128, 128, 8
    $region49: #{tpu_custom_call.1} parent=1 // pred_fallthru
      _
    // Predicated region
    $region50: #{tpu_custom_call.1} parent=1 // pred_check
      _
    $region51: #{tpu_custom_call.1} parent=1 // pred_check_branch
      %3466 = sbr.rel (0) target = $region53
    $region52: #{tpu_custom_call.1} parent=1 // pred_region
      %3467 = dma.done [#allocation8], 1024
    $region53: #{tpu_custom_call.1} parent=1 // pred_fallthru
      _
    %3468 = vsyncpa [#allocation7], 1
    %3469 = vsyncpa [#allocation10], 1
    %3470 = vsyncpa [#allocation8], 1

</llo_original>
